<compile_context>
chip_gen: v7x
topology: tpu7x:2x2x1
jax: 0.10.0
libtpu: 0.0.40
codegen_flags: <defaults>
</compile_context>

<pallas_src>
import functools

import jax
import jax.numpy as jnp
from jax.experimental import pallas as pl
from jax.experimental.pallas import tpu as pltpu


def _round_up(x, m):
    return ((x + m - 1) // m) * m


# ---------------- one-time parameter prep (hoisted out of the per-call path) ----------

def prepare_params(weights, biases):
    """Transpose / pad / cast PyTorch-layout Linear params ONCE.

    weights[i]: [out_i, in_i] f32, biases[i]: [out_i] f32 (torch.nn.Linear layout).
    Returns (w_list, b_list):
      w_list[i]: bf16 [in_pad_i, out_pad_i]   (layer 0 keeps K = raw in_channels so x
                                               needs no feature padding)
      b_list[i]: f32  [1, out_pad_i]; the LAST layer's padded class lanes are -1e30
                 (padded weight columns are zero, so z_pad == b_pad == -1e30 and they
                 vanish from the in-kernel log-sum-exp — mask baked into the bias).
    """
    num_layers = len(weights)
    w_list, b_list = [], []
    for i, (w, b) in enumerate(zip(weights, biases)):
        fout, fin = w.shape
        fin_pad = fin if i == 0 else _round_up(fin, 128)
        fout_pad = _round_up(fout, 128)
        wt = jnp.zeros((fin_pad, fout_pad), jnp.float32).at[:fin, :fout].set(w.T)
        w_list.append(wt.astype(jnp.bfloat16))
        pad_val = -1e30 if i == num_layers - 1 else 0.0
        bp = jnp.full((1, fout_pad), pad_val, jnp.float32).at[0, :fout].set(b)
        b_list.append(bp)
    return tuple(w_list), tuple(b_list)


# ---------------- fused Pallas kernel ----------------

def _make_fused_mlp_kernel(num_layers):
    """Kernel refs: (x_tile, w0, b0, w1, b1, ..., w_{L-1}, b_{L-1}, out_tile)."""

    def kernel(*refs):
        x_ref = refs[0]
        o_ref = refs[-1]
        params = refs[1:-1]                       # (w0, b0, w1, b1, ...)

        # f32 -> bf16 cast inside the kernel (x arrives raw from HBM, no pre-pass).
        h = x_ref[...].astype(jnp.bfloat16)       # [tile_m, fin]
        for layer in range(num_layers):
            w_ref = params[2 * layer]             # bf16 [Fin_pad, Fout_pad] (pre-transposed)
            b_ref = params[2 * layer + 1]         # f32  [1, Fout_pad]
            z = jnp.dot(h, w_ref[...], preferred_element_type=jnp.float32)
            z = z + b_ref[...]                    # f32 bias add
            if layer < num_layers - 1:
                # ReLU in f32, re-quantize activations to bf16 for the next MXU pass.
                # (dropout = identity in eval mode)
                h = jnp.maximum(z, 0.0).astype(jnp.bfloat16)
            else:
                # Padded class lanes already hold -1e30 (baked into the bias): their
                # exp underflows to 0, so log-sum-exp over the padded width is exact.
                m = jnp.max(z, axis=-1, keepdims=True)
                shifted = z - m
                lse = jnp.log(jnp.sum(jnp.exp(shifted), axis=-1, keepdims=True))
                o_ref[...] = (shifted - lse).astype(o_ref.dtype)

    return kernel


# ---------------- wrapper ----------------

@functools.partial(jax.jit, static_argnames=("out_channels", "tile_m", "unpad_output"))
def mlp_forward(x, w_list, b_list, *, out_channels, tile_m=1024, unpad_output=True):
    """Fused MLP forward: log_softmax(MLP(x)).

    x: [N, in_channels] f32 (unpadded; last dim is the full-array dim so any width is OK).
    (w_list, b_list): output of prepare_params().
    Returns [N, out_channels] f32 (or the lane-dense [N, out_pad] buffer if
    unpad_output=False, saving one post-kernel HBM pass).
    """
    n, fin = x.shape
    num_layers = len(w_list)
    out_pad = b_list[-1].shape[-1]

    grid = (pl.cdiv(n, tile_m),)

    in_specs = [pl.BlockSpec((tile_m, fin), lambda i: (i, 0))]
    flat_params = []
    for li in range(num_layers):
        # Grid-invariant blocks: weights/biases fetched once, stay VMEM-resident.
        in_specs.append(pl.BlockSpec(w_list[li].shape, lambda i: (0, 0)))
        in_specs.append(pl.BlockSpec(b_list[li].shape, lambda i: (0, 0)))
        flat_params.extend([w_list[li], b_list[li]])

    out_spec = pl.BlockSpec((tile_m, out_pad), lambda i: (i, 0))

    out = pl.pallas_call(
        _make_fused_mlp_kernel(num_layers),
        out_shape=jax.ShapeDtypeStruct((n, out_pad), jnp.float32),
        grid=grid,
        in_specs=in_specs,
        out_specs=out_spec,
        compiler_params=pltpu.CompilerParams(
            dimension_semantics=("parallel",),       # megacore row-split on v7x
            vmem_limit_bytes=32 * 1024 * 1024,       # raises v5e's 16 MiB scoped default
        ),
    )(x, *flat_params)

    if unpad_output:
        out = out[:, :out_channels]
    return out


# ---------------- pure-JAX reference (same bf16/f32 mixed precision) ----------------

def mlp_reference(x, weights, biases):
    h = x.astype(jnp.bfloat16)
    for w, b in zip(weights[:-1], biases[:-1]):
        z = jnp.dot(h, w.T.astype(jnp.bfloat16),
                    preferred_element_type=jnp.float32) + b
        h = jnp.maximum(z, 0.0).astype(jnp.bfloat16)
    z = jnp.dot(h, weights[-1].T.astype(jnp.bfloat16),
                preferred_element_type=jnp.float32) + biases[-1]
    return jax.nn.log_softmax(z, axis=-1)


# ---------------- deterministic parameter init ----------------

def init_mlp_params(key, in_channels, hidden_channels, out_channels, num_layers):
    dims = [in_channels] + [hidden_channels] * (num_layers - 1) + [out_channels]
    weights, biases = [], []
    for i in range(num_layers):
        fan_in, fan_out = dims[i], dims[i + 1]
        key, kw, kb = jax.random.split(key, 3)
        bound = 1.0 / jnp.sqrt(fan_in)
        w = jax.random.uniform(kw, (fan_out, fan_in), jnp.float32, -bound, bound)
        b = jax.random.uniform(kb, (fan_out,), jnp.float32, -bound, bound)
        weights.append(w)
        biases.append(b)
    return weights, biases


if __name__ == "__main__":
    # Small shapes consistent with the module; tile_m=1024 -> grid of 2 row tiles
    # (keeps both v7x TensorCores busy even at toy scale).
    N, IN_C, HID_C, OUT_C, NUM_LAYERS = 2048, 32, 64, 16, 3
    TILE_M = 1024

    key = jax.random.PRNGKey(0)
    key, kx = jax.random.split(key)
    x = jax.random.normal(kx, (N, IN_C), jnp.float32)

    weights, biases = init_mlp_params(key, IN_C, HID_C, OUT_C, NUM_LAYERS)

    # One-time parameter prep (transpose / 128-pad / bf16 cast / bake class mask).
    w_list, b_list = prepare_params(weights, biases)
    w_list = jax.block_until_ready(w_list)

    out = mlp_forward(x, w_list, b_list, out_channels=OUT_C, tile_m=TILE_M)
    out = jax.block_until_ready(out)

    # correctness checks
    assert out.shape == (N, OUT_C)
    row_sums = jnp.sum(jnp.exp(out), axis=-1)
    assert bool(jnp.allclose(row_sums, 1.0, atol=1e-3)), "log_softmax rows not normalized"

    ref = mlp_reference(x, weights, biases)
    assert bool(jnp.allclose(out, ref, atol=5e-3, rtol=5e-3)), (
        f"mismatch vs reference: max abs diff {float(jnp.max(jnp.abs(out - ref)))}"
    )

    print("KERNEL_OK")
</pallas_src>

<mosaic_0001>
module attributes {stable_mosaic.version = 11 : i64} {
  func.func @kernel(%arg0: i32, %arg1: memref<1024x32xf32, #tpu.memory_space<vmem>>, %arg2: memref<32x128xbf16, #tpu.memory_space<vmem>>, %arg3: memref<1x128xf32, #tpu.memory_space<vmem>>, %arg4: memref<128x128xbf16, #tpu.memory_space<vmem>>, %arg5: memref<1x128xf32, #tpu.memory_space<vmem>>, %arg6: memref<128x128xbf16, #tpu.memory_space<vmem>>, %arg7: memref<1x128xf32, #tpu.memory_space<vmem>>, %arg8: memref<1024x128xf32, #tpu.memory_space<vmem>>) attributes {dimension_semantics = [#tpu.dimension_semantics<parallel>], iteration_bounds = array<i64: 2>, scalar_prefetch = 0 : i64, scratch_operands = 0 : i64, tpu.core_type = #tpu.core_type<tc>, window_params = [{transform_indices = @transform_0, window_bounds = array<i64: 1024, 32>}, {pipeline_mode = #tpu.pipeline_mode<synchronous>, transform_indices = @transform_1, window_bounds = array<i64: 32, 128>}, {pipeline_mode = #tpu.pipeline_mode<synchronous>, transform_indices = @transform_2, window_bounds = array<i64: 1, 128>}, {pipeline_mode = #tpu.pipeline_mode<synchronous>, transform_indices = @transform_3, window_bounds = array<i64: 128, 128>}, {pipeline_mode = #tpu.pipeline_mode<synchronous>, transform_indices = @transform_4, window_bounds = array<i64: 1, 128>}, {pipeline_mode = #tpu.pipeline_mode<synchronous>, transform_indices = @transform_5, window_bounds = array<i64: 128, 128>}, {pipeline_mode = #tpu.pipeline_mode<synchronous>, transform_indices = @transform_6, window_bounds = array<i64: 1, 128>}, {transform_indices = @transform_7, window_bounds = array<i64: 1024, 128>}]} {
    %c0 = arith.constant 0 : index
    %c0_0 = arith.constant 0 : index
    %0 = vector.load %arg1[%c0, %c0_0] : memref<1024x32xf32, #tpu.memory_space<vmem>>, vector<1024x32xf32>
    %1 = arith.truncf %0 : vector<1024x32xf32> to vector<1024x32xbf16>
    %c0_1 = arith.constant 0 : index
    %c0_2 = arith.constant 0 : index
    %2 = vector.load %arg2[%c0_1, %c0_2] : memref<32x128xbf16, #tpu.memory_space<vmem>>, vector<32x128xbf16>
    %cst = arith.constant dense<0.000000e+00> : vector<1024x128xf32>
    %3 = tpu.matmul %1, %2, %cst {dimension_numbers = #tpu.dot_dimension_numbers<[1], [0], [0], [1], [0, 0, 1, 1], [], []>} : vector<1024x32xbf16>, vector<32x128xbf16>, vector<1024x128xf32> -> vector<1024x128xf32>
    %c0_3 = arith.constant 0 : index
    %c0_4 = arith.constant 0 : index
    %4 = vector.load %arg3[%c0_3, %c0_4] : memref<1x128xf32, #tpu.memory_space<vmem>>, vector<1x128xf32>
    %5 = vector.broadcast %4 : vector<1x128xf32> to vector<1024x128xf32>
    %6 = arith.addf %3, %5 : vector<1024x128xf32>
    %cst_5 = arith.constant 0.000000e+00 : f32
    %7 = vector.broadcast %cst_5 : f32 to vector<1024x128xf32>
    %8 = arith.maximumf %6, %7 : vector<1024x128xf32>
    %9 = arith.truncf %8 : vector<1024x128xf32> to vector<1024x128xbf16>
    %c0_6 = arith.constant 0 : index
    %c0_7 = arith.constant 0 : index
    %10 = vector.load %arg4[%c0_6, %c0_7] : memref<128x128xbf16, #tpu.memory_space<vmem>>, vector<128x128xbf16>
    %cst_8 = arith.constant dense<0.000000e+00> : vector<1024x128xf32>
    %11 = tpu.matmul %9, %10, %cst_8 {dimension_numbers = #tpu.dot_dimension_numbers<[1], [0], [0], [1], [0, 0, 1, 1], [], []>} : vector<1024x128xbf16>, vector<128x128xbf16>, vector<1024x128xf32> -> vector<1024x128xf32>
    %c0_9 = arith.constant 0 : index
    %c0_10 = arith.constant 0 : index
    %12 = vector.load %arg5[%c0_9, %c0_10] : memref<1x128xf32, #tpu.memory_space<vmem>>, vector<1x128xf32>
    %13 = vector.broadcast %12 : vector<1x128xf32> to vector<1024x128xf32>
    %14 = arith.addf %11, %13 : vector<1024x128xf32>
    %cst_11 = arith.constant 0.000000e+00 : f32
    %15 = vector.broadcast %cst_11 : f32 to vector<1024x128xf32>
    %16 = arith.maximumf %14, %15 : vector<1024x128xf32>
    %17 = arith.truncf %16 : vector<1024x128xf32> to vector<1024x128xbf16>
    %c0_12 = arith.constant 0 : index
    %c0_13 = arith.constant 0 : index
    %18 = vector.load %arg6[%c0_12, %c0_13] : memref<128x128xbf16, #tpu.memory_space<vmem>>, vector<128x128xbf16>
    %cst_14 = arith.constant dense<0.000000e+00> : vector<1024x128xf32>
    %19 = tpu.matmul %17, %18, %cst_14 {dimension_numbers = #tpu.dot_dimension_numbers<[1], [0], [0], [1], [0, 0, 1, 1], [], []>} : vector<1024x128xbf16>, vector<128x128xbf16>, vector<1024x128xf32> -> vector<1024x128xf32>
    %c0_15 = arith.constant 0 : index
    %c0_16 = arith.constant 0 : index
    %20 = vector.load %arg7[%c0_15, %c0_16] : memref<1x128xf32, #tpu.memory_space<vmem>>, vector<1x128xf32>
    %21 = vector.broadcast %20 : vector<1x128xf32> to vector<1024x128xf32>
    %22 = arith.addf %19, %21 : vector<1024x128xf32>
    %cst_17 = arith.constant dense<0xFF800000> : vector<1024xf32>
    %23 = vector.multi_reduction <maximumf>, %22, %cst_17 [1] : vector<1024x128xf32> to vector<1024xf32>
    %24 = vector.shape_cast %23 : vector<1024xf32> to vector<1024x1xf32>
    %25 = vector.broadcast %24 : vector<1024x1xf32> to vector<1024x128xf32>
    %26 = arith.subf %22, %25 : vector<1024x128xf32>
    %27 = math.exp %26 : vector<1024x128xf32>
    %cst_18 = arith.constant dense<0.000000e+00> : vector<1024xf32>
    %28 = vector.multi_reduction <add>, %27, %cst_18 [1] : vector<1024x128xf32> to vector<1024xf32>
    %29 = vector.shape_cast %28 : vector<1024xf32> to vector<1024x1xf32>
    %30 = math.log %29 : vector<1024x1xf32>
    %31 = vector.broadcast %30 : vector<1024x1xf32> to vector<1024x128xf32>
    %32 = arith.subf %26, %31 : vector<1024x128xf32>
    %c0_19 = arith.constant 0 : index
    %c0_20 = arith.constant 0 : index
    %33 = vector.load %arg8[%c0_19, %c0_20] : memref<1024x128xf32, #tpu.memory_space<vmem>>, vector<1024x128xf32>
    tpu.vector_store %arg8[%c0_19, %c0_20], %32 {strides = array<i32>} : memref<1024x128xf32, #tpu.memory_space<vmem>>, vector<1024x128xf32>,
    return
  }
  func.func @transform_0(%arg0: i32) -> (i32, i32) {
    %c0_i32 = arith.constant 0 : i32
    %c0_i32_0 = arith.constant 0 : i32
    return %arg0, %c0_i32 : i32, i32
  }
  func.func @transform_1(%arg0: i32) -> (i32, i32) {
    %c0_i32 = arith.constant 0 : i32
    %c0_i32_0 = arith.constant 0 : i32
    %c0_i32_1 = arith.constant 0 : i32
    return %c0_i32, %c0_i32_0 : i32, i32
  }
  func.func @transform_2(%arg0: i32) -> (i32, i32) {
    %c0_i32 = arith.constant 0 : i32
    %c0_i32_0 = arith.constant 0 : i32
    %c0_i32_1 = arith.constant 0 : i32
    return %c0_i32, %c0_i32_0 : i32, i32
  }
  func.func @transform_3(%arg0: i32) -> (i32, i32) {
    %c0_i32 = arith.constant 0 : i32
    %c0_i32_0 = arith.constant 0 : i32
    %c0_i32_1 = arith.constant 0 : i32
    return %c0_i32, %c0_i32_0 : i32, i32
  }
  func.func @transform_4(%arg0: i32) -> (i32, i32) {
    %c0_i32 = arith.constant 0 : i32
    %c0_i32_0 = arith.constant 0 : i32
    %c0_i32_1 = arith.constant 0 : i32
    return %c0_i32, %c0_i32_0 : i32, i32
  }
  func.func @transform_5(%arg0: i32) -> (i32, i32) {
    %c0_i32 = arith.constant 0 : i32
    %c0_i32_0 = arith.constant 0 : i32
    %c0_i32_1 = arith.constant 0 : i32
    return %c0_i32, %c0_i32_0 : i32, i32
  }
  func.func @transform_6(%arg0: i32) -> (i32, i32) {
    %c0_i32 = arith.constant 0 : i32
    %c0_i32_0 = arith.constant 0 : i32
    %c0_i32_1 = arith.constant 0 : i32
    return %c0_i32, %c0_i32_0 : i32, i32
  }
  func.func @transform_7(%arg0: i32) -> (i32, i32) {
    %c0_i32 = arith.constant 0 : i32
    %c0_i32_0 = arith.constant 0 : i32
    return %arg0, %c0_i32 : i32, i32
  }
}

</mosaic_0001>

<llo_original>
// kernel: mlp_forward.1
$region0: #{mlp_forward.1}
  #allocation0 [shape = 'u32[]', space=smem, size = 0x4, offset = 0x4, fixed_abs, tag = 'smem constant byte address 0x4 - core index']
  #allocation1 [shape = 'u32[144,128]{1,0:T(1,128)}', space=vmem, size = 0x12000, scoped, tag = 'internal scratch']
  %s0 = inlined_call_operand.vmem [shape: f32[2048,32], index: 0, kind: input, shape index: {}]
  %s1 = inlined_call_operand.vmem [shape: bf16[32,128], index: 1, kind: input, shape index: {}]
  %s2 = inlined_call_operand.vmem [shape: f32[1,128], index: 2, kind: input, shape index: {}]
  %s3 = inlined_call_operand.vmem [shape: bf16[128,128], index: 3, kind: input, shape index: {}]
  %s4 = inlined_call_operand.vmem [shape: f32[1,128], index: 4, kind: input, shape index: {}]
  %s5 = inlined_call_operand.vmem [shape: bf16[128,128], index: 5, kind: input, shape index: {}]
  %s6 = inlined_call_operand.vmem [shape: f32[1,128], index: 6, kind: input, shape index: {}]
  %s7 = inlined_call_operand.vmem [shape: f32[2048,128], index: 7, kind: output, shape index: {}]
  %s8 = sld [smem:[#allocation0]]
  $region61: #{mlp_forward.1} parent=0
    _
  %s10 = ssub.s32 1, %s8
  %s11 = scalar_select 0, %s10, %s8
  loop: start=0, step=1, limit=4
  $region2: #{mlp_forward.1} parent=0 // loop_pre_header
    _
  $region3: #{mlp_forward.1} parent=0 // loop_header
    %s13 = sphi 0, %s17
    %p14 = scmp.ge.s32.totalorder %s13, 4
    %s23 = sphi 0, %s25
    %s26 = sphi 0, %s23
    %s27 = sphi 0, %s26
    %s43 = sphi 0, %s27
    %s47 = sphi 0, %s47
    %s49 = sphi 0, %s47
    %s50 = sphi 0, %s49
    %s64 = sphi 0, %s50
    %s68 = sphi 0, %s68
    %s70 = sphi 0, %s68
    %s71 = sphi 0, %s70
    %s85 = sphi 0, %s71
    %s89 = sphi 0, %s89
    %s91 = sphi 0, %s89
    %s92 = sphi 0, %s91
    %s106 = sphi 0, %s92
    %s110 = sphi 0, %s110
    %s112 = sphi 0, %s110
    %s113 = sphi 0, %s112
    %s127 = sphi 0, %s113
    %s131 = sphi 0, %s131
    %s133 = sphi 0, %s131
    %s134 = sphi 0, %s133
    %s148 = sphi 0, %s134
    %s152 = sphi 0, %s152
    %s154 = sphi 0, %s152
    %s155 = sphi 0, %s154
    %s169 = sphi 0, %s155
    %s175 = sphi 0, %s177
    %s178 = sphi 0, %s175
    %s179 = sphi 0, %s178
    %s195 = sphi 0, %s179
  $region4: #{mlp_forward.1} parent=0 // loop_header_branch
    %16 = sbr.rel (%p14) target = $region8
  $region5: #{mlp_forward.1} parent=0 // loop_body
    %s18 = ssub.s32 %s13, 1
    %s19 = ssub.s32 %s13, 2
    %s20 = sadd.s32 %s13, 1
    %s21 = ssub.s32 %s13, %s20
    %p22 = scmp.eq.s32.totalorder %s21, 0
    %s24 = sadd.s32 %s23, 1
    %s25 = scalar_select %p22, %s23, %s24
    %p28 = pneg %p22
    %p29 = scmp.eq.s32.totalorder %s13, 1
    %p30 = por %p28, %p29
    %p31 = scmp.ne.s32.totalorder %s23, %s26
    %p32 = scmp.eq.s32.totalorder %s13, 0
    %p33 = por %p31, %p32
    %p34 = scmp.ne.s32.totalorder %s23, %s26
    %p35 = scmp.eq.s32.totalorder %s18, 1
    %p36 = por %p34, %p35
    %p37 = scmp.ne.s32.totalorder %s26, %s27
    %p38 = scmp.eq.s32.totalorder %s18, 0
    %p39 = por %p37, %p38
    %p40 = scmp.ne.s32.totalorder %s26, %s27
    %p41 = scmp.eq.s32.totalorder %s19, 1
    %p42 = por %p40, %p41
    %p44 = scmp.ne.s32.totalorder %s27, %s43
    %p45 = scmp.eq.s32.totalorder %s19, 0
    %p46 = por %p44, %p45
    %s48 = sadd.s32 %s47, 1
    %p51 = scmp.eq.s32.totalorder %s13, 1
    %p52 = scmp.ne.s32.totalorder %s47, %s49
    %p53 = scmp.eq.s32.totalorder %s13, 0
    %p54 = por %p52, %p53
    %p55 = scmp.ne.s32.totalorder %s47, %s49
    %p56 = scmp.eq.s32.totalorder %s18, 1
    %p57 = por %p55, %p56
    %p58 = scmp.ne.s32.totalorder %s49, %s50
    %p59 = scmp.eq.s32.totalorder %s18, 0
    %p60 = por %p58, %p59
    %p61 = scmp.ne.s32.totalorder %s49, %s50
    %p62 = scmp.eq.s32.totalorder %s19, 1
    %p63 = por %p61, %p62
    %p65 = scmp.ne.s32.totalorder %s50, %s64
    %p66 = scmp.eq.s32.totalorder %s19, 0
    %p67 = por %p65, %p66
    %s69 = sadd.s32 %s68, 1
    %p72 = scmp.eq.s32.totalorder %s13, 1
    %p73 = scmp.ne.s32.totalorder %s68, %s70
    %p74 = scmp.eq.s32.totalorder %s13, 0
    %p75 = por %p73, %p74
    %p76 = scmp.ne.s32.totalorder %s68, %s70
    %p77 = scmp.eq.s32.totalorder %s18, 1
    %p78 = por %p76, %p77
    %p79 = scmp.ne.s32.totalorder %s70, %s71
    %p80 = scmp.eq.s32.totalorder %s18, 0
    %p81 = por %p79, %p80
    %p82 = scmp.ne.s32.totalorder %s70, %s71
    %p83 = scmp.eq.s32.totalorder %s19, 1
    %p84 = por %p82, %p83
    %p86 = scmp.ne.s32.totalorder %s71, %s85
    %p87 = scmp.eq.s32.totalorder %s19, 0
    %p88 = por %p86, %p87
    %s90 = sadd.s32 %s89, 1
    %p93 = scmp.eq.s32.totalorder %s13, 1
    %p94 = scmp.ne.s32.totalorder %s89, %s91
    %p95 = scmp.eq.s32.totalorder %s13, 0
    %p96 = por %p94, %p95
    %p97 = scmp.ne.s32.totalorder %s89, %s91
    %p98 = scmp.eq.s32.totalorder %s18, 1
    %p99 = por %p97, %p98
    %p100 = scmp.ne.s32.totalorder %s91, %s92
    %p101 = scmp.eq.s32.totalorder %s18, 0
    %p102 = por %p100, %p101
    %p103 = scmp.ne.s32.totalorder %s91, %s92
    %p104 = scmp.eq.s32.totalorder %s19, 1
    %p105 = por %p103, %p104
    %p107 = scmp.ne.s32.totalorder %s92, %s106
    %p108 = scmp.eq.s32.totalorder %s19, 0
    %p109 = por %p107, %p108
    %s111 = sadd.s32 %s110, 1
    %p114 = scmp.eq.s32.totalorder %s13, 1
    %p115 = scmp.ne.s32.totalorder %s110, %s112
    %p116 = scmp.eq.s32.totalorder %s13, 0
    %p117 = por %p115, %p116
    %p118 = scmp.ne.s32.totalorder %s110, %s112
    %p119 = scmp.eq.s32.totalorder %s18, 1
    %p120 = por %p118, %p119
    %p121 = scmp.ne.s32.totalorder %s112, %s113
    %p122 = scmp.eq.s32.totalorder %s18, 0
    %p123 = por %p121, %p122
    %p124 = scmp.ne.s32.totalorder %s112, %s113
    %p125 = scmp.eq.s32.totalorder %s19, 1
    %p126 = por %p124, %p125
    %p128 = scmp.ne.s32.totalorder %s113, %s127
    %p129 = scmp.eq.s32.totalorder %s19, 0
    %p130 = por %p128, %p129
    %s132 = sadd.s32 %s131, 1
    %p135 = scmp.eq.s32.totalorder %s13, 1
    %p136 = scmp.ne.s32.totalorder %s131, %s133
    %p137 = scmp.eq.s32.totalorder %s13, 0
    %p138 = por %p136, %p137
    %p139 = scmp.ne.s32.totalorder %s131, %s133
    %p140 = scmp.eq.s32.totalorder %s18, 1
    %p141 = por %p139, %p140
    %p142 = scmp.ne.s32.totalorder %s133, %s134
    %p143 = scmp.eq.s32.totalorder %s18, 0
    %p144 = por %p142, %p143
    %p145 = scmp.ne.s32.totalorder %s133, %s134
    %p146 = scmp.eq.s32.totalorder %s19, 1
    %p147 = por %p145, %p146
    %p149 = scmp.ne.s32.totalorder %s134, %s148
    %p150 = scmp.eq.s32.totalorder %s19, 0
    %p151 = por %p149, %p150
    %s153 = sadd.s32 %s152, 1
    %p156 = scmp.eq.s32.totalorder %s13, 1
    %p157 = scmp.ne.s32.totalorder %s152, %s154
    %p158 = scmp.eq.s32.totalorder %s13, 0
    %p159 = por %p157, %p158
    %p160 = scmp.ne.s32.totalorder %s152, %s154
    %p161 = scmp.eq.s32.totalorder %s18, 1
    %p162 = por %p160, %p161
    %p163 = scmp.ne.s32.totalorder %s154, %s155
    %p164 = scmp.eq.s32.totalorder %s18, 0
    %p165 = por %p163, %p164
    %p166 = scmp.ne.s32.totalorder %s154, %s155
    %p167 = scmp.eq.s32.totalorder %s19, 1
    %p168 = por %p166, %p167
    %p170 = scmp.ne.s32.totalorder %s155, %s169
    %p171 = scmp.eq.s32.totalorder %s19, 0
    %p172 = por %p170, %p171
    %s173 = ssub.s32 %s13, %s20
    %p174 = scmp.eq.s32.totalorder %s173, 0
    %s176 = sadd.s32 %s175, 1
    %s177 = scalar_select %p174, %s175, %s176
    %p180 = pneg %p174
    %p181 = scmp.eq.s32.totalorder %s13, 1
    %p182 = por %p180, %p181
    %p183 = scmp.ne.s32.totalorder %s175, %s178
    %p184 = scmp.eq.s32.totalorder %s13, 0
    %p185 = por %p183, %p184
    %p186 = scmp.ne.s32.totalorder %s175, %s178
    %p187 = scmp.eq.s32.totalorder %s18, 1
    %p188 = por %p186, %p187
    %p189 = scmp.ne.s32.totalorder %s178, %s179
    %p190 = scmp.eq.s32.totalorder %s18, 0
    %p191 = por %p189, %p190
    %p192 = scmp.ne.s32.totalorder %s178, %s179
    %p193 = scmp.eq.s32.totalorder %s19, 1
    %p194 = por %p192, %p193
    %p196 = scmp.ne.s32.totalorder %s179, %s195
    %p197 = scmp.eq.s32.totalorder %s19, 0
    %p198 = por %p196, %p197
    %p199 = scmp.le.s32.totalorder 1, %s13
    %p200 = scmp.lt.s32.totalorder %s13, 3
    %p201 = pnand %p199, %p200
    %p202 = pneg %p201
    // Predicated region
    $region9: #{mlp_forward.1} parent=5 // pred_check
      _
    $region10: #{mlp_forward.1} parent=5 // pred_check_branch
      %204 = sbr.rel (%p201) target = $region12
    $region11: #{mlp_forward.1} parent=5 // pred_region
      %s205 = ssub.s32 %s13, 1
      // Predicated region
      $region13: #{mlp_forward.1} parent=11 // pred_check
        %p206 = pneg %p60
      $region14: #{mlp_forward.1} parent=11 // pred_check_branch
        %208 = sbr.rel (%p206) target = $region16
      $region15: #{mlp_forward.1} parent=11 // pred_region
        _
      $region16: #{mlp_forward.1} parent=11 // pred_fallthru
        _
      // Predicated region
      $region17: #{mlp_forward.1} parent=11 // pred_check
        %p209 = pneg %p81
      $region18: #{mlp_forward.1} parent=11 // pred_check_branch
        %211 = sbr.rel (%p209) target = $region20
      $region19: #{mlp_forward.1} parent=11 // pred_region
        _
      $region20: #{mlp_forward.1} parent=11 // pred_fallthru
        _
      // Predicated region
      $region21: #{mlp_forward.1} parent=11 // pred_check
        %p212 = pneg %p102
      $region22: #{mlp_forward.1} parent=11 // pred_check_branch
        %214 = sbr.rel (%p212) target = $region24
      $region23: #{mlp_forward.1} parent=11 // pred_region
        _
      $region24: #{mlp_forward.1} parent=11 // pred_fallthru
        _
      // Predicated region
      $region25: #{mlp_forward.1} parent=11 // pred_check
        %p215 = pneg %p123
      $region26: #{mlp_forward.1} parent=11 // pred_check_branch
        %217 = sbr.rel (%p215) target = $region28
      $region27: #{mlp_forward.1} parent=11 // pred_region
        _
      $region28: #{mlp_forward.1} parent=11 // pred_fallthru
        _
      // Predicated region
      $region29: #{mlp_forward.1} parent=11 // pred_check
        %p218 = pneg %p144
      $region30: #{mlp_forward.1} parent=11 // pred_check_branch
        %220 = sbr.rel (%p218) target = $region32
      $region31: #{mlp_forward.1} parent=11 // pred_region
        _
      $region32: #{mlp_forward.1} parent=11 // pred_fallthru
        _
      // Predicated region
      $region33: #{mlp_forward.1} parent=11 // pred_check
        %p221 = pneg %p165
      $region34: #{mlp_forward.1} parent=11 // pred_check_branch
        %223 = sbr.rel (%p221) target = $region36
      $region35: #{mlp_forward.1} parent=11 // pred_region
        _
      $region36: #{mlp_forward.1} parent=11 // pred_fallthru
        _
    $region12: #{mlp_forward.1} parent=5 // pred_fallthru
      _
    %p224 = scmp.lt.s32.totalorder %s13, 2
    // Predicated region
    $region37: #{mlp_forward.1} parent=5 // pred_check
      %p225 = pneg %p224
    $region38: #{mlp_forward.1} parent=5 // pred_check_branch
      %227 = sbr.rel (%p225) target = $region40
    $region39: #{mlp_forward.1} parent=5 // pred_region
      // Predicated region
      $region41: #{mlp_forward.1} parent=39 // pred_check
        %p228 = pneg %p33
      $region42: #{mlp_forward.1} parent=39 // pred_check_branch
        %230 = sbr.rel (%p228) target = $region44
      $region43: #{mlp_forward.1} parent=39 // pred_region
        %s231 = smul.u32 128, %s13
        %p232 = scmp.lt.s32.totalorder %s231, 255
        %s233 = scalar_select %p232, %s231, 255
        %s234 = smul.addr %s233, 8
        %s235 = scalar_lea.vmem %s0, %s234
        %s236 = smul.u32 128, %s13
      $region44: #{mlp_forward.1} parent=39 // pred_fallthru
        _
    $region40: #{mlp_forward.1} parent=5 // pred_fallthru
      _
    %p237 = scmp.le.s32.totalorder 1, %s13
    %p238 = scmp.lt.s32.totalorder %s13, 3
    %p239 = pnand %p237, %p238
    %p240 = pneg %p239
    // Predicated region
    $region45: #{mlp_forward.1} parent=5 // pred_check
      _
    $region46: #{mlp_forward.1} parent=5 // pred_check_branch
      %242 = sbr.rel (%p239) target = $region48
    $region47: #{mlp_forward.1} parent=5 // pred_region
      %s243 = ssub.s32 %s13, 1
      %s244 = smul.u32 128, %s18
      %p245 = scmp.lt.s32.totalorder %s244, 255
      %s246 = scalar_select %p245, %s244, 255
      %s247 = smul.addr %s246, 8
      %s248 = scalar_lea.vmem %s0, %s247
      %p249 = pneg %p39
      %p250 = pneg %p36
      %p251 = pneg %p60
      %p252 = pneg %p57
      %p253 = pneg %p81
      %p254 = pneg %p78
      %p255 = pneg %p102
      %p256 = pneg %p99
      %p257 = pneg %p123
      %p258 = pneg %p120
      %p259 = pneg %p144
      %p260 = pneg %p141
      %p261 = pneg %p165
      %p262 = pneg %p162
      %p263 = pneg %p191
      %p264 = pneg %p188
      %s265 = smul.u32 128, %s18
      %p266 = scmp.lt.s32.totalorder %s265, 255
      %s267 = scalar_select %p266, %s265, 255
      %s268 = smul.addr %s267, 8
      %s269 = scalar_lea.vmem %s7, %s268
      %s270 = smul.u32 128, %s18
      %p271 = scmp.lt.s32.totalorder %s270, 255
      %s272 = scalar_select %p271, %s270, 255
      %s273 = smul.addr %s272, 8
      %s274 = scalar_lea.vmem %s0, %s273
      %s275 = smul.u32 128, %s18
      %s276 = smul.u32 128, %s18
      %p277 = scmp.lt.s32.totalorder %s276, 255
      %s278 = scalar_select %p277, %s276, 255
      %s279 = smul.addr %s278, 8
      %s280 = scalar_lea.vmem %s7, %s279
      %s281 = smul.u32 128, %s18
      %v283 = vld [vmem:[%s274] sm:$0xff]
      %v284 = vld [vmem:[%s274 + $0x8] sm:$0xff]
      %v285 = vld [vmem:[%s274 + $0x10] sm:$0xff]
      %v286 = vld [vmem:[%s274 + $0x18] sm:$0xff]
      %v287 = vld [vmem:[%s274 + $0x20] sm:$0xff]
      %v288 = vld [vmem:[%s274 + $0x28] sm:$0xff]
      %v289 = vld [vmem:[%s274 + $0x30] sm:$0xff]
      %v290 = vld [vmem:[%s274 + $0x38] sm:$0xff]
      %v291 = vld [vmem:[%s274 + $0x40] sm:$0xff]
      %v292 = vld [vmem:[%s274 + $0x48] sm:$0xff]
      %v293 = vld [vmem:[%s274 + $0x50] sm:$0xff]
      %v294 = vld [vmem:[%s274 + $0x58] sm:$0xff]
      %v295 = vld [vmem:[%s274 + $0x60] sm:$0xff]
      %v296 = vld [vmem:[%s274 + $0x68] sm:$0xff]
      %v297 = vld [vmem:[%s274 + $0x70] sm:$0xff]
      %v298 = vld [vmem:[%s274 + $0x78] sm:$0xff]
      %v299 = vld [vmem:[%s274 + $0x80] sm:$0xff]
      %v300 = vld [vmem:[%s274 + $0x88] sm:$0xff]
      %v301 = vld [vmem:[%s274 + $0x90] sm:$0xff]
      %v302 = vld [vmem:[%s274 + $0x98] sm:$0xff]
      %v303 = vld [vmem:[%s274 + $0xa0] sm:$0xff]
      %v304 = vld [vmem:[%s274 + $0xa8] sm:$0xff]
      %v305 = vld [vmem:[%s274 + $0xb0] sm:$0xff]
      %v306 = vld [vmem:[%s274 + $0xb8] sm:$0xff]
      %v307 = vld [vmem:[%s274 + $0xc0] sm:$0xff]
      %v308 = vld [vmem:[%s274 + $0xc8] sm:$0xff]
      %v309 = vld [vmem:[%s274 + $0xd0] sm:$0xff]
      %v310 = vld [vmem:[%s274 + $0xd8] sm:$0xff]
      %v311 = vld [vmem:[%s274 + $0xe0] sm:$0xff]
      %v312 = vld [vmem:[%s274 + $0xe8] sm:$0xff]
      %v313 = vld [vmem:[%s274 + $0xf0] sm:$0xff]
      %v314 = vld [vmem:[%s274 + $0xf8] sm:$0xff]
      %v315 = vld [vmem:[%s274 + $0x100] sm:$0xff]
      %v316 = vld [vmem:[%s274 + $0x108] sm:$0xff]
      %v317 = vld [vmem:[%s274 + $0x110] sm:$0xff]
      %v318 = vld [vmem:[%s274 + $0x118] sm:$0xff]
      %v319 = vld [vmem:[%s274 + $0x120] sm:$0xff]
      %v320 = vld [vmem:[%s274 + $0x128] sm:$0xff]
      %v321 = vld [vmem:[%s274 + $0x130] sm:$0xff]
      %v322 = vld [vmem:[%s274 + $0x138] sm:$0xff]
      %v323 = vld [vmem:[%s274 + $0x140] sm:$0xff]
      %v324 = vld [vmem:[%s274 + $0x148] sm:$0xff]
      %v325 = vld [vmem:[%s274 + $0x150] sm:$0xff]
      %v326 = vld [vmem:[%s274 + $0x158] sm:$0xff]
      %v327 = vld [vmem:[%s274 + $0x160] sm:$0xff]
      %v328 = vld [vmem:[%s274 + $0x168] sm:$0xff]
      %v329 = vld [vmem:[%s274 + $0x170] sm:$0xff]
      %v330 = vld [vmem:[%s274 + $0x178] sm:$0xff]
      %v331 = vld [vmem:[%s274 + $0x180] sm:$0xff]
      %v332 = vld [vmem:[%s274 + $0x188] sm:$0xff]
      %v333 = vld [vmem:[%s274 + $0x190] sm:$0xff]
      %v334 = vld [vmem:[%s274 + $0x198] sm:$0xff]
      %v335 = vld [vmem:[%s274 + $0x1a0] sm:$0xff]
      %v336 = vld [vmem:[%s274 + $0x1a8] sm:$0xff]
      %v337 = vld [vmem:[%s274 + $0x1b0] sm:$0xff]
      %v338 = vld [vmem:[%s274 + $0x1b8] sm:$0xff]
      %v339 = vld [vmem:[%s274 + $0x1c0] sm:$0xff]
      %v340 = vld [vmem:[%s274 + $0x1c8] sm:$0xff]
      %v341 = vld [vmem:[%s274 + $0x1d0] sm:$0xff]
      %v342 = vld [vmem:[%s274 + $0x1d8] sm:$0xff]
      %v343 = vld [vmem:[%s274 + $0x1e0] sm:$0xff]
      %v344 = vld [vmem:[%s274 + $0x1e8] sm:$0xff]
      %v345 = vld [vmem:[%s274 + $0x1f0] sm:$0xff]
      %v346 = vld [vmem:[%s274 + $0x1f8] sm:$0xff]
      %v347 = vld [vmem:[%s274 + $0x200] sm:$0xff]
      %v348 = vld [vmem:[%s274 + $0x208] sm:$0xff]
      %v349 = vld [vmem:[%s274 + $0x210] sm:$0xff]
      %v350 = vld [vmem:[%s274 + $0x218] sm:$0xff]
      %v351 = vld [vmem:[%s274 + $0x220] sm:$0xff]
      %v352 = vld [vmem:[%s274 + $0x228] sm:$0xff]
      %v353 = vld [vmem:[%s274 + $0x230] sm:$0xff]
      %v354 = vld [vmem:[%s274 + $0x238] sm:$0xff]
      %v355 = vld [vmem:[%s274 + $0x240] sm:$0xff]
      %v356 = vld [vmem:[%s274 + $0x248] sm:$0xff]
      %v357 = vld [vmem:[%s274 + $0x250] sm:$0xff]
      %v358 = vld [vmem:[%s274 + $0x258] sm:$0xff]
      %v359 = vld [vmem:[%s274 + $0x260] sm:$0xff]
      %v360 = vld [vmem:[%s274 + $0x268] sm:$0xff]
      %v361 = vld [vmem:[%s274 + $0x270] sm:$0xff]
      %v362 = vld [vmem:[%s274 + $0x278] sm:$0xff]
      %v363 = vld [vmem:[%s274 + $0x280] sm:$0xff]
      %v364 = vld [vmem:[%s274 + $0x288] sm:$0xff]
      %v365 = vld [vmem:[%s274 + $0x290] sm:$0xff]
      %v366 = vld [vmem:[%s274 + $0x298] sm:$0xff]
      %v367 = vld [vmem:[%s274 + $0x2a0] sm:$0xff]
      %v368 = vld [vmem:[%s274 + $0x2a8] sm:$0xff]
      %v369 = vld [vmem:[%s274 + $0x2b0] sm:$0xff]
      %v370 = vld [vmem:[%s274 + $0x2b8] sm:$0xff]
      %v371 = vld [vmem:[%s274 + $0x2c0] sm:$0xff]
      %v372 = vld [vmem:[%s274 + $0x2c8] sm:$0xff]
      %v373 = vld [vmem:[%s274 + $0x2d0] sm:$0xff]
      %v374 = vld [vmem:[%s274 + $0x2d8] sm:$0xff]
      %v375 = vld [vmem:[%s274 + $0x2e0] sm:$0xff]
      %v376 = vld [vmem:[%s274 + $0x2e8] sm:$0xff]
      %v377 = vld [vmem:[%s274 + $0x2f0] sm:$0xff]
      %v378 = vld [vmem:[%s274 + $0x2f8] sm:$0xff]
      %v379 = vld [vmem:[%s274 + $0x300] sm:$0xff]
      %v380 = vld [vmem:[%s274 + $0x308] sm:$0xff]
      %v381 = vld [vmem:[%s274 + $0x310] sm:$0xff]
      %v382 = vld [vmem:[%s274 + $0x318] sm:$0xff]
      %v383 = vld [vmem:[%s274 + $0x320] sm:$0xff]
      %v384 = vld [vmem:[%s274 + $0x328] sm:$0xff]
      %v385 = vld [vmem:[%s274 + $0x330] sm:$0xff]
      %v386 = vld [vmem:[%s274 + $0x338] sm:$0xff]
      %v387 = vld [vmem:[%s274 + $0x340] sm:$0xff]
      %v388 = vld [vmem:[%s274 + $0x348] sm:$0xff]
      %v389 = vld [vmem:[%s274 + $0x350] sm:$0xff]
      %v390 = vld [vmem:[%s274 + $0x358] sm:$0xff]
      %v391 = vld [vmem:[%s274 + $0x360] sm:$0xff]
      %v392 = vld [vmem:[%s274 + $0x368] sm:$0xff]
      %v393 = vld [vmem:[%s274 + $0x370] sm:$0xff]
      %v394 = vld [vmem:[%s274 + $0x378] sm:$0xff]
      %v395 = vld [vmem:[%s274 + $0x380] sm:$0xff]
      %v396 = vld [vmem:[%s274 + $0x388] sm:$0xff]
      %v397 = vld [vmem:[%s274 + $0x390] sm:$0xff]
      %v398 = vld [vmem:[%s274 + $0x398] sm:$0xff]
      %v399 = vld [vmem:[%s274 + $0x3a0] sm:$0xff]
      %v400 = vld [vmem:[%s274 + $0x3a8] sm:$0xff]
      %v401 = vld [vmem:[%s274 + $0x3b0] sm:$0xff]
      %v402 = vld [vmem:[%s274 + $0x3b8] sm:$0xff]
      %v403 = vld [vmem:[%s274 + $0x3c0] sm:$0xff]
      %v404 = vld [vmem:[%s274 + $0x3c8] sm:$0xff]
      %v405 = vld [vmem:[%s274 + $0x3d0] sm:$0xff]
      %v406 = vld [vmem:[%s274 + $0x3d8] sm:$0xff]
      %v407 = vld [vmem:[%s274 + $0x3e0] sm:$0xff]
      %v408 = vld [vmem:[%s274 + $0x3e8] sm:$0xff]
      %v409 = vld [vmem:[%s274 + $0x3f0] sm:$0xff]
      %v410 = vld [vmem:[%s274 + $0x3f8] sm:$0xff]
      %v411 = vpack.c.bf16 %v284, %v283
      %v412 = vpack.c.bf16 %v286, %v285
      %v413 = vpack.c.bf16 %v288, %v287
      %v414 = vpack.c.bf16 %v290, %v289
      %v415 = vpack.c.bf16 %v292, %v291
      %v416 = vpack.c.bf16 %v294, %v293
      %v417 = vpack.c.bf16 %v296, %v295
      %v418 = vpack.c.bf16 %v298, %v297
      %v419 = vpack.c.bf16 %v300, %v299
      %v420 = vpack.c.bf16 %v302, %v301
      %v421 = vpack.c.bf16 %v304, %v303
      %v422 = vpack.c.bf16 %v306, %v305
      %v423 = vpack.c.bf16 %v308, %v307
      %v424 = vpack.c.bf16 %v310, %v309
      %v425 = vpack.c.bf16 %v312, %v311
      %v426 = vpack.c.bf16 %v314, %v313
      %v427 = vpack.c.bf16 %v316, %v315
      %v428 = vpack.c.bf16 %v318, %v317
      %v429 = vpack.c.bf16 %v320, %v319
      %v430 = vpack.c.bf16 %v322, %v321
      %v431 = vpack.c.bf16 %v324, %v323
      %v432 = vpack.c.bf16 %v326, %v325
      %v433 = vpack.c.bf16 %v328, %v327
      %v434 = vpack.c.bf16 %v330, %v329
      %v435 = vpack.c.bf16 %v332, %v331
      %v436 = vpack.c.bf16 %v334, %v333
      %v437 = vpack.c.bf16 %v336, %v335
      %v438 = vpack.c.bf16 %v338, %v337
      %v439 = vpack.c.bf16 %v340, %v339
      %v440 = vpack.c.bf16 %v342, %v341
      %v441 = vpack.c.bf16 %v344, %v343
      %v442 = vpack.c.bf16 %v346, %v345
      %v443 = vpack.c.bf16 %v348, %v347
      %v444 = vpack.c.bf16 %v350, %v349
      %v445 = vpack.c.bf16 %v352, %v351
      %v446 = vpack.c.bf16 %v354, %v353
      %v447 = vpack.c.bf16 %v356, %v355
      %v448 = vpack.c.bf16 %v358, %v357
      %v449 = vpack.c.bf16 %v360, %v359
      %v450 = vpack.c.bf16 %v362, %v361
      %v451 = vpack.c.bf16 %v364, %v363
      %v452 = vpack.c.bf16 %v366, %v365
      %v453 = vpack.c.bf16 %v368, %v367
      %v454 = vpack.c.bf16 %v370, %v369
      %v455 = vpack.c.bf16 %v372, %v371
      %v456 = vpack.c.bf16 %v374, %v373
      %v457 = vpack.c.bf16 %v376, %v375
      %v458 = vpack.c.bf16 %v378, %v377
      %v459 = vpack.c.bf16 %v380, %v379
      %v460 = vpack.c.bf16 %v382, %v381
      %v461 = vpack.c.bf16 %v384, %v383
      %v462 = vpack.c.bf16 %v386, %v385
      %v463 = vpack.c.bf16 %v388, %v387
      %v464 = vpack.c.bf16 %v390, %v389
      %v465 = vpack.c.bf16 %v392, %v391
      %v466 = vpack.c.bf16 %v394, %v393
      %v467 = vpack.c.bf16 %v396, %v395
      %v468 = vpack.c.bf16 %v398, %v397
      %v469 = vpack.c.bf16 %v400, %v399
      %v470 = vpack.c.bf16 %v402, %v401
      %v471 = vpack.c.bf16 %v404, %v403
      %v472 = vpack.c.bf16 %v406, %v405
      %v473 = vpack.c.bf16 %v408, %v407
      %v474 = vpack.c.bf16 %v410, %v409
      %v475 = vld [vmem:[%s1] sm:$0xf]
      %v476 = vld [vmem:[%s1 + $0x4] sm:$0xf]
      %v477 = vld [vmem:[%s1 + $0x8] sm:$0xf]
      %v478 = vld [vmem:[%s1 + $0xc] sm:$0xf]
      %v479 = vld [vmem:[%s2] sm:$0x1]
      %v481 = vlaneseq
      %v482 = vshrl.u32 %v481, 7
      %v483 = vsub.s32 0, %v482
      %v484 = vrot.slane %v479, %v483
      %v490 = vunpack.c.l.b16 %v475
      %v491 = vunpack.c.l.b16 %v476
      %v492 = vunpack.c.l.b16 %v477
      %v493 = vunpack.c.l.b16 %v478
      %v494 = vpack.c.b16 %v491, %v490
      %v495 = vpack.c.b16 %v493, %v492
      %vm498 = vcmask 261120
      %v500 = vsel %vm498, %v411, 0
      %v503 = vsel %vm498, %v412, 0
      %v506 = vsel %vm498, %v413, 0
      %v509 = vsel %vm498, %v414, 0
      %v512 = vsel %vm498, %v415, 0
      %v515 = vsel %vm498, %v416, 0
      %v518 = vsel %vm498, %v417, 0
      %v521 = vsel %vm498, %v418, 0
      %v524 = vsel %vm498, %v419, 0
      %v527 = vsel %vm498, %v420, 0
      %v530 = vsel %vm498, %v421, 0
      %v533 = vsel %vm498, %v422, 0
      %v536 = vsel %vm498, %v423, 0
      %v539 = vsel %vm498, %v424, 0
      %v542 = vsel %vm498, %v425, 0
      %v545 = vsel %vm498, %v426, 0
      %v548 = vsel %vm498, %v427, 0
      %v551 = vsel %vm498, %v428, 0
      %v554 = vsel %vm498, %v429, 0
      %v557 = vsel %vm498, %v430, 0
      %v560 = vsel %vm498, %v431, 0
      %v563 = vsel %vm498, %v432, 0
      %v566 = vsel %vm498, %v433, 0
      %v569 = vsel %vm498, %v434, 0
      %v572 = vsel %vm498, %v435, 0
      %v575 = vsel %vm498, %v436, 0
      %v578 = vsel %vm498, %v437, 0
      %v581 = vsel %vm498, %v438, 0
      %v584 = vsel %vm498, %v439, 0
      %v587 = vsel %vm498, %v440, 0
      %v590 = vsel %vm498, %v441, 0
      %v593 = vsel %vm498, %v442, 0
      %v596 = vsel %vm498, %v443, 0
      %v599 = vsel %vm498, %v444, 0
      %v602 = vsel %vm498, %v445, 0
      %v605 = vsel %vm498, %v446, 0
      %v608 = vsel %vm498, %v447, 0
      %v611 = vsel %vm498, %v448, 0
      %v614 = vsel %vm498, %v449, 0
      %v617 = vsel %vm498, %v450, 0
      %v620 = vsel %vm498, %v451, 0
      %v623 = vsel %vm498, %v452, 0
      %v626 = vsel %vm498, %v453, 0
      %v629 = vsel %vm498, %v454, 0
      %v632 = vsel %vm498, %v455, 0
      %v635 = vsel %vm498, %v456, 0
      %v638 = vsel %vm498, %v457, 0
      %v641 = vsel %vm498, %v458, 0
      %v644 = vsel %vm498, %v459, 0
      %v647 = vsel %vm498, %v460, 0
      %v650 = vsel %vm498, %v461, 0
      %v653 = vsel %vm498, %v462, 0
      %v656 = vsel %vm498, %v463, 0
      %v659 = vsel %vm498, %v464, 0
      %v662 = vsel %vm498, %v465, 0
      %v665 = vsel %vm498, %v466, 0
      %v668 = vsel %vm498, %v467, 0
      %v671 = vsel %vm498, %v468, 0
      %v674 = vsel %vm498, %v469, 0
      %v677 = vsel %vm498, %v470, 0
      %v680 = vsel %vm498, %v471, 0
      %v683 = vsel %vm498, %v472, 0
      %v686 = vsel %vm498, %v473, 0
      %v689 = vsel %vm498, %v474, 0
      %691 = vmatprep.subr.bf16.mxu0 0
      %692 = vmatpush1.bf16.msra.mxu0 %v494
      %693 = vmatprep.subr.bf16.mxu0 0
      %694 = vmatpush1.bf16.msra.mxu0 %v495
      %695 = vmatprep.subr.bf16.mxu0 0
      %696 = vmatpush1.bf16.msra.mxu0 0
      %697 = vmatprep.subr.bf16.mxu0 0
      %698 = vmatpush1.bf16.msra.mxu0 0
      %699 = vmatprep.subr.bf16.mxu0 0
      %700 = vmatpush1.bf16.msra.mxu0 0
      %701 = vmatprep.subr.bf16.mxu0 0
      %702 = vmatpush1.bf16.msra.mxu0 0
      %703 = vmatprep.subr.bf16.mxu0 0
      %704 = vmatpush1.bf16.msra.mxu0 0
      %705 = vmatprep.subr.bf16.mxu0 0
      %706 = vmatpush1.bf16.msra.mxu0 0
      %707 = vmatprep.subr.bf16.mxu0 0
      %708 = vmatpush1.bf16.msra.mxu0 0
      %709 = vmatprep.subr.bf16.mxu0 0
      %710 = vmatpush1.bf16.msra.mxu0 0
      %711 = vmatprep.subr.bf16.mxu0 0
      %712 = vmatpush1.bf16.msra.mxu0 0
      %713 = vmatprep.subr.bf16.mxu0 0
      %714 = vmatpush1.bf16.msra.mxu0 0
      %715 = vmatprep.subr.bf16.mxu0 0
      %716 = vmatpush1.bf16.msra.mxu0 0
      %717 = vmatprep.subr.bf16.mxu0 0
      %718 = vmatpush1.bf16.msra.mxu0 0
      %719 = vmatprep.subr.bf16.mxu0 0
      %720 = vmatpush1.bf16.msra.mxu0 0
      %721 = vmatprep.subr.bf16.mxu0 0
      %722 = vmatpush1.bf16.msra.mxu0 0
      %723 = vmatprep.mubr.bf16.mxu0 0
      %724 = vmatmul.mubr.bf16.gmra.mrb[0].mxu0 %v500
      %v725 = vpop.f32.mrb[0].mxu0
      %v726 = vadd.f32 %v484, %v725
      %v727 = vpop.f32.mrb[0].mxu0
      %v728 = vpop.f32.mrb[0].mxu0
      %v729 = vadd.f32 %v484, %v728
      %v730 = vpop.f32.mrb[0].mxu0
      %731 = vmatprep.mubr.bf16.mxu0 0
      %732 = vmatmul.mubr.bf16.gmra.mrb[0].mxu0 %v503
      %v733 = vpop.f32.mrb[0].mxu0
      %v734 = vadd.f32 %v484, %v733
      %v735 = vpop.f32.mrb[0].mxu0
      %v736 = vpop.f32.mrb[0].mxu0
      %v737 = vadd.f32 %v484, %v736
      %v738 = vpop.f32.mrb[0].mxu0
      %739 = vmatprep.mubr.bf16.mxu0 0
      %740 = vmatmul.mubr.bf16.gmra.mrb[0].mxu0 %v506
      %v741 = vpop.f32.mrb[0].mxu0
      %v742 = vadd.f32 %v484, %v741
      %v743 = vpop.f32.mrb[0].mxu0
      %v744 = vpop.f32.mrb[0].mxu0
      %v745 = vadd.f32 %v484, %v744
      %v746 = vpop.f32.mrb[0].mxu0
      %747 = vmatprep.mubr.bf16.mxu0 0
      %748 = vmatmul.mubr.bf16.gmra.mrb[0].mxu0 %v509
      %v749 = vpop.f32.mrb[0].mxu0
      %v750 = vadd.f32 %v484, %v749
      %v751 = vpop.f32.mrb[0].mxu0
      %v752 = vpop.f32.mrb[0].mxu0
      %v753 = vadd.f32 %v484, %v752
      %v754 = vpop.f32.mrb[0].mxu0
      %755 = vmatprep.mubr.bf16.mxu0 0
      %756 = vmatmul.mubr.bf16.gmra.mrb[0].mxu0 %v512
      %v757 = vpop.f32.mrb[0].mxu0
      %v758 = vadd.f32 %v484, %v757
      %v759 = vpop.f32.mrb[0].mxu0
      %v760 = vpop.f32.mrb[0].mxu0
      %v761 = vadd.f32 %v484, %v760
      %v762 = vpop.f32.mrb[0].mxu0
      %763 = vmatprep.mubr.bf16.mxu0 0
      %764 = vmatmul.mubr.bf16.gmra.mrb[0].mxu0 %v515
      %v765 = vpop.f32.mrb[0].mxu0
      %v766 = vadd.f32 %v484, %v765
      %v767 = vpop.f32.mrb[0].mxu0
      %v768 = vpop.f32.mrb[0].mxu0
      %v769 = vadd.f32 %v484, %v768
      %v770 = vpop.f32.mrb[0].mxu0
      %771 = vmatprep.mubr.bf16.mxu0 0
      %772 = vmatmul.mubr.bf16.gmra.mrb[0].mxu0 %v518
      %v773 = vpop.f32.mrb[0].mxu0
      %v774 = vadd.f32 %v484, %v773
      %v775 = vpop.f32.mrb[0].mxu0
      %v776 = vpop.f32.mrb[0].mxu0
      %v777 = vadd.f32 %v484, %v776
      %v778 = vpop.f32.mrb[0].mxu0
      %779 = vmatprep.mubr.bf16.mxu0 0
      %780 = vmatmul.mubr.bf16.gmra.mrb[0].mxu0 %v521
      %v781 = vpop.f32.mrb[0].mxu0
      %v782 = vadd.f32 %v484, %v781
      %v783 = vpop.f32.mrb[0].mxu0
      %v784 = vpop.f32.mrb[0].mxu0
      %v785 = vadd.f32 %v484, %v784
      %v786 = vpop.f32.mrb[0].mxu0
      %787 = vmatprep.mubr.bf16.mxu0 0
      %788 = vmatmul.mubr.bf16.gmra.mrb[0].mxu0 %v524
      %v789 = vpop.f32.mrb[0].mxu0
      %v790 = vadd.f32 %v484, %v789
      %v791 = vpop.f32.mrb[0].mxu0
      %v792 = vpop.f32.mrb[0].mxu0
      %v793 = vadd.f32 %v484, %v792
      %v794 = vpop.f32.mrb[0].mxu0
      %795 = vmatprep.mubr.bf16.mxu0 0
      %796 = vmatmul.mubr.bf16.gmra.mrb[0].mxu0 %v527
      %v797 = vpop.f32.mrb[0].mxu0
      %v798 = vadd.f32 %v484, %v797
      %v799 = vpop.f32.mrb[0].mxu0
      %v800 = vpop.f32.mrb[0].mxu0
      %v801 = vadd.f32 %v484, %v800
      %v802 = vpop.f32.mrb[0].mxu0
      %803 = vmatprep.mubr.bf16.mxu0 0
      %804 = vmatmul.mubr.bf16.gmra.mrb[0].mxu0 %v530
      %v805 = vpop.f32.mrb[0].mxu0
      %v806 = vadd.f32 %v484, %v805
      %v807 = vpop.f32.mrb[0].mxu0
      %v808 = vpop.f32.mrb[0].mxu0
      %v809 = vadd.f32 %v484, %v808
      %v810 = vpop.f32.mrb[0].mxu0
      %811 = vmatprep.mubr.bf16.mxu0 0
      %812 = vmatmul.mubr.bf16.gmra.mrb[0].mxu0 %v533
      %v813 = vpop.f32.mrb[0].mxu0
      %v814 = vadd.f32 %v484, %v813
      %v815 = vpop.f32.mrb[0].mxu0
      %v816 = vpop.f32.mrb[0].mxu0
      %v817 = vadd.f32 %v484, %v816
      %v818 = vpop.f32.mrb[0].mxu0
      %819 = vmatprep.mubr.bf16.mxu0 0
      %820 = vmatmul.mubr.bf16.gmra.mrb[0].mxu0 %v536
      %v821 = vpop.f32.mrb[0].mxu0
      %v822 = vadd.f32 %v484, %v821
      %v823 = vpop.f32.mrb[0].mxu0
      %v824 = vpop.f32.mrb[0].mxu0
      %v825 = vadd.f32 %v484, %v824
      %v826 = vpop.f32.mrb[0].mxu0
      %827 = vmatprep.mubr.bf16.mxu0 0
      %828 = vmatmul.mubr.bf16.gmra.mrb[0].mxu0 %v539
      %v829 = vpop.f32.mrb[0].mxu0
      %v830 = vadd.f32 %v484, %v829
      %v831 = vpop.f32.mrb[0].mxu0
      %v832 = vpop.f32.mrb[0].mxu0
      %v833 = vadd.f32 %v484, %v832
      %v834 = vpop.f32.mrb[0].mxu0
      %835 = vmatprep.mubr.bf16.mxu0 0
      %836 = vmatmul.mubr.bf16.gmra.mrb[0].mxu0 %v542
      %v837 = vpop.f32.mrb[0].mxu0
      %v838 = vadd.f32 %v484, %v837
      %v839 = vpop.f32.mrb[0].mxu0
      %v840 = vpop.f32.mrb[0].mxu0
      %v841 = vadd.f32 %v484, %v840
      %v842 = vpop.f32.mrb[0].mxu0
      %843 = vmatprep.mubr.bf16.mxu0 0
      %844 = vmatmul.mubr.bf16.gmra.mrb[0].mxu0 %v545
      %v845 = vpop.f32.mrb[0].mxu0
      %v846 = vadd.f32 %v484, %v845
      %v847 = vpop.f32.mrb[0].mxu0
      %v848 = vpop.f32.mrb[0].mxu0
      %v849 = vadd.f32 %v484, %v848
      %v850 = vpop.f32.mrb[0].mxu0
      %851 = vmatprep.mubr.bf16.mxu0 0
      %852 = vmatmul.mubr.bf16.gmra.mrb[0].mxu0 %v548
      %v853 = vpop.f32.mrb[0].mxu0
      %v854 = vadd.f32 %v484, %v853
      %v855 = vpop.f32.mrb[0].mxu0
      %v856 = vpop.f32.mrb[0].mxu0
      %v857 = vadd.f32 %v484, %v856
      %v858 = vpop.f32.mrb[0].mxu0
      %859 = vmatprep.mubr.bf16.mxu0 0
      %860 = vmatmul.mubr.bf16.gmra.mrb[0].mxu0 %v551
      %v861 = vpop.f32.mrb[0].mxu0
      %v862 = vadd.f32 %v484, %v861
      %v863 = vpop.f32.mrb[0].mxu0
      %v864 = vpop.f32.mrb[0].mxu0
      %v865 = vadd.f32 %v484, %v864
      %v866 = vpop.f32.mrb[0].mxu0
      %867 = vmatprep.mubr.bf16.mxu0 0
      %868 = vmatmul.mubr.bf16.gmra.mrb[0].mxu0 %v554
      %v869 = vpop.f32.mrb[0].mxu0
      %v870 = vadd.f32 %v484, %v869
      %v871 = vpop.f32.mrb[0].mxu0
      %v872 = vpop.f32.mrb[0].mxu0
      %v873 = vadd.f32 %v484, %v872
      %v874 = vpop.f32.mrb[0].mxu0
      %875 = vmatprep.mubr.bf16.mxu0 0
      %876 = vmatmul.mubr.bf16.gmra.mrb[0].mxu0 %v557
      %v877 = vpop.f32.mrb[0].mxu0
      %v878 = vadd.f32 %v484, %v877
      %v879 = vpop.f32.mrb[0].mxu0
      %v880 = vpop.f32.mrb[0].mxu0
      %v881 = vadd.f32 %v484, %v880
      %v882 = vpop.f32.mrb[0].mxu0
      %883 = vmatprep.mubr.bf16.mxu0 0
      %884 = vmatmul.mubr.bf16.gmra.mrb[0].mxu0 %v560
      %v885 = vpop.f32.mrb[0].mxu0
      %v886 = vadd.f32 %v484, %v885
      %v887 = vpop.f32.mrb[0].mxu0
      %v888 = vpop.f32.mrb[0].mxu0
      %v889 = vadd.f32 %v484, %v888
      %v890 = vpop.f32.mrb[0].mxu0
      %891 = vmatprep.mubr.bf16.mxu0 0
      %892 = vmatmul.mubr.bf16.gmra.mrb[0].mxu0 %v563
      %v893 = vpop.f32.mrb[0].mxu0
      %v894 = vadd.f32 %v484, %v893
      %v895 = vpop.f32.mrb[0].mxu0
      %v896 = vpop.f32.mrb[0].mxu0
      %v897 = vadd.f32 %v484, %v896
      %v898 = vpop.f32.mrb[0].mxu0
      %899 = vmatprep.mubr.bf16.mxu0 0
      %900 = vmatmul.mubr.bf16.gmra.mrb[0].mxu0 %v566
      %v901 = vpop.f32.mrb[0].mxu0
      %v902 = vadd.f32 %v484, %v901
      %v903 = vpop.f32.mrb[0].mxu0
      %v904 = vpop.f32.mrb[0].mxu0
      %v905 = vadd.f32 %v484, %v904
      %v906 = vpop.f32.mrb[0].mxu0
      %907 = vmatprep.mubr.bf16.mxu0 0
      %908 = vmatmul.mubr.bf16.gmra.mrb[0].mxu0 %v569
      %v909 = vpop.f32.mrb[0].mxu0
      %v910 = vadd.f32 %v484, %v909
      %v911 = vpop.f32.mrb[0].mxu0
      %v912 = vpop.f32.mrb[0].mxu0
      %v913 = vadd.f32 %v484, %v912
      %v914 = vpop.f32.mrb[0].mxu0
      %915 = vmatprep.mubr.bf16.mxu0 0
      %916 = vmatmul.mubr.bf16.gmra.mrb[0].mxu0 %v572
      %v917 = vpop.f32.mrb[0].mxu0
      %v918 = vadd.f32 %v484, %v917
      %v919 = vpop.f32.mrb[0].mxu0
      %v920 = vpop.f32.mrb[0].mxu0
      %v921 = vadd.f32 %v484, %v920
      %v922 = vpop.f32.mrb[0].mxu0
      %923 = vmatprep.mubr.bf16.mxu0 0
      %924 = vmatmul.mubr.bf16.gmra.mrb[0].mxu0 %v575
      %v925 = vpop.f32.mrb[0].mxu0
      %v926 = vadd.f32 %v484, %v925
      %v927 = vpop.f32.mrb[0].mxu0
      %v928 = vpop.f32.mrb[0].mxu0
      %v929 = vadd.f32 %v484, %v928
      %v930 = vpop.f32.mrb[0].mxu0
      %931 = vmatprep.mubr.bf16.mxu0 0
      %932 = vmatmul.mubr.bf16.gmra.mrb[0].mxu0 %v578
      %v933 = vpop.f32.mrb[0].mxu0
      %v934 = vadd.f32 %v484, %v933
      %v935 = vpop.f32.mrb[0].mxu0
      %v936 = vpop.f32.mrb[0].mxu0
      %v937 = vadd.f32 %v484, %v936
      %v938 = vpop.f32.mrb[0].mxu0
      %939 = vmatprep.mubr.bf16.mxu0 0
      %940 = vmatmul.mubr.bf16.gmra.mrb[0].mxu0 %v581
      %v941 = vpop.f32.mrb[0].mxu0
      %v942 = vadd.f32 %v484, %v941
      %v943 = vpop.f32.mrb[0].mxu0
      %v944 = vpop.f32.mrb[0].mxu0
      %v945 = vadd.f32 %v484, %v944
      %v946 = vpop.f32.mrb[0].mxu0
      %947 = vmatprep.mubr.bf16.mxu0 0
      %948 = vmatmul.mubr.bf16.gmra.mrb[0].mxu0 %v584
      %v949 = vpop.f32.mrb[0].mxu0
      %v950 = vadd.f32 %v484, %v949
      %v951 = vpop.f32.mrb[0].mxu0
      %v952 = vpop.f32.mrb[0].mxu0
      %v953 = vadd.f32 %v484, %v952
      %v954 = vpop.f32.mrb[0].mxu0
      %955 = vmatprep.mubr.bf16.mxu0 0
      %956 = vmatmul.mubr.bf16.gmra.mrb[0].mxu0 %v587
      %v957 = vpop.f32.mrb[0].mxu0
      %v958 = vadd.f32 %v484, %v957
      %v959 = vpop.f32.mrb[0].mxu0
      %v960 = vpop.f32.mrb[0].mxu0
      %v961 = vadd.f32 %v484, %v960
      %v962 = vpop.f32.mrb[0].mxu0
      %963 = vmatprep.mubr.bf16.mxu0 0
      %964 = vmatmul.mubr.bf16.gmra.mrb[0].mxu0 %v590
      %v965 = vpop.f32.mrb[0].mxu0
      %v966 = vadd.f32 %v484, %v965
      %v967 = vpop.f32.mrb[0].mxu0
      %v968 = vpop.f32.mrb[0].mxu0
      %v969 = vadd.f32 %v484, %v968
      %v970 = vpop.f32.mrb[0].mxu0
      %971 = vmatprep.mubr.bf16.mxu0 0
      %972 = vmatmul.mubr.bf16.gmra.mrb[0].mxu0 %v593
      %v973 = vpop.f32.mrb[0].mxu0
      %v974 = vadd.f32 %v484, %v973
      %v975 = vpop.f32.mrb[0].mxu0
      %v976 = vpop.f32.mrb[0].mxu0
      %v977 = vadd.f32 %v484, %v976
      %v978 = vpop.f32.mrb[0].mxu0
      %979 = vmatprep.mubr.bf16.mxu0 0
      %980 = vmatmul.mubr.bf16.gmra.mrb[0].mxu0 %v596
      %v981 = vpop.f32.mrb[0].mxu0
      %v982 = vadd.f32 %v484, %v981
      %v983 = vpop.f32.mrb[0].mxu0
      %v984 = vpop.f32.mrb[0].mxu0
      %v985 = vadd.f32 %v484, %v984
      %v986 = vpop.f32.mrb[0].mxu0
      %987 = vmatprep.mubr.bf16.mxu0 0
      %988 = vmatmul.mubr.bf16.gmra.mrb[0].mxu0 %v599
      %v989 = vpop.f32.mrb[0].mxu0
      %v990 = vadd.f32 %v484, %v989
      %v991 = vpop.f32.mrb[0].mxu0
      %v992 = vpop.f32.mrb[0].mxu0
      %v993 = vadd.f32 %v484, %v992
      %v994 = vpop.f32.mrb[0].mxu0
      %995 = vmatprep.mubr.bf16.mxu0 0
      %996 = vmatmul.mubr.bf16.gmra.mrb[0].mxu0 %v602
      %v997 = vpop.f32.mrb[0].mxu0
      %v998 = vadd.f32 %v484, %v997
      %v999 = vpop.f32.mrb[0].mxu0
      %v1000 = vpop.f32.mrb[0].mxu0
      %v1001 = vadd.f32 %v484, %v1000
      %v1002 = vpop.f32.mrb[0].mxu0
      %1003 = vmatprep.mubr.bf16.mxu0 0
      %1004 = vmatmul.mubr.bf16.gmra.mrb[0].mxu0 %v605
      %v1005 = vpop.f32.mrb[0].mxu0
      %v1006 = vadd.f32 %v484, %v1005
      %v1007 = vpop.f32.mrb[0].mxu0
      %v1008 = vpop.f32.mrb[0].mxu0
      %v1009 = vadd.f32 %v484, %v1008
      %v1010 = vpop.f32.mrb[0].mxu0
      %1011 = vmatprep.mubr.bf16.mxu0 0
      %1012 = vmatmul.mubr.bf16.gmra.mrb[0].mxu0 %v608
      %v1013 = vpop.f32.mrb[0].mxu0
      %v1014 = vadd.f32 %v484, %v1013
      %v1015 = vpop.f32.mrb[0].mxu0
      %v1016 = vpop.f32.mrb[0].mxu0
      %v1017 = vadd.f32 %v484, %v1016
      %v1018 = vpop.f32.mrb[0].mxu0
      %1019 = vmatprep.mubr.bf16.mxu0 0
      %1020 = vmatmul.mubr.bf16.gmra.mrb[0].mxu0 %v611
      %v1021 = vpop.f32.mrb[0].mxu0
      %v1022 = vadd.f32 %v484, %v1021
      %v1023 = vpop.f32.mrb[0].mxu0
      %v1024 = vpop.f32.mrb[0].mxu0
      %v1025 = vadd.f32 %v484, %v1024
      %v1026 = vpop.f32.mrb[0].mxu0
      %1027 = vmatprep.mubr.bf16.mxu0 0
      %1028 = vmatmul.mubr.bf16.gmra.mrb[0].mxu0 %v614
      %v1029 = vpop.f32.mrb[0].mxu0
      %v1030 = vadd.f32 %v484, %v1029
      %v1031 = vpop.f32.mrb[0].mxu0
      %v1032 = vpop.f32.mrb[0].mxu0
      %v1033 = vadd.f32 %v484, %v1032
      %v1034 = vpop.f32.mrb[0].mxu0
      %1035 = vmatprep.mubr.bf16.mxu0 0
      %1036 = vmatmul.mubr.bf16.gmra.mrb[0].mxu0 %v617
      %v1037 = vpop.f32.mrb[0].mxu0
      %v1038 = vadd.f32 %v484, %v1037
      %v1039 = vpop.f32.mrb[0].mxu0
      %v1040 = vpop.f32.mrb[0].mxu0
      %v1041 = vadd.f32 %v484, %v1040
      %v1042 = vpop.f32.mrb[0].mxu0
      %1043 = vmatprep.mubr.bf16.mxu0 0
      %1044 = vmatmul.mubr.bf16.gmra.mrb[0].mxu0 %v620
      %v1045 = vpop.f32.mrb[0].mxu0
      %v1046 = vadd.f32 %v484, %v1045
      %v1047 = vpop.f32.mrb[0].mxu0
      %v1048 = vpop.f32.mrb[0].mxu0
      %v1049 = vadd.f32 %v484, %v1048
      %v1050 = vpop.f32.mrb[0].mxu0
      %1051 = vmatprep.mubr.bf16.mxu0 0
      %1052 = vmatmul.mubr.bf16.gmra.mrb[0].mxu0 %v623
      %v1053 = vpop.f32.mrb[0].mxu0
      %v1054 = vadd.f32 %v484, %v1053
      %v1055 = vpop.f32.mrb[0].mxu0
      %v1056 = vpop.f32.mrb[0].mxu0
      %v1057 = vadd.f32 %v484, %v1056
      %v1058 = vpop.f32.mrb[0].mxu0
      %1059 = vmatprep.mubr.bf16.mxu0 0
      %1060 = vmatmul.mubr.bf16.gmra.mrb[0].mxu0 %v626
      %v1061 = vpop.f32.mrb[0].mxu0
      %v1062 = vadd.f32 %v484, %v1061
      %v1063 = vpop.f32.mrb[0].mxu0
      %v1064 = vpop.f32.mrb[0].mxu0
      %v1065 = vadd.f32 %v484, %v1064
      %v1066 = vpop.f32.mrb[0].mxu0
      %1067 = vmatprep.mubr.bf16.mxu0 0
      %1068 = vmatmul.mubr.bf16.gmra.mrb[0].mxu0 %v629
      %v1069 = vpop.f32.mrb[0].mxu0
      %v1070 = vadd.f32 %v484, %v1069
      %v1071 = vpop.f32.mrb[0].mxu0
      %v1072 = vpop.f32.mrb[0].mxu0
      %v1073 = vadd.f32 %v484, %v1072
      %v1074 = vpop.f32.mrb[0].mxu0
      %1075 = vmatprep.mubr.bf16.mxu0 0
      %1076 = vmatmul.mubr.bf16.gmra.mrb[0].mxu0 %v632
      %v1077 = vpop.f32.mrb[0].mxu0
      %v1078 = vadd.f32 %v484, %v1077
      %v1079 = vpop.f32.mrb[0].mxu0
      %v1080 = vpop.f32.mrb[0].mxu0
      %v1081 = vadd.f32 %v484, %v1080
      %v1082 = vpop.f32.mrb[0].mxu0
      %1083 = vmatprep.mubr.bf16.mxu0 0
      %1084 = vmatmul.mubr.bf16.gmra.mrb[0].mxu0 %v635
      %v1085 = vpop.f32.mrb[0].mxu0
      %v1086 = vadd.f32 %v484, %v1085
      %v1087 = vpop.f32.mrb[0].mxu0
      %v1088 = vpop.f32.mrb[0].mxu0
      %v1089 = vadd.f32 %v484, %v1088
      %v1090 = vpop.f32.mrb[0].mxu0
      %1091 = vmatprep.mubr.bf16.mxu0 0
      %1092 = vmatmul.mubr.bf16.gmra.mrb[0].mxu0 %v638
      %v1093 = vpop.f32.mrb[0].mxu0
      %v1094 = vadd.f32 %v484, %v1093
      %v1095 = vpop.f32.mrb[0].mxu0
      %v1096 = vpop.f32.mrb[0].mxu0
      %v1097 = vadd.f32 %v484, %v1096
      %v1098 = vpop.f32.mrb[0].mxu0
      %1099 = vmatprep.mubr.bf16.mxu0 0
      %1100 = vmatmul.mubr.bf16.gmra.mrb[0].mxu0 %v641
      %v1101 = vpop.f32.mrb[0].mxu0
      %v1102 = vadd.f32 %v484, %v1101
      %v1103 = vpop.f32.mrb[0].mxu0
      %v1104 = vpop.f32.mrb[0].mxu0
      %v1105 = vadd.f32 %v484, %v1104
      %v1106 = vpop.f32.mrb[0].mxu0
      %1107 = vmatprep.mubr.bf16.mxu0 0
      %1108 = vmatmul.mubr.bf16.gmra.mrb[0].mxu0 %v644
      %v1109 = vpop.f32.mrb[0].mxu0
      %v1110 = vadd.f32 %v484, %v1109
      %v1111 = vpop.f32.mrb[0].mxu0
      %v1112 = vpop.f32.mrb[0].mxu0
      %v1113 = vadd.f32 %v484, %v1112
      %v1114 = vpop.f32.mrb[0].mxu0
      %1115 = vmatprep.mubr.bf16.mxu0 0
      %1116 = vmatmul.mubr.bf16.gmra.mrb[0].mxu0 %v647
      %v1117 = vpop.f32.mrb[0].mxu0
      %v1118 = vadd.f32 %v484, %v1117
      %v1119 = vpop.f32.mrb[0].mxu0
      %v1120 = vpop.f32.mrb[0].mxu0
      %v1121 = vadd.f32 %v484, %v1120
      %v1122 = vpop.f32.mrb[0].mxu0
      %1123 = vmatprep.mubr.bf16.mxu0 0
      %1124 = vmatmul.mubr.bf16.gmra.mrb[0].mxu0 %v650
      %v1125 = vpop.f32.mrb[0].mxu0
      %v1126 = vadd.f32 %v484, %v1125
      %v1127 = vpop.f32.mrb[0].mxu0
      %v1128 = vpop.f32.mrb[0].mxu0
      %v1129 = vadd.f32 %v484, %v1128
      %v1130 = vpop.f32.mrb[0].mxu0
      %1131 = vmatprep.mubr.bf16.mxu0 0
      %1132 = vmatmul.mubr.bf16.gmra.mrb[0].mxu0 %v653
      %v1133 = vpop.f32.mrb[0].mxu0
      %v1134 = vadd.f32 %v484, %v1133
      %v1135 = vpop.f32.mrb[0].mxu0
      %v1136 = vpop.f32.mrb[0].mxu0
      %v1137 = vadd.f32 %v484, %v1136
      %v1138 = vpop.f32.mrb[0].mxu0
      %1139 = vmatprep.mubr.bf16.mxu0 0
      %1140 = vmatmul.mubr.bf16.gmra.mrb[0].mxu0 %v656
      %v1141 = vpop.f32.mrb[0].mxu0
      %v1142 = vadd.f32 %v484, %v1141
      %v1143 = vpop.f32.mrb[0].mxu0
      %v1144 = vpop.f32.mrb[0].mxu0
      %v1145 = vadd.f32 %v484, %v1144
      %v1146 = vpop.f32.mrb[0].mxu0
      %1147 = vmatprep.mubr.bf16.mxu0 0
      %1148 = vmatmul.mubr.bf16.gmra.mrb[0].mxu0 %v659
      %v1149 = vpop.f32.mrb[0].mxu0
      %v1150 = vadd.f32 %v484, %v1149
      %v1151 = vpop.f32.mrb[0].mxu0
      %v1152 = vpop.f32.mrb[0].mxu0
      %v1153 = vadd.f32 %v484, %v1152
      %v1154 = vpop.f32.mrb[0].mxu0
      %1155 = vmatprep.mubr.bf16.mxu0 0
      %1156 = vmatmul.mubr.bf16.gmra.mrb[0].mxu0 %v662
      %v1157 = vpop.f32.mrb[0].mxu0
      %v1158 = vadd.f32 %v484, %v1157
      %v1159 = vpop.f32.mrb[0].mxu0
      %v1160 = vpop.f32.mrb[0].mxu0
      %v1161 = vadd.f32 %v484, %v1160
      %v1162 = vpop.f32.mrb[0].mxu0
      %1163 = vmatprep.mubr.bf16.mxu0 0
      %1164 = vmatmul.mubr.bf16.gmra.mrb[0].mxu0 %v665
      %v1165 = vpop.f32.mrb[0].mxu0
      %v1166 = vadd.f32 %v484, %v1165
      %v1167 = vpop.f32.mrb[0].mxu0
      %v1168 = vpop.f32.mrb[0].mxu0
      %v1169 = vadd.f32 %v484, %v1168
      %v1170 = vpop.f32.mrb[0].mxu0
      %1171 = vmatprep.mubr.bf16.mxu0 0
      %1172 = vmatmul.mubr.bf16.gmra.mrb[0].mxu0 %v668
      %v1173 = vpop.f32.mrb[0].mxu0
      %v1174 = vadd.f32 %v484, %v1173
      %v1175 = vpop.f32.mrb[0].mxu0
      %v1176 = vpop.f32.mrb[0].mxu0
      %v1177 = vadd.f32 %v484, %v1176
      %v1178 = vpop.f32.mrb[0].mxu0
      %1179 = vmatprep.mubr.bf16.mxu0 0
      %1180 = vmatmul.mubr.bf16.gmra.mrb[0].mxu0 %v671
      %v1181 = vpop.f32.mrb[0].mxu0
      %v1182 = vadd.f32 %v484, %v1181
      %v1183 = vpop.f32.mrb[0].mxu0
      %v1184 = vpop.f32.mrb[0].mxu0
      %v1185 = vadd.f32 %v484, %v1184
      %v1186 = vpop.f32.mrb[0].mxu0
      %1187 = vmatprep.mubr.bf16.mxu0 0
      %1188 = vmatmul.mubr.bf16.gmra.mrb[0].mxu0 %v674
      %v1189 = vpop.f32.mrb[0].mxu0
      %v1190 = vadd.f32 %v484, %v1189
      %v1191 = vpop.f32.mrb[0].mxu0
      %v1192 = vpop.f32.mrb[0].mxu0
      %v1193 = vadd.f32 %v484, %v1192
      %v1194 = vpop.f32.mrb[0].mxu0
      %1195 = vmatprep.mubr.bf16.mxu0 0
      %1196 = vmatmul.mubr.bf16.gmra.mrb[0].mxu0 %v677
      %v1197 = vpop.f32.mrb[0].mxu0
      %v1198 = vadd.f32 %v484, %v1197
      %v1199 = vpop.f32.mrb[0].mxu0
      %v1200 = vpop.f32.mrb[0].mxu0
      %v1201 = vadd.f32 %v484, %v1200
      %v1202 = vpop.f32.mrb[0].mxu0
      %1203 = vmatprep.mubr.bf16.mxu0 0
      %1204 = vmatmul.mubr.bf16.gmra.mrb[0].mxu0 %v680
      %v1205 = vpop.f32.mrb[0].mxu0
      %v1206 = vadd.f32 %v484, %v1205
      %v1207 = vpop.f32.mrb[0].mxu0
      %v1208 = vpop.f32.mrb[0].mxu0
      %v1209 = vadd.f32 %v484, %v1208
      %v1210 = vpop.f32.mrb[0].mxu0
      %1211 = vmatprep.mubr.bf16.mxu0 0
      %1212 = vmatmul.mubr.bf16.gmra.mrb[0].mxu0 %v683
      %v1213 = vpop.f32.mrb[0].mxu0
      %v1214 = vadd.f32 %v484, %v1213
      %v1215 = vpop.f32.mrb[0].mxu0
      %v1216 = vpop.f32.mrb[0].mxu0
      %v1217 = vadd.f32 %v484, %v1216
      %v1218 = vpop.f32.mrb[0].mxu0
      %1219 = vmatprep.mubr.bf16.mxu0 0
      %1220 = vmatmul.mubr.bf16.gmra.mrb[0].mxu0 %v686
      %v1221 = vpop.f32.mrb[0].mxu0
      %v1222 = vadd.f32 %v484, %v1221
      %v1223 = vpop.f32.mrb[0].mxu0
      %v1224 = vpop.f32.mrb[0].mxu0
      %v1225 = vadd.f32 %v484, %v1224
      %v1226 = vpop.f32.mrb[0].mxu0
      %1227 = vmatprep.mubr.bf16.mxu0 0
      %1228 = vmatmul.mubr.bf16.gmra.mrb[0].mxu0 %v689
      %v1229 = vpop.f32.mrb[0].mxu0
      %v1230 = vadd.f32 %v484, %v1229
      %v1231 = vpop.f32.mrb[0].mxu0
      %v1232 = vpop.f32.mrb[0].mxu0
      %v1233 = vadd.f32 %v484, %v1232
      %v1234 = vpop.f32.mrb[0].mxu0
      %1235 = vdwg.mxu0
      %v1236 = vmax.f32 %v726, 0.0
      %v1237 = vmax.f32 %v729, 0.0
      %v1238 = vmax.f32 %v734, 0.0
      %v1239 = vmax.f32 %v737, 0.0
      %v1240 = vmax.f32 %v742, 0.0
      %v1241 = vmax.f32 %v745, 0.0
      %v1242 = vmax.f32 %v750, 0.0
      %v1243 = vmax.f32 %v753, 0.0
      %v1244 = vmax.f32 %v758, 0.0
      %v1245 = vmax.f32 %v761, 0.0
      %v1246 = vmax.f32 %v766, 0.0
      %v1247 = vmax.f32 %v769, 0.0
      %v1248 = vmax.f32 %v774, 0.0
      %v1249 = vmax.f32 %v777, 0.0
      %v1250 = vmax.f32 %v782, 0.0
      %v1251 = vmax.f32 %v785, 0.0
      %v1252 = vmax.f32 %v790, 0.0
      %v1253 = vmax.f32 %v793, 0.0
      %v1254 = vmax.f32 %v798, 0.0
      %v1255 = vmax.f32 %v801, 0.0
      %v1256 = vmax.f32 %v806, 0.0
      %v1257 = vmax.f32 %v809, 0.0
      %v1258 = vmax.f32 %v814, 0.0
      %v1259 = vmax.f32 %v817, 0.0
      %v1260 = vmax.f32 %v822, 0.0
      %v1261 = vmax.f32 %v825, 0.0
      %v1262 = vmax.f32 %v830, 0.0
      %v1263 = vmax.f32 %v833, 0.0
      %v1264 = vmax.f32 %v838, 0.0
      %v1265 = vmax.f32 %v841, 0.0
      %v1266 = vmax.f32 %v846, 0.0
      %v1267 = vmax.f32 %v849, 0.0
      %v1268 = vmax.f32 %v854, 0.0
      %v1269 = vmax.f32 %v857, 0.0
      %v1270 = vmax.f32 %v862, 0.0
      %v1271 = vmax.f32 %v865, 0.0
      %v1272 = vmax.f32 %v870, 0.0
      %v1273 = vmax.f32 %v873, 0.0
      %v1274 = vmax.f32 %v878, 0.0
      %v1275 = vmax.f32 %v881, 0.0
      %v1276 = vmax.f32 %v886, 0.0
      %v1277 = vmax.f32 %v889, 0.0
      %v1278 = vmax.f32 %v894, 0.0
      %v1279 = vmax.f32 %v897, 0.0
      %v1280 = vmax.f32 %v902, 0.0
      %v1281 = vmax.f32 %v905, 0.0
      %v1282 = vmax.f32 %v910, 0.0
      %v1283 = vmax.f32 %v913, 0.0
      %v1284 = vmax.f32 %v918, 0.0
      %v1285 = vmax.f32 %v921, 0.0
      %v1286 = vmax.f32 %v926, 0.0
      %v1287 = vmax.f32 %v929, 0.0
      %v1288 = vmax.f32 %v934, 0.0
      %v1289 = vmax.f32 %v937, 0.0
      %v1290 = vmax.f32 %v942, 0.0
      %v1291 = vmax.f32 %v945, 0.0
      %v1292 = vmax.f32 %v950, 0.0
      %v1293 = vmax.f32 %v953, 0.0
      %v1294 = vmax.f32 %v958, 0.0
      %v1295 = vmax.f32 %v961, 0.0
      %v1296 = vmax.f32 %v966, 0.0
      %v1297 = vmax.f32 %v969, 0.0
      %v1298 = vmax.f32 %v974, 0.0
      %v1299 = vmax.f32 %v977, 0.0
      %v1300 = vmax.f32 %v982, 0.0
      %v1301 = vmax.f32 %v985, 0.0
      %v1302 = vmax.f32 %v990, 0.0
      %v1303 = vmax.f32 %v993, 0.0
      %v1304 = vmax.f32 %v998, 0.0
      %v1305 = vmax.f32 %v1001, 0.0
      %v1306 = vmax.f32 %v1006, 0.0
      %v1307 = vmax.f32 %v1009, 0.0
      %v1308 = vmax.f32 %v1014, 0.0
      %v1309 = vmax.f32 %v1017, 0.0
      %v1310 = vmax.f32 %v1022, 0.0
      %v1311 = vmax.f32 %v1025, 0.0
      %v1312 = vmax.f32 %v1030, 0.0
      %v1313 = vmax.f32 %v1033, 0.0
      %v1314 = vmax.f32 %v1038, 0.0
      %v1315 = vmax.f32 %v1041, 0.0
      %v1316 = vmax.f32 %v1046, 0.0
      %v1317 = vmax.f32 %v1049, 0.0
      %v1318 = vmax.f32 %v1054, 0.0
      %v1319 = vmax.f32 %v1057, 0.0
      %v1320 = vmax.f32 %v1062, 0.0
      %v1321 = vmax.f32 %v1065, 0.0
      %v1322 = vmax.f32 %v1070, 0.0
      %v1323 = vmax.f32 %v1073, 0.0
      %v1324 = vmax.f32 %v1078, 0.0
      %v1325 = vmax.f32 %v1081, 0.0
      %v1326 = vmax.f32 %v1086, 0.0
      %v1327 = vmax.f32 %v1089, 0.0
      %v1328 = vmax.f32 %v1094, 0.0
      %v1329 = vmax.f32 %v1097, 0.0
      %v1330 = vmax.f32 %v1102, 0.0
      %v1331 = vmax.f32 %v1105, 0.0
      %v1332 = vmax.f32 %v1110, 0.0
      %v1333 = vmax.f32 %v1113, 0.0
      %v1334 = vmax.f32 %v1118, 0.0
      %v1335 = vmax.f32 %v1121, 0.0
      %v1336 = vmax.f32 %v1126, 0.0
      %v1337 = vmax.f32 %v1129, 0.0
      %v1338 = vmax.f32 %v1134, 0.0
      %v1339 = vmax.f32 %v1137, 0.0
      %v1340 = vmax.f32 %v1142, 0.0
      %v1341 = vmax.f32 %v1145, 0.0
      %v1342 = vmax.f32 %v1150, 0.0
      %v1343 = vmax.f32 %v1153, 0.0
      %v1344 = vmax.f32 %v1158, 0.0
      %v1345 = vmax.f32 %v1161, 0.0
      %v1346 = vmax.f32 %v1166, 0.0
      %v1347 = vmax.f32 %v1169, 0.0
      %v1348 = vmax.f32 %v1174, 0.0
      %v1349 = vmax.f32 %v1177, 0.0
      %v1350 = vmax.f32 %v1182, 0.0
      %v1351 = vmax.f32 %v1185, 0.0
      %v1352 = vmax.f32 %v1190, 0.0
      %v1353 = vmax.f32 %v1193, 0.0
      %v1354 = vmax.f32 %v1198, 0.0
      %v1355 = vmax.f32 %v1201, 0.0
      %v1356 = vmax.f32 %v1206, 0.0
      %v1357 = vmax.f32 %v1209, 0.0
      %v1358 = vmax.f32 %v1214, 0.0
      %v1359 = vmax.f32 %v1217, 0.0
      %v1360 = vmax.f32 %v1222, 0.0
      %v1361 = vmax.f32 %v1225, 0.0
      %v1362 = vmax.f32 %v1230, 0.0
      %v1363 = vmax.f32 %v1233, 0.0
      %v1364 = vpack.c.bf16 %v1237, %v1236
      %v1365 = vpack.c.bf16 %v1239, %v1238
      %v1366 = vpack.c.bf16 %v1241, %v1240
      %v1367 = vpack.c.bf16 %v1243, %v1242
      %v1368 = vpack.c.bf16 %v1245, %v1244
      %v1369 = vpack.c.bf16 %v1247, %v1246
      %v1370 = vpack.c.bf16 %v1249, %v1248
      %v1371 = vpack.c.bf16 %v1251, %v1250
      %v1372 = vpack.c.bf16 %v1253, %v1252
      %v1373 = vpack.c.bf16 %v1255, %v1254
      %v1374 = vpack.c.bf16 %v1257, %v1256
      %v1375 = vpack.c.bf16 %v1259, %v1258
      %v1376 = vpack.c.bf16 %v1261, %v1260
      %v1377 = vpack.c.bf16 %v1263, %v1262
      %v1378 = vpack.c.bf16 %v1265, %v1264
      %v1379 = vpack.c.bf16 %v1267, %v1266
      %v1380 = vpack.c.bf16 %v1269, %v1268
      %v1381 = vpack.c.bf16 %v1271, %v1270
      %v1382 = vpack.c.bf16 %v1273, %v1272
      %v1383 = vpack.c.bf16 %v1275, %v1274
      %v1384 = vpack.c.bf16 %v1277, %v1276
      %v1385 = vpack.c.bf16 %v1279, %v1278
      %v1386 = vpack.c.bf16 %v1281, %v1280
      %v1387 = vpack.c.bf16 %v1283, %v1282
      %v1388 = vpack.c.bf16 %v1285, %v1284
      %v1389 = vpack.c.bf16 %v1287, %v1286
      %v1390 = vpack.c.bf16 %v1289, %v1288
      %v1391 = vpack.c.bf16 %v1291, %v1290
      %v1392 = vpack.c.bf16 %v1293, %v1292
      %v1393 = vpack.c.bf16 %v1295, %v1294
      %v1394 = vpack.c.bf16 %v1297, %v1296
      %v1395 = vpack.c.bf16 %v1299, %v1298
      %v1396 = vpack.c.bf16 %v1301, %v1300
      %v1397 = vpack.c.bf16 %v1303, %v1302
      %v1398 = vpack.c.bf16 %v1305, %v1304
      %v1399 = vpack.c.bf16 %v1307, %v1306
      %v1400 = vpack.c.bf16 %v1309, %v1308
      %v1401 = vpack.c.bf16 %v1311, %v1310
      %v1402 = vpack.c.bf16 %v1313, %v1312
      %v1403 = vpack.c.bf16 %v1315, %v1314
      %v1404 = vpack.c.bf16 %v1317, %v1316
      %v1405 = vpack.c.bf16 %v1319, %v1318
      %v1406 = vpack.c.bf16 %v1321, %v1320
      %v1407 = vpack.c.bf16 %v1323, %v1322
      %v1408 = vpack.c.bf16 %v1325, %v1324
      %v1409 = vpack.c.bf16 %v1327, %v1326
      %v1410 = vpack.c.bf16 %v1329, %v1328
      %v1411 = vpack.c.bf16 %v1331, %v1330
      %v1412 = vpack.c.bf16 %v1333, %v1332
      %v1413 = vpack.c.bf16 %v1335, %v1334
      %v1414 = vpack.c.bf16 %v1337, %v1336
      %v1415 = vpack.c.bf16 %v1339, %v1338
      %v1416 = vpack.c.bf16 %v1341, %v1340
      %v1417 = vpack.c.bf16 %v1343, %v1342
      %v1418 = vpack.c.bf16 %v1345, %v1344
      %v1419 = vpack.c.bf16 %v1347, %v1346
      %v1420 = vpack.c.bf16 %v1349, %v1348
      %v1421 = vpack.c.bf16 %v1351, %v1350
      %v1422 = vpack.c.bf16 %v1353, %v1352
      %v1423 = vpack.c.bf16 %v1355, %v1354
      %v1424 = vpack.c.bf16 %v1357, %v1356
      %v1425 = vpack.c.bf16 %v1359, %v1358
      %v1426 = vpack.c.bf16 %v1361, %v1360
      %v1427 = vpack.c.bf16 %v1363, %v1362
      %v1428 = vld [vmem:[%s3] sm:$0xf]
      %v1429 = vld [vmem:[%s3 + $0x4] sm:$0xf]
      %v1430 = vld [vmem:[%s3 + $0x8] sm:$0xf]
      %v1431 = vld [vmem:[%s3 + $0xc] sm:$0xf]
      %v1432 = vld [vmem:[%s3 + $0x10] sm:$0xf]
      %v1433 = vld [vmem:[%s3 + $0x14] sm:$0xf]
      %v1434 = vld [vmem:[%s3 + $0x18] sm:$0xf]
      %v1435 = vld [vmem:[%s3 + $0x1c] sm:$0xf]
      %v1436 = vld [vmem:[%s3 + $0x20] sm:$0xf]
      %v1437 = vld [vmem:[%s3 + $0x24] sm:$0xf]
      %v1438 = vld [vmem:[%s3 + $0x28] sm:$0xf]
      %v1439 = vld [vmem:[%s3 + $0x2c] sm:$0xf]
      %v1440 = vld [vmem:[%s3 + $0x30] sm:$0xf]
      %v1441 = vld [vmem:[%s3 + $0x34] sm:$0xf]
      %v1442 = vld [vmem:[%s3 + $0x38] sm:$0xf]
      %v1443 = vld [vmem:[%s3 + $0x3c] sm:$0xf]
      %v1444 = vld [vmem:[%s4] sm:$0x1]
      %v1446 = vlaneseq
      %v1447 = vshrl.u32 %v1446, 7
      %v1448 = vsub.s32 0, %v1447
      %v1449 = vrot.slane %v1444, %v1448
      %v1467 = vunpack.c.l.b16 %v1428
      %v1468 = vunpack.c.l.b16 %v1429
      %v1469 = vunpack.c.l.b16 %v1430
      %v1470 = vunpack.c.l.b16 %v1431
      %v1471 = vunpack.c.l.b16 %v1432
      %v1472 = vunpack.c.l.b16 %v1433
      %v1473 = vunpack.c.l.b16 %v1434
      %v1474 = vunpack.c.l.b16 %v1435
      %v1475 = vunpack.c.l.b16 %v1436
      %v1476 = vunpack.c.l.b16 %v1437
      %v1477 = vunpack.c.l.b16 %v1438
      %v1478 = vunpack.c.l.b16 %v1439
      %v1479 = vunpack.c.l.b16 %v1440
      %v1480 = vunpack.c.l.b16 %v1441
      %v1481 = vunpack.c.l.b16 %v1442
      %v1482 = vunpack.c.l.b16 %v1443
      %v1483 = vpack.c.b16 %v1468, %v1467
      %v1484 = vpack.c.b16 %v1470, %v1469
      %v1485 = vpack.c.b16 %v1472, %v1471
      %v1486 = vpack.c.b16 %v1474, %v1473
      %v1487 = vpack.c.b16 %v1476, %v1475
      %v1488 = vpack.c.b16 %v1478, %v1477
      %v1489 = vpack.c.b16 %v1480, %v1479
      %v1490 = vpack.c.b16 %v1482, %v1481
      %1499 = vmatprep.subr.bf16.mxu0 0
      %1500 = vmatpush1.bf16.msra.mxu0 %v1483
      %1501 = vmatprep.subr.bf16.mxu0 0
      %1502 = vmatpush1.bf16.msra.mxu0 %v1484
      %1503 = vmatprep.subr.bf16.mxu0 0
      %1504 = vmatpush1.bf16.msra.mxu0 %v1485
      %1505 = vmatprep.subr.bf16.mxu0 0
      %1506 = vmatpush1.bf16.msra.mxu0 %v1486
      %1507 = vmatprep.subr.bf16.mxu0 0
      %1508 = vmatpush1.bf16.msra.mxu0 %v1487
      %1509 = vmatprep.subr.bf16.mxu0 0
      %1510 = vmatpush1.bf16.msra.mxu0 %v1488
      %1511 = vmatprep.subr.bf16.mxu0 0
      %1512 = vmatpush1.bf16.msra.mxu0 %v1489
      %1513 = vmatprep.subr.bf16.mxu0 0
      %1514 = vmatpush1.bf16.msra.mxu0 %v1490
      %1515 = vmatprep.subr.bf16.mxu0 0
      %1516 = vmatpush1.bf16.msra.mxu0 0
      %1517 = vmatprep.subr.bf16.mxu0 0
      %1518 = vmatpush1.bf16.msra.mxu0 0
      %1519 = vmatprep.subr.bf16.mxu0 0
      %1520 = vmatpush1.bf16.msra.mxu0 0
      %1521 = vmatprep.subr.bf16.mxu0 0
      %1522 = vmatpush1.bf16.msra.mxu0 0
      %1523 = vmatprep.subr.bf16.mxu0 0
      %1524 = vmatpush1.bf16.msra.mxu0 0
      %1525 = vmatprep.subr.bf16.mxu0 0
      %1526 = vmatpush1.bf16.msra.mxu0 0
      %1527 = vmatprep.subr.bf16.mxu0 0
      %1528 = vmatpush1.bf16.msra.mxu0 0
      %1529 = vmatprep.subr.bf16.mxu0 0
      %1530 = vmatpush1.bf16.msra.mxu0 0
      %1531 = vmatprep.mubr.bf16.mxu0 0
      %1532 = vmatmul.mubr.bf16.gmra.mrb[0].mxu0 %v1364
      %v1533 = vpop.f32.mrb[0].mxu0
      %v1534 = vadd.f32 %v1449, %v1533
      %v1535 = vpop.f32.mrb[0].mxu0
      %v1536 = vpop.f32.mrb[0].mxu0
      %v1537 = vadd.f32 %v1449, %v1536
      %v1538 = vpop.f32.mrb[0].mxu0
      %1539 = vmatprep.mubr.bf16.mxu0 0
      %1540 = vmatmul.mubr.bf16.gmra.mrb[0].mxu0 %v1365
      %v1541 = vpop.f32.mrb[0].mxu0
      %v1542 = vadd.f32 %v1449, %v1541
      %v1543 = vpop.f32.mrb[0].mxu0
      %v1544 = vpop.f32.mrb[0].mxu0
      %v1545 = vadd.f32 %v1449, %v1544
      %v1546 = vpop.f32.mrb[0].mxu0
      %1547 = vmatprep.mubr.bf16.mxu0 0
      %1548 = vmatmul.mubr.bf16.gmra.mrb[0].mxu0 %v1366
      %v1549 = vpop.f32.mrb[0].mxu0
      %v1550 = vadd.f32 %v1449, %v1549
      %v1551 = vpop.f32.mrb[0].mxu0
      %v1552 = vpop.f32.mrb[0].mxu0
      %v1553 = vadd.f32 %v1449, %v1552
      %v1554 = vpop.f32.mrb[0].mxu0
      %1555 = vmatprep.mubr.bf16.mxu0 0
      %1556 = vmatmul.mubr.bf16.gmra.mrb[0].mxu0 %v1367
      %v1557 = vpop.f32.mrb[0].mxu0
      %v1558 = vadd.f32 %v1449, %v1557
      %v1559 = vpop.f32.mrb[0].mxu0
      %v1560 = vpop.f32.mrb[0].mxu0
      %v1561 = vadd.f32 %v1449, %v1560
      %v1562 = vpop.f32.mrb[0].mxu0
      %1563 = vmatprep.mubr.bf16.mxu0 0
      %1564 = vmatmul.mubr.bf16.gmra.mrb[0].mxu0 %v1368
      %v1565 = vpop.f32.mrb[0].mxu0
      %v1566 = vadd.f32 %v1449, %v1565
      %v1567 = vpop.f32.mrb[0].mxu0
      %v1568 = vpop.f32.mrb[0].mxu0
      %v1569 = vadd.f32 %v1449, %v1568
      %v1570 = vpop.f32.mrb[0].mxu0
      %1571 = vmatprep.mubr.bf16.mxu0 0
      %1572 = vmatmul.mubr.bf16.gmra.mrb[0].mxu0 %v1369
      %v1573 = vpop.f32.mrb[0].mxu0
      %v1574 = vadd.f32 %v1449, %v1573
      %v1575 = vpop.f32.mrb[0].mxu0
      %v1576 = vpop.f32.mrb[0].mxu0
      %v1577 = vadd.f32 %v1449, %v1576
      %v1578 = vpop.f32.mrb[0].mxu0
      %1579 = vmatprep.mubr.bf16.mxu0 0
      %1580 = vmatmul.mubr.bf16.gmra.mrb[0].mxu0 %v1370
      %v1581 = vpop.f32.mrb[0].mxu0
      %v1582 = vadd.f32 %v1449, %v1581
      %v1583 = vpop.f32.mrb[0].mxu0
      %v1584 = vpop.f32.mrb[0].mxu0
      %v1585 = vadd.f32 %v1449, %v1584
      %v1586 = vpop.f32.mrb[0].mxu0
      %1587 = vmatprep.mubr.bf16.mxu0 0
      %1588 = vmatmul.mubr.bf16.gmra.mrb[0].mxu0 %v1371
      %v1589 = vpop.f32.mrb[0].mxu0
      %v1590 = vadd.f32 %v1449, %v1589
      %v1591 = vpop.f32.mrb[0].mxu0
      %v1592 = vpop.f32.mrb[0].mxu0
      %v1593 = vadd.f32 %v1449, %v1592
      %v1594 = vpop.f32.mrb[0].mxu0
      %1595 = vmatprep.mubr.bf16.mxu0 0
      %1596 = vmatmul.mubr.bf16.gmra.mrb[0].mxu0 %v1372
      %v1597 = vpop.f32.mrb[0].mxu0
      %v1598 = vadd.f32 %v1449, %v1597
      %v1599 = vpop.f32.mrb[0].mxu0
      %v1600 = vpop.f32.mrb[0].mxu0
      %v1601 = vadd.f32 %v1449, %v1600
      %v1602 = vpop.f32.mrb[0].mxu0
      %1603 = vmatprep.mubr.bf16.mxu0 0
      %1604 = vmatmul.mubr.bf16.gmra.mrb[0].mxu0 %v1373
      %v1605 = vpop.f32.mrb[0].mxu0
      %v1606 = vadd.f32 %v1449, %v1605
      %v1607 = vpop.f32.mrb[0].mxu0
      %v1608 = vpop.f32.mrb[0].mxu0
      %v1609 = vadd.f32 %v1449, %v1608
      %v1610 = vpop.f32.mrb[0].mxu0
      %1611 = vmatprep.mubr.bf16.mxu0 0
      %1612 = vmatmul.mubr.bf16.gmra.mrb[0].mxu0 %v1374
      %v1613 = vpop.f32.mrb[0].mxu0
      %v1614 = vadd.f32 %v1449, %v1613
      %v1615 = vpop.f32.mrb[0].mxu0
      %v1616 = vpop.f32.mrb[0].mxu0
      %v1617 = vadd.f32 %v1449, %v1616
      %v1618 = vpop.f32.mrb[0].mxu0
      %1619 = vmatprep.mubr.bf16.mxu0 0
      %1620 = vmatmul.mubr.bf16.gmra.mrb[0].mxu0 %v1375
      %v1621 = vpop.f32.mrb[0].mxu0
      %v1622 = vadd.f32 %v1449, %v1621
      %v1623 = vpop.f32.mrb[0].mxu0
      %v1624 = vpop.f32.mrb[0].mxu0
      %v1625 = vadd.f32 %v1449, %v1624
      %v1626 = vpop.f32.mrb[0].mxu0
      %1627 = vmatprep.mubr.bf16.mxu0 0
      %1628 = vmatmul.mubr.bf16.gmra.mrb[0].mxu0 %v1376
      %v1629 = vpop.f32.mrb[0].mxu0
      %v1630 = vadd.f32 %v1449, %v1629
      %v1631 = vpop.f32.mrb[0].mxu0
      %v1632 = vpop.f32.mrb[0].mxu0
      %v1633 = vadd.f32 %v1449, %v1632
      %v1634 = vpop.f32.mrb[0].mxu0
      %1635 = vmatprep.mubr.bf16.mxu0 0
      %1636 = vmatmul.mubr.bf16.gmra.mrb[0].mxu0 %v1377
      %v1637 = vpop.f32.mrb[0].mxu0
      %v1638 = vadd.f32 %v1449, %v1637
      %v1639 = vpop.f32.mrb[0].mxu0
      %v1640 = vpop.f32.mrb[0].mxu0
      %v1641 = vadd.f32 %v1449, %v1640
      %v1642 = vpop.f32.mrb[0].mxu0
      %1643 = vmatprep.mubr.bf16.mxu0 0
      %1644 = vmatmul.mubr.bf16.gmra.mrb[0].mxu0 %v1378
      %v1645 = vpop.f32.mrb[0].mxu0
      %v1646 = vadd.f32 %v1449, %v1645
      %v1647 = vpop.f32.mrb[0].mxu0
      %v1648 = vpop.f32.mrb[0].mxu0
      %v1649 = vadd.f32 %v1449, %v1648
      %v1650 = vpop.f32.mrb[0].mxu0
      %1651 = vmatprep.mubr.bf16.mxu0 0
      %1652 = vmatmul.mubr.bf16.gmra.mrb[0].mxu0 %v1379
      %v1653 = vpop.f32.mrb[0].mxu0
      %v1654 = vadd.f32 %v1449, %v1653
      %v1655 = vpop.f32.mrb[0].mxu0
      %v1656 = vpop.f32.mrb[0].mxu0
      %v1657 = vadd.f32 %v1449, %v1656
      %v1658 = vpop.f32.mrb[0].mxu0
      %1659 = vmatprep.mubr.bf16.mxu0 0
      %1660 = vmatmul.mubr.bf16.gmra.mrb[0].mxu0 %v1380
      %v1661 = vpop.f32.mrb[0].mxu0
      %v1662 = vadd.f32 %v1449, %v1661
      %v1663 = vpop.f32.mrb[0].mxu0
      %v1664 = vpop.f32.mrb[0].mxu0
      %v1665 = vadd.f32 %v1449, %v1664
      %v1666 = vpop.f32.mrb[0].mxu0
      %1667 = vmatprep.mubr.bf16.mxu0 0
      %1668 = vmatmul.mubr.bf16.gmra.mrb[0].mxu0 %v1381
      %v1669 = vpop.f32.mrb[0].mxu0
      %v1670 = vadd.f32 %v1449, %v1669
      %v1671 = vpop.f32.mrb[0].mxu0
      %v1672 = vpop.f32.mrb[0].mxu0
      %v1673 = vadd.f32 %v1449, %v1672
      %v1674 = vpop.f32.mrb[0].mxu0
      %1675 = vmatprep.mubr.bf16.mxu0 0
      %1676 = vmatmul.mubr.bf16.gmra.mrb[0].mxu0 %v1382
      %v1677 = vpop.f32.mrb[0].mxu0
      %v1678 = vadd.f32 %v1449, %v1677
      %v1679 = vpop.f32.mrb[0].mxu0
      %v1680 = vpop.f32.mrb[0].mxu0
      %v1681 = vadd.f32 %v1449, %v1680
      %v1682 = vpop.f32.mrb[0].mxu0
      %1683 = vmatprep.mubr.bf16.mxu0 0
      %1684 = vmatmul.mubr.bf16.gmra.mrb[0].mxu0 %v1383
      %v1685 = vpop.f32.mrb[0].mxu0
      %v1686 = vadd.f32 %v1449, %v1685
      %v1687 = vpop.f32.mrb[0].mxu0
      %v1688 = vpop.f32.mrb[0].mxu0
      %v1689 = vadd.f32 %v1449, %v1688
      %v1690 = vpop.f32.mrb[0].mxu0
      %1691 = vmatprep.mubr.bf16.mxu0 0
      %1692 = vmatmul.mubr.bf16.gmra.mrb[0].mxu0 %v1384
      %v1693 = vpop.f32.mrb[0].mxu0
      %v1694 = vadd.f32 %v1449, %v1693
      %v1695 = vpop.f32.mrb[0].mxu0
      %v1696 = vpop.f32.mrb[0].mxu0
      %v1697 = vadd.f32 %v1449, %v1696
      %v1698 = vpop.f32.mrb[0].mxu0
      %1699 = vmatprep.mubr.bf16.mxu0 0
      %1700 = vmatmul.mubr.bf16.gmra.mrb[0].mxu0 %v1385
      %v1701 = vpop.f32.mrb[0].mxu0
      %v1702 = vadd.f32 %v1449, %v1701
      %v1703 = vpop.f32.mrb[0].mxu0
      %v1704 = vpop.f32.mrb[0].mxu0
      %v1705 = vadd.f32 %v1449, %v1704
      %v1706 = vpop.f32.mrb[0].mxu0
      %1707 = vmatprep.mubr.bf16.mxu0 0
      %1708 = vmatmul.mubr.bf16.gmra.mrb[0].mxu0 %v1386
      %v1709 = vpop.f32.mrb[0].mxu0
      %v1710 = vadd.f32 %v1449, %v1709
      %v1711 = vpop.f32.mrb[0].mxu0
      %v1712 = vpop.f32.mrb[0].mxu0
      %v1713 = vadd.f32 %v1449, %v1712
      %v1714 = vpop.f32.mrb[0].mxu0
      %1715 = vmatprep.mubr.bf16.mxu0 0
      %1716 = vmatmul.mubr.bf16.gmra.mrb[0].mxu0 %v1387
      %v1717 = vpop.f32.mrb[0].mxu0
      %v1718 = vadd.f32 %v1449, %v1717
      %v1719 = vpop.f32.mrb[0].mxu0
      %v1720 = vpop.f32.mrb[0].mxu0
      %v1721 = vadd.f32 %v1449, %v1720
      %v1722 = vpop.f32.mrb[0].mxu0
      %1723 = vmatprep.mubr.bf16.mxu0 0
      %1724 = vmatmul.mubr.bf16.gmra.mrb[0].mxu0 %v1388
      %v1725 = vpop.f32.mrb[0].mxu0
      %v1726 = vadd.f32 %v1449, %v1725
      %v1727 = vpop.f32.mrb[0].mxu0
      %v1728 = vpop.f32.mrb[0].mxu0
      %v1729 = vadd.f32 %v1449, %v1728
      %v1730 = vpop.f32.mrb[0].mxu0
      %1731 = vmatprep.mubr.bf16.mxu0 0
      %1732 = vmatmul.mubr.bf16.gmra.mrb[0].mxu0 %v1389
      %v1733 = vpop.f32.mrb[0].mxu0
      %v1734 = vadd.f32 %v1449, %v1733
      %v1735 = vpop.f32.mrb[0].mxu0
      %v1736 = vpop.f32.mrb[0].mxu0
      %v1737 = vadd.f32 %v1449, %v1736
      %v1738 = vpop.f32.mrb[0].mxu0
      %1739 = vmatprep.mubr.bf16.mxu0 0
      %1740 = vmatmul.mubr.bf16.gmra.mrb[0].mxu0 %v1390
      %v1741 = vpop.f32.mrb[0].mxu0
      %v1742 = vadd.f32 %v1449, %v1741
      %v1743 = vpop.f32.mrb[0].mxu0
      %v1744 = vpop.f32.mrb[0].mxu0
      %v1745 = vadd.f32 %v1449, %v1744
      %v1746 = vpop.f32.mrb[0].mxu0
      %1747 = vmatprep.mubr.bf16.mxu0 0
      %1748 = vmatmul.mubr.bf16.gmra.mrb[0].mxu0 %v1391
      %v1749 = vpop.f32.mrb[0].mxu0
      %v1750 = vadd.f32 %v1449, %v1749
      %v1751 = vpop.f32.mrb[0].mxu0
      %v1752 = vpop.f32.mrb[0].mxu0
      %v1753 = vadd.f32 %v1449, %v1752
      %v1754 = vpop.f32.mrb[0].mxu0
      %1755 = vmatprep.mubr.bf16.mxu0 0
      %1756 = vmatmul.mubr.bf16.gmra.mrb[0].mxu0 %v1392
      %v1757 = vpop.f32.mrb[0].mxu0
      %v1758 = vadd.f32 %v1449, %v1757
      %v1759 = vpop.f32.mrb[0].mxu0
      %v1760 = vpop.f32.mrb[0].mxu0
      %v1761 = vadd.f32 %v1449, %v1760
      %v1762 = vpop.f32.mrb[0].mxu0
      %1763 = vmatprep.mubr.bf16.mxu0 0
      %1764 = vmatmul.mubr.bf16.gmra.mrb[0].mxu0 %v1393
      %v1765 = vpop.f32.mrb[0].mxu0
      %v1766 = vadd.f32 %v1449, %v1765
      %v1767 = vpop.f32.mrb[0].mxu0
      %v1768 = vpop.f32.mrb[0].mxu0
      %v1769 = vadd.f32 %v1449, %v1768
      %v1770 = vpop.f32.mrb[0].mxu0
      %1771 = vmatprep.mubr.bf16.mxu0 0
      %1772 = vmatmul.mubr.bf16.gmra.mrb[0].mxu0 %v1394
      %v1773 = vpop.f32.mrb[0].mxu0
      %v1774 = vadd.f32 %v1449, %v1773
      %v1775 = vpop.f32.mrb[0].mxu0
      %v1776 = vpop.f32.mrb[0].mxu0
      %v1777 = vadd.f32 %v1449, %v1776
      %v1778 = vpop.f32.mrb[0].mxu0
      %1779 = vmatprep.mubr.bf16.mxu0 0
      %1780 = vmatmul.mubr.bf16.gmra.mrb[0].mxu0 %v1395
      %v1781 = vpop.f32.mrb[0].mxu0
      %v1782 = vadd.f32 %v1449, %v1781
      %v1783 = vpop.f32.mrb[0].mxu0
      %v1784 = vpop.f32.mrb[0].mxu0
      %v1785 = vadd.f32 %v1449, %v1784
      %v1786 = vpop.f32.mrb[0].mxu0
      %1787 = vmatprep.mubr.bf16.mxu0 0
      %1788 = vmatmul.mubr.bf16.gmra.mrb[0].mxu0 %v1396
      %v1789 = vpop.f32.mrb[0].mxu0
      %v1790 = vadd.f32 %v1449, %v1789
      %v1791 = vpop.f32.mrb[0].mxu0
      %v1792 = vpop.f32.mrb[0].mxu0
      %v1793 = vadd.f32 %v1449, %v1792
      %v1794 = vpop.f32.mrb[0].mxu0
      %1795 = vmatprep.mubr.bf16.mxu0 0
      %1796 = vmatmul.mubr.bf16.gmra.mrb[0].mxu0 %v1397
      %v1797 = vpop.f32.mrb[0].mxu0
      %v1798 = vadd.f32 %v1449, %v1797
      %v1799 = vpop.f32.mrb[0].mxu0
      %v1800 = vpop.f32.mrb[0].mxu0
      %v1801 = vadd.f32 %v1449, %v1800
      %v1802 = vpop.f32.mrb[0].mxu0
      %1803 = vmatprep.mubr.bf16.mxu0 0
      %1804 = vmatmul.mubr.bf16.gmra.mrb[0].mxu0 %v1398
      %v1805 = vpop.f32.mrb[0].mxu0
      %v1806 = vadd.f32 %v1449, %v1805
      %v1807 = vpop.f32.mrb[0].mxu0
      %v1808 = vpop.f32.mrb[0].mxu0
      %v1809 = vadd.f32 %v1449, %v1808
      %v1810 = vpop.f32.mrb[0].mxu0
      %1811 = vmatprep.mubr.bf16.mxu0 0
      %1812 = vmatmul.mubr.bf16.gmra.mrb[0].mxu0 %v1399
      %v1813 = vpop.f32.mrb[0].mxu0
      %v1814 = vadd.f32 %v1449, %v1813
      %v1815 = vpop.f32.mrb[0].mxu0
      %v1816 = vpop.f32.mrb[0].mxu0
      %v1817 = vadd.f32 %v1449, %v1816
      %v1818 = vpop.f32.mrb[0].mxu0
      %1819 = vmatprep.mubr.bf16.mxu0 0
      %1820 = vmatmul.mubr.bf16.gmra.mrb[0].mxu0 %v1400
      %v1821 = vpop.f32.mrb[0].mxu0
      %v1822 = vadd.f32 %v1449, %v1821
      %v1823 = vpop.f32.mrb[0].mxu0
      %v1824 = vpop.f32.mrb[0].mxu0
      %v1825 = vadd.f32 %v1449, %v1824
      %v1826 = vpop.f32.mrb[0].mxu0
      %1827 = vmatprep.mubr.bf16.mxu0 0
      %1828 = vmatmul.mubr.bf16.gmra.mrb[0].mxu0 %v1401
      %v1829 = vpop.f32.mrb[0].mxu0
      %v1830 = vadd.f32 %v1449, %v1829
      %v1831 = vpop.f32.mrb[0].mxu0
      %v1832 = vpop.f32.mrb[0].mxu0
      %v1833 = vadd.f32 %v1449, %v1832
      %v1834 = vpop.f32.mrb[0].mxu0
      %1835 = vmatprep.mubr.bf16.mxu0 0
      %1836 = vmatmul.mubr.bf16.gmra.mrb[0].mxu0 %v1402
      %v1837 = vpop.f32.mrb[0].mxu0
      %v1838 = vadd.f32 %v1449, %v1837
      %v1839 = vpop.f32.mrb[0].mxu0
      %v1840 = vpop.f32.mrb[0].mxu0
      %v1841 = vadd.f32 %v1449, %v1840
      %v1842 = vpop.f32.mrb[0].mxu0
      %1843 = vmatprep.mubr.bf16.mxu0 0
      %1844 = vmatmul.mubr.bf16.gmra.mrb[0].mxu0 %v1403
      %v1845 = vpop.f32.mrb[0].mxu0
      %v1846 = vadd.f32 %v1449, %v1845
      %v1847 = vpop.f32.mrb[0].mxu0
      %v1848 = vpop.f32.mrb[0].mxu0
      %v1849 = vadd.f32 %v1449, %v1848
      %v1850 = vpop.f32.mrb[0].mxu0
      %1851 = vmatprep.mubr.bf16.mxu0 0
      %1852 = vmatmul.mubr.bf16.gmra.mrb[0].mxu0 %v1404
      %v1853 = vpop.f32.mrb[0].mxu0
      %v1854 = vadd.f32 %v1449, %v1853
      %v1855 = vpop.f32.mrb[0].mxu0
      %v1856 = vpop.f32.mrb[0].mxu0
      %v1857 = vadd.f32 %v1449, %v1856
      %v1858 = vpop.f32.mrb[0].mxu0
      %1859 = vmatprep.mubr.bf16.mxu0 0
      %1860 = vmatmul.mubr.bf16.gmra.mrb[0].mxu0 %v1405
      %v1861 = vpop.f32.mrb[0].mxu0
      %v1862 = vadd.f32 %v1449, %v1861
      %v1863 = vpop.f32.mrb[0].mxu0
      %v1864 = vpop.f32.mrb[0].mxu0
      %v1865 = vadd.f32 %v1449, %v1864
      %v1866 = vpop.f32.mrb[0].mxu0
      %1867 = vmatprep.mubr.bf16.mxu0 0
      %1868 = vmatmul.mubr.bf16.gmra.mrb[0].mxu0 %v1406
      %v1869 = vpop.f32.mrb[0].mxu0
      %v1870 = vadd.f32 %v1449, %v1869
      %v1871 = vpop.f32.mrb[0].mxu0
      %v1872 = vpop.f32.mrb[0].mxu0
      %v1873 = vadd.f32 %v1449, %v1872
      %v1874 = vpop.f32.mrb[0].mxu0
      %1875 = vmatprep.mubr.bf16.mxu0 0
      %1876 = vmatmul.mubr.bf16.gmra.mrb[0].mxu0 %v1407
      %v1877 = vpop.f32.mrb[0].mxu0
      %v1878 = vadd.f32 %v1449, %v1877
      %v1879 = vpop.f32.mrb[0].mxu0
      %v1880 = vpop.f32.mrb[0].mxu0
      %v1881 = vadd.f32 %v1449, %v1880
      %v1882 = vpop.f32.mrb[0].mxu0
      %1883 = vmatprep.mubr.bf16.mxu0 0
      %1884 = vmatmul.mubr.bf16.gmra.mrb[0].mxu0 %v1408
      %v1885 = vpop.f32.mrb[0].mxu0
      %v1886 = vadd.f32 %v1449, %v1885
      %v1887 = vpop.f32.mrb[0].mxu0
      %v1888 = vpop.f32.mrb[0].mxu0
      %v1889 = vadd.f32 %v1449, %v1888
      %v1890 = vpop.f32.mrb[0].mxu0
      %1891 = vmatprep.mubr.bf16.mxu0 0
      %1892 = vmatmul.mubr.bf16.gmra.mrb[0].mxu0 %v1409
      %v1893 = vpop.f32.mrb[0].mxu0
      %v1894 = vadd.f32 %v1449, %v1893
      %v1895 = vpop.f32.mrb[0].mxu0
      %v1896 = vpop.f32.mrb[0].mxu0
      %v1897 = vadd.f32 %v1449, %v1896
      %v1898 = vpop.f32.mrb[0].mxu0
      %1899 = vmatprep.mubr.bf16.mxu0 0
      %1900 = vmatmul.mubr.bf16.gmra.mrb[0].mxu0 %v1410
      %v1901 = vpop.f32.mrb[0].mxu0
      %v1902 = vadd.f32 %v1449, %v1901
      %v1903 = vpop.f32.mrb[0].mxu0
      %v1904 = vpop.f32.mrb[0].mxu0
      %v1905 = vadd.f32 %v1449, %v1904
      %v1906 = vpop.f32.mrb[0].mxu0
      %1907 = vmatprep.mubr.bf16.mxu0 0
      %1908 = vmatmul.mubr.bf16.gmra.mrb[0].mxu0 %v1411
      %v1909 = vpop.f32.mrb[0].mxu0
      %v1910 = vadd.f32 %v1449, %v1909
      %v1911 = vpop.f32.mrb[0].mxu0
      %v1912 = vpop.f32.mrb[0].mxu0
      %v1913 = vadd.f32 %v1449, %v1912
      %v1914 = vpop.f32.mrb[0].mxu0
      %1915 = vmatprep.mubr.bf16.mxu0 0
      %1916 = vmatmul.mubr.bf16.gmra.mrb[0].mxu0 %v1412
      %v1917 = vpop.f32.mrb[0].mxu0
      %v1918 = vadd.f32 %v1449, %v1917
      %v1919 = vpop.f32.mrb[0].mxu0
      %v1920 = vpop.f32.mrb[0].mxu0
      %v1921 = vadd.f32 %v1449, %v1920
      %v1922 = vpop.f32.mrb[0].mxu0
      %1923 = vmatprep.mubr.bf16.mxu0 0
      %1924 = vmatmul.mubr.bf16.gmra.mrb[0].mxu0 %v1413
      %v1925 = vpop.f32.mrb[0].mxu0
      %v1926 = vadd.f32 %v1449, %v1925
      %v1927 = vpop.f32.mrb[0].mxu0
      %v1928 = vpop.f32.mrb[0].mxu0
      %v1929 = vadd.f32 %v1449, %v1928
      %v1930 = vpop.f32.mrb[0].mxu0
      %1931 = vmatprep.mubr.bf16.mxu0 0
      %1932 = vmatmul.mubr.bf16.gmra.mrb[0].mxu0 %v1414
      %v1933 = vpop.f32.mrb[0].mxu0
      %v1934 = vadd.f32 %v1449, %v1933
      %v1935 = vpop.f32.mrb[0].mxu0
      %v1936 = vpop.f32.mrb[0].mxu0
      %v1937 = vadd.f32 %v1449, %v1936
      %v1938 = vpop.f32.mrb[0].mxu0
      %1939 = vmatprep.mubr.bf16.mxu0 0
      %1940 = vmatmul.mubr.bf16.gmra.mrb[0].mxu0 %v1415
      %v1941 = vpop.f32.mrb[0].mxu0
      %v1942 = vadd.f32 %v1449, %v1941
      %v1943 = vpop.f32.mrb[0].mxu0
      %v1944 = vpop.f32.mrb[0].mxu0
      %v1945 = vadd.f32 %v1449, %v1944
      %v1946 = vpop.f32.mrb[0].mxu0
      %1947 = vmatprep.mubr.bf16.mxu0 0
      %1948 = vmatmul.mubr.bf16.gmra.mrb[0].mxu0 %v1416
      %v1949 = vpop.f32.mrb[0].mxu0
      %v1950 = vadd.f32 %v1449, %v1949
      %v1951 = vpop.f32.mrb[0].mxu0
      %v1952 = vpop.f32.mrb[0].mxu0
      %v1953 = vadd.f32 %v1449, %v1952
      %v1954 = vpop.f32.mrb[0].mxu0
      %1955 = vmatprep.mubr.bf16.mxu0 0
      %1956 = vmatmul.mubr.bf16.gmra.mrb[0].mxu0 %v1417
      %v1957 = vpop.f32.mrb[0].mxu0
      %v1958 = vadd.f32 %v1449, %v1957
      %v1959 = vpop.f32.mrb[0].mxu0
      %v1960 = vpop.f32.mrb[0].mxu0
      %v1961 = vadd.f32 %v1449, %v1960
      %v1962 = vpop.f32.mrb[0].mxu0
      %1963 = vmatprep.mubr.bf16.mxu0 0
      %1964 = vmatmul.mubr.bf16.gmra.mrb[0].mxu0 %v1418
      %v1965 = vpop.f32.mrb[0].mxu0
      %v1966 = vadd.f32 %v1449, %v1965
      %v1967 = vpop.f32.mrb[0].mxu0
      %v1968 = vpop.f32.mrb[0].mxu0
      %v1969 = vadd.f32 %v1449, %v1968
      %v1970 = vpop.f32.mrb[0].mxu0
      %1971 = vmatprep.mubr.bf16.mxu0 0
      %1972 = vmatmul.mubr.bf16.gmra.mrb[0].mxu0 %v1419
      %v1973 = vpop.f32.mrb[0].mxu0
      %v1974 = vadd.f32 %v1449, %v1973
      %v1975 = vpop.f32.mrb[0].mxu0
      %v1976 = vpop.f32.mrb[0].mxu0
      %v1977 = vadd.f32 %v1449, %v1976
      %v1978 = vpop.f32.mrb[0].mxu0
      %1979 = vmatprep.mubr.bf16.mxu0 0
      %1980 = vmatmul.mubr.bf16.gmra.mrb[0].mxu0 %v1420
      %v1981 = vpop.f32.mrb[0].mxu0
      %v1982 = vadd.f32 %v1449, %v1981
      %v1983 = vpop.f32.mrb[0].mxu0
      %v1984 = vpop.f32.mrb[0].mxu0
      %v1985 = vadd.f32 %v1449, %v1984
      %v1986 = vpop.f32.mrb[0].mxu0
      %1987 = vmatprep.mubr.bf16.mxu0 0
      %1988 = vmatmul.mubr.bf16.gmra.mrb[0].mxu0 %v1421
      %v1989 = vpop.f32.mrb[0].mxu0
      %v1990 = vadd.f32 %v1449, %v1989
      %v1991 = vpop.f32.mrb[0].mxu0
      %v1992 = vpop.f32.mrb[0].mxu0
      %v1993 = vadd.f32 %v1449, %v1992
      %v1994 = vpop.f32.mrb[0].mxu0
      %1995 = vmatprep.mubr.bf16.mxu0 0
      %1996 = vmatmul.mubr.bf16.gmra.mrb[0].mxu0 %v1422
      %v1997 = vpop.f32.mrb[0].mxu0
      %v1998 = vadd.f32 %v1449, %v1997
      %v1999 = vpop.f32.mrb[0].mxu0
      %v2000 = vpop.f32.mrb[0].mxu0
      %v2001 = vadd.f32 %v1449, %v2000
      %v2002 = vpop.f32.mrb[0].mxu0
      %2003 = vmatprep.mubr.bf16.mxu0 0
      %2004 = vmatmul.mubr.bf16.gmra.mrb[0].mxu0 %v1423
      %v2005 = vpop.f32.mrb[0].mxu0
      %v2006 = vadd.f32 %v1449, %v2005
      %v2007 = vpop.f32.mrb[0].mxu0
      %v2008 = vpop.f32.mrb[0].mxu0
      %v2009 = vadd.f32 %v1449, %v2008
      %v2010 = vpop.f32.mrb[0].mxu0
      %2011 = vmatprep.mubr.bf16.mxu0 0
      %2012 = vmatmul.mubr.bf16.gmra.mrb[0].mxu0 %v1424
      %v2013 = vpop.f32.mrb[0].mxu0
      %v2014 = vadd.f32 %v1449, %v2013
      %v2015 = vpop.f32.mrb[0].mxu0
      %v2016 = vpop.f32.mrb[0].mxu0
      %v2017 = vadd.f32 %v1449, %v2016
      %v2018 = vpop.f32.mrb[0].mxu0
      %2019 = vmatprep.mubr.bf16.mxu0 0
      %2020 = vmatmul.mubr.bf16.gmra.mrb[0].mxu0 %v1425
      %v2021 = vpop.f32.mrb[0].mxu0
      %v2022 = vadd.f32 %v1449, %v2021
      %v2023 = vpop.f32.mrb[0].mxu0
      %v2024 = vpop.f32.mrb[0].mxu0
      %v2025 = vadd.f32 %v1449, %v2024
      %v2026 = vpop.f32.mrb[0].mxu0
      %2027 = vmatprep.mubr.bf16.mxu0 0
      %2028 = vmatmul.mubr.bf16.gmra.mrb[0].mxu0 %v1426
      %v2029 = vpop.f32.mrb[0].mxu0
      %v2030 = vadd.f32 %v1449, %v2029
      %v2031 = vpop.f32.mrb[0].mxu0
      %v2032 = vpop.f32.mrb[0].mxu0
      %v2033 = vadd.f32 %v1449, %v2032
      %v2034 = vpop.f32.mrb[0].mxu0
      %2035 = vmatprep.mubr.bf16.mxu0 0
      %2036 = vmatmul.mubr.bf16.gmra.mrb[0].mxu0 %v1427
      %v2037 = vpop.f32.mrb[0].mxu0
      %v2038 = vadd.f32 %v1449, %v2037
      %v2039 = vpop.f32.mrb[0].mxu0
      %v2040 = vpop.f32.mrb[0].mxu0
      %v2041 = vadd.f32 %v1449, %v2040
      %v2042 = vpop.f32.mrb[0].mxu0
      %2043 = vdwg.mxu0
      %v2044 = vmax.f32 %v1534, 0.0
      %v2045 = vmax.f32 %v1537, 0.0
      %v2046 = vmax.f32 %v1542, 0.0
      %v2047 = vmax.f32 %v1545, 0.0
      %v2048 = vmax.f32 %v1550, 0.0
      %v2049 = vmax.f32 %v1553, 0.0
      %v2050 = vmax.f32 %v1558, 0.0
      %v2051 = vmax.f32 %v1561, 0.0
      %v2052 = vmax.f32 %v1566, 0.0
      %v2053 = vmax.f32 %v1569, 0.0
      %v2054 = vmax.f32 %v1574, 0.0
      %v2055 = vmax.f32 %v1577, 0.0
      %v2056 = vmax.f32 %v1582, 0.0
      %v2057 = vmax.f32 %v1585, 0.0
      %v2058 = vmax.f32 %v1590, 0.0
      %v2059 = vmax.f32 %v1593, 0.0
      %v2060 = vmax.f32 %v1598, 0.0
      %v2061 = vmax.f32 %v1601, 0.0
      %v2062 = vmax.f32 %v1606, 0.0
      %v2063 = vmax.f32 %v1609, 0.0
      %v2064 = vmax.f32 %v1614, 0.0
      %v2065 = vmax.f32 %v1617, 0.0
      %v2066 = vmax.f32 %v1622, 0.0
      %v2067 = vmax.f32 %v1625, 0.0
      %v2068 = vmax.f32 %v1630, 0.0
      %v2069 = vmax.f32 %v1633, 0.0
      %v2070 = vmax.f32 %v1638, 0.0
      %v2071 = vmax.f32 %v1641, 0.0
      %v2072 = vmax.f32 %v1646, 0.0
      %v2073 = vmax.f32 %v1649, 0.0
      %v2074 = vmax.f32 %v1654, 0.0
      %v2075 = vmax.f32 %v1657, 0.0
      %v2076 = vmax.f32 %v1662, 0.0
      %v2077 = vmax.f32 %v1665, 0.0
      %v2078 = vmax.f32 %v1670, 0.0
      %v2079 = vmax.f32 %v1673, 0.0
      %v2080 = vmax.f32 %v1678, 0.0
      %v2081 = vmax.f32 %v1681, 0.0
      %v2082 = vmax.f32 %v1686, 0.0
      %v2083 = vmax.f32 %v1689, 0.0
      %v2084 = vmax.f32 %v1694, 0.0
      %v2085 = vmax.f32 %v1697, 0.0
      %v2086 = vmax.f32 %v1702, 0.0
      %v2087 = vmax.f32 %v1705, 0.0
      %v2088 = vmax.f32 %v1710, 0.0
      %v2089 = vmax.f32 %v1713, 0.0
      %v2090 = vmax.f32 %v1718, 0.0
      %v2091 = vmax.f32 %v1721, 0.0
      %v2092 = vmax.f32 %v1726, 0.0
      %v2093 = vmax.f32 %v1729, 0.0
      %v2094 = vmax.f32 %v1734, 0.0
      %v2095 = vmax.f32 %v1737, 0.0
      %v2096 = vmax.f32 %v1742, 0.0
      %v2097 = vmax.f32 %v1745, 0.0
      %v2098 = vmax.f32 %v1750, 0.0
      %v2099 = vmax.f32 %v1753, 0.0
      %v2100 = vmax.f32 %v1758, 0.0
      %v2101 = vmax.f32 %v1761, 0.0
      %v2102 = vmax.f32 %v1766, 0.0
      %v2103 = vmax.f32 %v1769, 0.0
      %v2104 = vmax.f32 %v1774, 0.0
      %v2105 = vmax.f32 %v1777, 0.0
      %v2106 = vmax.f32 %v1782, 0.0
      %v2107 = vmax.f32 %v1785, 0.0
      %v2108 = vmax.f32 %v1790, 0.0
      %v2109 = vmax.f32 %v1793, 0.0
      %v2110 = vmax.f32 %v1798, 0.0
      %v2111 = vmax.f32 %v1801, 0.0
      %v2112 = vmax.f32 %v1806, 0.0
      %v2113 = vmax.f32 %v1809, 0.0
      %v2114 = vmax.f32 %v1814, 0.0
      %v2115 = vmax.f32 %v1817, 0.0
      %v2116 = vmax.f32 %v1822, 0.0
      %v2117 = vmax.f32 %v1825, 0.0
      %v2118 = vmax.f32 %v1830, 0.0
      %v2119 = vmax.f32 %v1833, 0.0
      %v2120 = vmax.f32 %v1838, 0.0
      %v2121 = vmax.f32 %v1841, 0.0
      %v2122 = vmax.f32 %v1846, 0.0
      %v2123 = vmax.f32 %v1849, 0.0
      %v2124 = vmax.f32 %v1854, 0.0
      %v2125 = vmax.f32 %v1857, 0.0
      %v2126 = vmax.f32 %v1862, 0.0
      %v2127 = vmax.f32 %v1865, 0.0
      %v2128 = vmax.f32 %v1870, 0.0
      %v2129 = vmax.f32 %v1873, 0.0
      %v2130 = vmax.f32 %v1878, 0.0
      %v2131 = vmax.f32 %v1881, 0.0
      %v2132 = vmax.f32 %v1886, 0.0
      %v2133 = vmax.f32 %v1889, 0.0
      %v2134 = vmax.f32 %v1894, 0.0
      %v2135 = vmax.f32 %v1897, 0.0
      %v2136 = vmax.f32 %v1902, 0.0
      %v2137 = vmax.f32 %v1905, 0.0
      %v2138 = vmax.f32 %v1910, 0.0
      %v2139 = vmax.f32 %v1913, 0.0
      %v2140 = vmax.f32 %v1918, 0.0
      %v2141 = vmax.f32 %v1921, 0.0
      %v2142 = vmax.f32 %v1926, 0.0
      %v2143 = vmax.f32 %v1929, 0.0
      %v2144 = vmax.f32 %v1934, 0.0
      %v2145 = vmax.f32 %v1937, 0.0
      %v2146 = vmax.f32 %v1942, 0.0
      %v2147 = vmax.f32 %v1945, 0.0
      %v2148 = vmax.f32 %v1950, 0.0
      %v2149 = vmax.f32 %v1953, 0.0
      %v2150 = vmax.f32 %v1958, 0.0
      %v2151 = vmax.f32 %v1961, 0.0
      %v2152 = vmax.f32 %v1966, 0.0
      %v2153 = vmax.f32 %v1969, 0.0
      %v2154 = vmax.f32 %v1974, 0.0
      %v2155 = vmax.f32 %v1977, 0.0
      %v2156 = vmax.f32 %v1982, 0.0
      %v2157 = vmax.f32 %v1985, 0.0
      %v2158 = vmax.f32 %v1990, 0.0
      %v2159 = vmax.f32 %v1993, 0.0
      %v2160 = vmax.f32 %v1998, 0.0
      %v2161 = vmax.f32 %v2001, 0.0
      %v2162 = vmax.f32 %v2006, 0.0
      %v2163 = vmax.f32 %v2009, 0.0
      %v2164 = vmax.f32 %v2014, 0.0
      %v2165 = vmax.f32 %v2017, 0.0
      %v2166 = vmax.f32 %v2022, 0.0
      %v2167 = vmax.f32 %v2025, 0.0
      %v2168 = vmax.f32 %v2030, 0.0
      %v2169 = vmax.f32 %v2033, 0.0
      %v2170 = vmax.f32 %v2038, 0.0
      %v2171 = vmax.f32 %v2041, 0.0
      %v2172 = vpack.c.bf16 %v2045, %v2044
      %v2173 = vpack.c.bf16 %v2047, %v2046
      %v2174 = vpack.c.bf16 %v2049, %v2048
      %v2175 = vpack.c.bf16 %v2051, %v2050
      %v2176 = vpack.c.bf16 %v2053, %v2052
      %v2177 = vpack.c.bf16 %v2055, %v2054
      %v2178 = vpack.c.bf16 %v2057, %v2056
      %v2179 = vpack.c.bf16 %v2059, %v2058
      %v2180 = vpack.c.bf16 %v2061, %v2060
      %v2181 = vpack.c.bf16 %v2063, %v2062
      %v2182 = vpack.c.bf16 %v2065, %v2064
      %v2183 = vpack.c.bf16 %v2067, %v2066
      %v2184 = vpack.c.bf16 %v2069, %v2068
      %v2185 = vpack.c.bf16 %v2071, %v2070
      %v2186 = vpack.c.bf16 %v2073, %v2072
      %v2187 = vpack.c.bf16 %v2075, %v2074
      %v2188 = vpack.c.bf16 %v2077, %v2076
      %v2189 = vpack.c.bf16 %v2079, %v2078
      %v2190 = vpack.c.bf16 %v2081, %v2080
      %v2191 = vpack.c.bf16 %v2083, %v2082
      %v2192 = vpack.c.bf16 %v2085, %v2084
      %v2193 = vpack.c.bf16 %v2087, %v2086
      %v2194 = vpack.c.bf16 %v2089, %v2088
      %v2195 = vpack.c.bf16 %v2091, %v2090
      %v2196 = vpack.c.bf16 %v2093, %v2092
      %v2197 = vpack.c.bf16 %v2095, %v2094
      %v2198 = vpack.c.bf16 %v2097, %v2096
      %v2199 = vpack.c.bf16 %v2099, %v2098
      %v2200 = vpack.c.bf16 %v2101, %v2100
      %v2201 = vpack.c.bf16 %v2103, %v2102
      %v2202 = vpack.c.bf16 %v2105, %v2104
      %v2203 = vpack.c.bf16 %v2107, %v2106
      %v2204 = vpack.c.bf16 %v2109, %v2108
      %v2205 = vpack.c.bf16 %v2111, %v2110
      %v2206 = vpack.c.bf16 %v2113, %v2112
      %v2207 = vpack.c.bf16 %v2115, %v2114
      %v2208 = vpack.c.bf16 %v2117, %v2116
      %v2209 = vpack.c.bf16 %v2119, %v2118
      %v2210 = vpack.c.bf16 %v2121, %v2120
      %v2211 = vpack.c.bf16 %v2123, %v2122
      %v2212 = vpack.c.bf16 %v2125, %v2124
      %v2213 = vpack.c.bf16 %v2127, %v2126
      %v2214 = vpack.c.bf16 %v2129, %v2128
      %v2215 = vpack.c.bf16 %v2131, %v2130
      %v2216 = vpack.c.bf16 %v2133, %v2132
      %v2217 = vpack.c.bf16 %v2135, %v2134
      %v2218 = vpack.c.bf16 %v2137, %v2136
      %v2219 = vpack.c.bf16 %v2139, %v2138
      %v2220 = vpack.c.bf16 %v2141, %v2140
      %v2221 = vpack.c.bf16 %v2143, %v2142
      %v2222 = vpack.c.bf16 %v2145, %v2144
      %v2223 = vpack.c.bf16 %v2147, %v2146
      %v2224 = vpack.c.bf16 %v2149, %v2148
      %v2225 = vpack.c.bf16 %v2151, %v2150
      %v2226 = vpack.c.bf16 %v2153, %v2152
      %v2227 = vpack.c.bf16 %v2155, %v2154
      %v2228 = vpack.c.bf16 %v2157, %v2156
      %v2229 = vpack.c.bf16 %v2159, %v2158
      %v2230 = vpack.c.bf16 %v2161, %v2160
      %v2231 = vpack.c.bf16 %v2163, %v2162
      %v2232 = vpack.c.bf16 %v2165, %v2164
      %v2233 = vpack.c.bf16 %v2167, %v2166
      %v2234 = vpack.c.bf16 %v2169, %v2168
      %v2235 = vpack.c.bf16 %v2171, %v2170
      %v2236 = vld [vmem:[%s5] sm:$0xf]
      %v2237 = vld [vmem:[%s5 + $0x4] sm:$0xf]
      %v2238 = vld [vmem:[%s5 + $0x8] sm:$0xf]
      %v2239 = vld [vmem:[%s5 + $0xc] sm:$0xf]
      %v2240 = vld [vmem:[%s5 + $0x10] sm:$0xf]
      %v2241 = vld [vmem:[%s5 + $0x14] sm:$0xf]
      %v2242 = vld [vmem:[%s5 + $0x18] sm:$0xf]
      %v2243 = vld [vmem:[%s5 + $0x1c] sm:$0xf]
      %v2244 = vld [vmem:[%s5 + $0x20] sm:$0xf]
      %v2245 = vld [vmem:[%s5 + $0x24] sm:$0xf]
      %v2246 = vld [vmem:[%s5 + $0x28] sm:$0xf]
      %v2247 = vld [vmem:[%s5 + $0x2c] sm:$0xf]
      %v2248 = vld [vmem:[%s5 + $0x30] sm:$0xf]
      %v2249 = vld [vmem:[%s5 + $0x34] sm:$0xf]
      %v2250 = vld [vmem:[%s5 + $0x38] sm:$0xf]
      %v2251 = vld [vmem:[%s5 + $0x3c] sm:$0xf]
      %v2252 = vld [vmem:[%s6] sm:$0x1]
      %v2254 = vlaneseq
      %v2255 = vshrl.u32 %v2254, 7
      %v2256 = vsub.s32 0, %v2255
      %v2257 = vrot.slane %v2252, %v2256
      %v2275 = vunpack.c.l.b16 %v2236
      %v2276 = vunpack.c.l.b16 %v2237
      %v2277 = vunpack.c.l.b16 %v2238
      %v2278 = vunpack.c.l.b16 %v2239
      %v2279 = vunpack.c.l.b16 %v2240
      %v2280 = vunpack.c.l.b16 %v2241
      %v2281 = vunpack.c.l.b16 %v2242
      %v2282 = vunpack.c.l.b16 %v2243
      %v2283 = vunpack.c.l.b16 %v2244
      %v2284 = vunpack.c.l.b16 %v2245
      %v2285 = vunpack.c.l.b16 %v2246
      %v2286 = vunpack.c.l.b16 %v2247
      %v2287 = vunpack.c.l.b16 %v2248
      %v2288 = vunpack.c.l.b16 %v2249
      %v2289 = vunpack.c.l.b16 %v2250
      %v2290 = vunpack.c.l.b16 %v2251
      %v2291 = vpack.c.b16 %v2276, %v2275
      %v2292 = vpack.c.b16 %v2278, %v2277
      %v2293 = vpack.c.b16 %v2280, %v2279
      %v2294 = vpack.c.b16 %v2282, %v2281
      %v2295 = vpack.c.b16 %v2284, %v2283
      %v2296 = vpack.c.b16 %v2286, %v2285
      %v2297 = vpack.c.b16 %v2288, %v2287
      %v2298 = vpack.c.b16 %v2290, %v2289
      %2307 = vmatprep.subr.bf16.mxu0 0
      %2308 = vmatpush1.bf16.msra.mxu0 %v2291
      %2309 = vmatprep.subr.bf16.mxu0 0
      %2310 = vmatpush1.bf16.msra.mxu0 %v2292
      %2311 = vmatprep.subr.bf16.mxu0 0
      %2312 = vmatpush1.bf16.msra.mxu0 %v2293
      %2313 = vmatprep.subr.bf16.mxu0 0
      %2314 = vmatpush1.bf16.msra.mxu0 %v2294
      %2315 = vmatprep.subr.bf16.mxu0 0
      %2316 = vmatpush1.bf16.msra.mxu0 %v2295
      %2317 = vmatprep.subr.bf16.mxu0 0
      %2318 = vmatpush1.bf16.msra.mxu0 %v2296
      %2319 = vmatprep.subr.bf16.mxu0 0
      %2320 = vmatpush1.bf16.msra.mxu0 %v2297
      %2321 = vmatprep.subr.bf16.mxu0 0
      %2322 = vmatpush1.bf16.msra.mxu0 %v2298
      %2323 = vmatprep.subr.bf16.mxu0 0
      %2324 = vmatpush1.bf16.msra.mxu0 0
      %2325 = vmatprep.subr.bf16.mxu0 0
      %2326 = vmatpush1.bf16.msra.mxu0 0
      %2327 = vmatprep.subr.bf16.mxu0 0
      %2328 = vmatpush1.bf16.msra.mxu0 0
      %2329 = vmatprep.subr.bf16.mxu0 0
      %2330 = vmatpush1.bf16.msra.mxu0 0
      %2331 = vmatprep.subr.bf16.mxu0 0
      %2332 = vmatpush1.bf16.msra.mxu0 0
      %2333 = vmatprep.subr.bf16.mxu0 0
      %2334 = vmatpush1.bf16.msra.mxu0 0
      %2335 = vmatprep.subr.bf16.mxu0 0
      %2336 = vmatpush1.bf16.msra.mxu0 0
      %2337 = vmatprep.subr.bf16.mxu0 0
      %2338 = vmatpush1.bf16.msra.mxu0 0
      %2339 = vmatprep.mubr.bf16.mxu0 0
      %2340 = vmatmul.mubr.bf16.gmra.mrb[0].mxu0 %v2172
      %v2341 = vpop.f32.mrb[0].mxu0
      %v2342 = vadd.f32 %v2257, %v2341
      %v2343 = vpop.f32.mrb[0].mxu0
      %v2344 = vpop.f32.mrb[0].mxu0
      %v2345 = vadd.f32 %v2257, %v2344
      %v2346 = vpop.f32.mrb[0].mxu0
      %2347 = vmatprep.mubr.bf16.mxu0 0
      %2348 = vmatmul.mubr.bf16.gmra.mrb[0].mxu0 %v2173
      %v2349 = vpop.f32.mrb[0].mxu0
      %v2350 = vadd.f32 %v2257, %v2349
      %v2351 = vpop.f32.mrb[0].mxu0
      %v2352 = vpop.f32.mrb[0].mxu0
      %v2353 = vadd.f32 %v2257, %v2352
      %v2354 = vpop.f32.mrb[0].mxu0
      %2355 = vmatprep.mubr.bf16.mxu0 0
      %2356 = vmatmul.mubr.bf16.gmra.mrb[0].mxu0 %v2174
      %v2357 = vpop.f32.mrb[0].mxu0
      %v2358 = vadd.f32 %v2257, %v2357
      %v2359 = vpop.f32.mrb[0].mxu0
      %v2360 = vpop.f32.mrb[0].mxu0
      %v2361 = vadd.f32 %v2257, %v2360
      %v2362 = vpop.f32.mrb[0].mxu0
      %2363 = vmatprep.mubr.bf16.mxu0 0
      %2364 = vmatmul.mubr.bf16.gmra.mrb[0].mxu0 %v2175
      %v2365 = vpop.f32.mrb[0].mxu0
      %v2366 = vadd.f32 %v2257, %v2365
      %v2367 = vpop.f32.mrb[0].mxu0
      %v2368 = vpop.f32.mrb[0].mxu0
      %v2369 = vadd.f32 %v2257, %v2368
      %v2370 = vpop.f32.mrb[0].mxu0
      %2371 = vmatprep.mubr.bf16.mxu0 0
      %2372 = vmatmul.mubr.bf16.gmra.mrb[0].mxu0 %v2176
      %v2373 = vpop.f32.mrb[0].mxu0
      %v2374 = vadd.f32 %v2257, %v2373
      %v2375 = vpop.f32.mrb[0].mxu0
      %v2376 = vpop.f32.mrb[0].mxu0
      %v2377 = vadd.f32 %v2257, %v2376
      %v2378 = vpop.f32.mrb[0].mxu0
      %2379 = vmatprep.mubr.bf16.mxu0 0
      %2380 = vmatmul.mubr.bf16.gmra.mrb[0].mxu0 %v2177
      %v2381 = vpop.f32.mrb[0].mxu0
      %v2382 = vadd.f32 %v2257, %v2381
      %v2383 = vpop.f32.mrb[0].mxu0
      %v2384 = vpop.f32.mrb[0].mxu0
      %v2385 = vadd.f32 %v2257, %v2384
      %v2386 = vpop.f32.mrb[0].mxu0
      %2387 = vmatprep.mubr.bf16.mxu0 0
      %2388 = vmatmul.mubr.bf16.gmra.mrb[0].mxu0 %v2178
      %v2389 = vpop.f32.mrb[0].mxu0
      %v2390 = vadd.f32 %v2257, %v2389
      %v2391 = vpop.f32.mrb[0].mxu0
      %v2392 = vpop.f32.mrb[0].mxu0
      %v2393 = vadd.f32 %v2257, %v2392
      %v2394 = vpop.f32.mrb[0].mxu0
      %2395 = vmatprep.mubr.bf16.mxu0 0
      %2396 = vmatmul.mubr.bf16.gmra.mrb[0].mxu0 %v2179
      %v2397 = vpop.f32.mrb[0].mxu0
      %v2398 = vadd.f32 %v2257, %v2397
      %v2399 = vpop.f32.mrb[0].mxu0
      %v2400 = vpop.f32.mrb[0].mxu0
      %v2401 = vadd.f32 %v2257, %v2400
      %v2402 = vpop.f32.mrb[0].mxu0
      %2403 = vmatprep.mubr.bf16.mxu0 0
      %2404 = vmatmul.mubr.bf16.gmra.mrb[0].mxu0 %v2180
      %v2405 = vpop.f32.mrb[0].mxu0
      %v2406 = vadd.f32 %v2257, %v2405
      %v2407 = vpop.f32.mrb[0].mxu0
      %v2408 = vpop.f32.mrb[0].mxu0
      %v2409 = vadd.f32 %v2257, %v2408
      %v2410 = vpop.f32.mrb[0].mxu0
      %2411 = vmatprep.mubr.bf16.mxu0 0
      %2412 = vmatmul.mubr.bf16.gmra.mrb[0].mxu0 %v2181
      %v2413 = vpop.f32.mrb[0].mxu0
      %v2414 = vadd.f32 %v2257, %v2413
      %v2415 = vpop.f32.mrb[0].mxu0
      %v2416 = vpop.f32.mrb[0].mxu0
      %v2417 = vadd.f32 %v2257, %v2416
      %v2418 = vpop.f32.mrb[0].mxu0
      %2419 = vmatprep.mubr.bf16.mxu0 0
      %2420 = vmatmul.mubr.bf16.gmra.mrb[0].mxu0 %v2182
      %v2421 = vpop.f32.mrb[0].mxu0
      %v2422 = vadd.f32 %v2257, %v2421
      %v2423 = vpop.f32.mrb[0].mxu0
      %v2424 = vpop.f32.mrb[0].mxu0
      %v2425 = vadd.f32 %v2257, %v2424
      %v2426 = vpop.f32.mrb[0].mxu0
      %2427 = vmatprep.mubr.bf16.mxu0 0
      %2428 = vmatmul.mubr.bf16.gmra.mrb[0].mxu0 %v2183
      %v2429 = vpop.f32.mrb[0].mxu0
      %v2430 = vadd.f32 %v2257, %v2429
      %v2431 = vpop.f32.mrb[0].mxu0
      %v2432 = vpop.f32.mrb[0].mxu0
      %v2433 = vadd.f32 %v2257, %v2432
      %v2434 = vpop.f32.mrb[0].mxu0
      %2435 = vmatprep.mubr.bf16.mxu0 0
      %2436 = vmatmul.mubr.bf16.gmra.mrb[0].mxu0 %v2184
      %v2437 = vpop.f32.mrb[0].mxu0
      %v2438 = vadd.f32 %v2257, %v2437
      %v2439 = vpop.f32.mrb[0].mxu0
      %v2440 = vpop.f32.mrb[0].mxu0
      %v2441 = vadd.f32 %v2257, %v2440
      %v2442 = vpop.f32.mrb[0].mxu0
      %2443 = vmatprep.mubr.bf16.mxu0 0
      %2444 = vmatmul.mubr.bf16.gmra.mrb[0].mxu0 %v2185
      %v2445 = vpop.f32.mrb[0].mxu0
      %v2446 = vadd.f32 %v2257, %v2445
      %v2447 = vpop.f32.mrb[0].mxu0
      %v2448 = vpop.f32.mrb[0].mxu0
      %v2449 = vadd.f32 %v2257, %v2448
      %v2450 = vpop.f32.mrb[0].mxu0
      %2451 = vmatprep.mubr.bf16.mxu0 0
      %2452 = vmatmul.mubr.bf16.gmra.mrb[0].mxu0 %v2186
      %v2453 = vpop.f32.mrb[0].mxu0
      %v2454 = vadd.f32 %v2257, %v2453
      %v2455 = vpop.f32.mrb[0].mxu0
      %v2456 = vpop.f32.mrb[0].mxu0
      %v2457 = vadd.f32 %v2257, %v2456
      %v2458 = vpop.f32.mrb[0].mxu0
      %2459 = vmatprep.mubr.bf16.mxu0 0
      %2460 = vmatmul.mubr.bf16.gmra.mrb[0].mxu0 %v2187
      %v2461 = vpop.f32.mrb[0].mxu0
      %v2462 = vadd.f32 %v2257, %v2461
      %v2463 = vpop.f32.mrb[0].mxu0
      %v2464 = vpop.f32.mrb[0].mxu0
      %v2465 = vadd.f32 %v2257, %v2464
      %v2466 = vpop.f32.mrb[0].mxu0
      %2467 = vmatprep.mubr.bf16.mxu0 0
      %2468 = vmatmul.mubr.bf16.gmra.mrb[0].mxu0 %v2188
      %v2469 = vpop.f32.mrb[0].mxu0
      %v2470 = vadd.f32 %v2257, %v2469
      %v2471 = vpop.f32.mrb[0].mxu0
      %v2472 = vpop.f32.mrb[0].mxu0
      %v2473 = vadd.f32 %v2257, %v2472
      %v2474 = vpop.f32.mrb[0].mxu0
      %2475 = vmatprep.mubr.bf16.mxu0 0
      %2476 = vmatmul.mubr.bf16.gmra.mrb[0].mxu0 %v2189
      %v2477 = vpop.f32.mrb[0].mxu0
      %v2478 = vadd.f32 %v2257, %v2477
      %v2479 = vpop.f32.mrb[0].mxu0
      %v2480 = vpop.f32.mrb[0].mxu0
      %v2481 = vadd.f32 %v2257, %v2480
      %v2482 = vpop.f32.mrb[0].mxu0
      %2483 = vmatprep.mubr.bf16.mxu0 0
      %2484 = vmatmul.mubr.bf16.gmra.mrb[0].mxu0 %v2190
      %v2485 = vpop.f32.mrb[0].mxu0
      %v2486 = vadd.f32 %v2257, %v2485
      %v2487 = vpop.f32.mrb[0].mxu0
      %v2488 = vpop.f32.mrb[0].mxu0
      %v2489 = vadd.f32 %v2257, %v2488
      %v2490 = vpop.f32.mrb[0].mxu0
      %2491 = vmatprep.mubr.bf16.mxu0 0
      %2492 = vmatmul.mubr.bf16.gmra.mrb[0].mxu0 %v2191
      %v2493 = vpop.f32.mrb[0].mxu0
      %v2494 = vadd.f32 %v2257, %v2493
      %v2495 = vpop.f32.mrb[0].mxu0
      %v2496 = vpop.f32.mrb[0].mxu0
      %v2497 = vadd.f32 %v2257, %v2496
      %v2498 = vpop.f32.mrb[0].mxu0
      %2499 = vmatprep.mubr.bf16.mxu0 0
      %2500 = vmatmul.mubr.bf16.gmra.mrb[0].mxu0 %v2192
      %v2501 = vpop.f32.mrb[0].mxu0
      %v2502 = vadd.f32 %v2257, %v2501
      %v2503 = vpop.f32.mrb[0].mxu0
      %v2504 = vpop.f32.mrb[0].mxu0
      %v2505 = vadd.f32 %v2257, %v2504
      %v2506 = vpop.f32.mrb[0].mxu0
      %2507 = vmatprep.mubr.bf16.mxu0 0
      %2508 = vmatmul.mubr.bf16.gmra.mrb[0].mxu0 %v2193
      %v2509 = vpop.f32.mrb[0].mxu0
      %v2510 = vadd.f32 %v2257, %v2509
      %v2511 = vpop.f32.mrb[0].mxu0
      %v2512 = vpop.f32.mrb[0].mxu0
      %v2513 = vadd.f32 %v2257, %v2512
      %v2514 = vpop.f32.mrb[0].mxu0
      %2515 = vmatprep.mubr.bf16.mxu0 0
      %2516 = vmatmul.mubr.bf16.gmra.mrb[0].mxu0 %v2194
      %v2517 = vpop.f32.mrb[0].mxu0
      %v2518 = vadd.f32 %v2257, %v2517
      %v2519 = vpop.f32.mrb[0].mxu0
      %v2520 = vpop.f32.mrb[0].mxu0
      %v2521 = vadd.f32 %v2257, %v2520
      %v2522 = vpop.f32.mrb[0].mxu0
      %2523 = vmatprep.mubr.bf16.mxu0 0
      %2524 = vmatmul.mubr.bf16.gmra.mrb[0].mxu0 %v2195
      %v2525 = vpop.f32.mrb[0].mxu0
      %v2526 = vadd.f32 %v2257, %v2525
      %v2527 = vpop.f32.mrb[0].mxu0
      %v2528 = vpop.f32.mrb[0].mxu0
      %v2529 = vadd.f32 %v2257, %v2528
      %v2530 = vpop.f32.mrb[0].mxu0
      %2531 = vmatprep.mubr.bf16.mxu0 0
      %2532 = vmatmul.mubr.bf16.gmra.mrb[0].mxu0 %v2196
      %v2533 = vpop.f32.mrb[0].mxu0
      %v2534 = vadd.f32 %v2257, %v2533
      %v2535 = vpop.f32.mrb[0].mxu0
      %v2536 = vpop.f32.mrb[0].mxu0
      %v2537 = vadd.f32 %v2257, %v2536
      %v2538 = vpop.f32.mrb[0].mxu0
      %2539 = vmatprep.mubr.bf16.mxu0 0
      %2540 = vmatmul.mubr.bf16.gmra.mrb[0].mxu0 %v2197
      %v2541 = vpop.f32.mrb[0].mxu0
      %v2542 = vadd.f32 %v2257, %v2541
      %v2543 = vpop.f32.mrb[0].mxu0
      %v2544 = vpop.f32.mrb[0].mxu0
      %v2545 = vadd.f32 %v2257, %v2544
      %v2546 = vpop.f32.mrb[0].mxu0
      %2547 = vmatprep.mubr.bf16.mxu0 0
      %2548 = vmatmul.mubr.bf16.gmra.mrb[0].mxu0 %v2198
      %v2549 = vpop.f32.mrb[0].mxu0
      %v2550 = vadd.f32 %v2257, %v2549
      %v2551 = vpop.f32.mrb[0].mxu0
      %v2552 = vpop.f32.mrb[0].mxu0
      %v2553 = vadd.f32 %v2257, %v2552
      %v2554 = vpop.f32.mrb[0].mxu0
      %2555 = vmatprep.mubr.bf16.mxu0 0
      %2556 = vmatmul.mubr.bf16.gmra.mrb[0].mxu0 %v2199
      %v2557 = vpop.f32.mrb[0].mxu0
      %v2558 = vadd.f32 %v2257, %v2557
      %v2559 = vpop.f32.mrb[0].mxu0
      %v2560 = vpop.f32.mrb[0].mxu0
      %v2561 = vadd.f32 %v2257, %v2560
      %v2562 = vpop.f32.mrb[0].mxu0
      %2563 = vmatprep.mubr.bf16.mxu0 0
      %2564 = vmatmul.mubr.bf16.gmra.mrb[0].mxu0 %v2200
      %v2565 = vpop.f32.mrb[0].mxu0
      %v2566 = vadd.f32 %v2257, %v2565
      %v2567 = vpop.f32.mrb[0].mxu0
      %v2568 = vpop.f32.mrb[0].mxu0
      %v2569 = vadd.f32 %v2257, %v2568
      %v2570 = vpop.f32.mrb[0].mxu0
      %2571 = vmatprep.mubr.bf16.mxu0 0
      %2572 = vmatmul.mubr.bf16.gmra.mrb[0].mxu0 %v2201
      %v2573 = vpop.f32.mrb[0].mxu0
      %v2574 = vadd.f32 %v2257, %v2573
      %v2575 = vpop.f32.mrb[0].mxu0
      %v2576 = vpop.f32.mrb[0].mxu0
      %v2577 = vadd.f32 %v2257, %v2576
      %v2578 = vpop.f32.mrb[0].mxu0
      %2579 = vmatprep.mubr.bf16.mxu0 0
      %2580 = vmatmul.mubr.bf16.gmra.mrb[0].mxu0 %v2202
      %v2581 = vpop.f32.mrb[0].mxu0
      %v2582 = vadd.f32 %v2257, %v2581
      %v2583 = vpop.f32.mrb[0].mxu0
      %v2584 = vpop.f32.mrb[0].mxu0
      %v2585 = vadd.f32 %v2257, %v2584
      %v2586 = vpop.f32.mrb[0].mxu0
      %2587 = vmatprep.mubr.bf16.mxu0 0
      %2588 = vmatmul.mubr.bf16.gmra.mrb[0].mxu0 %v2203
      %v2589 = vpop.f32.mrb[0].mxu0
      %v2590 = vadd.f32 %v2257, %v2589
      %v2591 = vpop.f32.mrb[0].mxu0
      %v2592 = vpop.f32.mrb[0].mxu0
      %v2593 = vadd.f32 %v2257, %v2592
      %v2594 = vpop.f32.mrb[0].mxu0
      %2595 = vmatprep.mubr.bf16.mxu0 0
      %2596 = vmatmul.mubr.bf16.gmra.mrb[0].mxu0 %v2204
      %v2597 = vpop.f32.mrb[0].mxu0
      %v2598 = vadd.f32 %v2257, %v2597
      %v2599 = vpop.f32.mrb[0].mxu0
      %v2600 = vpop.f32.mrb[0].mxu0
      %v2601 = vadd.f32 %v2257, %v2600
      %v2602 = vpop.f32.mrb[0].mxu0
      %2603 = vmatprep.mubr.bf16.mxu0 0
      %2604 = vmatmul.mubr.bf16.gmra.mrb[0].mxu0 %v2205
      %v2605 = vpop.f32.mrb[0].mxu0
      %v2606 = vadd.f32 %v2257, %v2605
      %v2607 = vpop.f32.mrb[0].mxu0
      %v2608 = vpop.f32.mrb[0].mxu0
      %v2609 = vadd.f32 %v2257, %v2608
      %v2610 = vpop.f32.mrb[0].mxu0
      %2611 = vmatprep.mubr.bf16.mxu0 0
      %2612 = vmatmul.mubr.bf16.gmra.mrb[0].mxu0 %v2206
      %v2613 = vpop.f32.mrb[0].mxu0
      %v2614 = vadd.f32 %v2257, %v2613
      %v2615 = vpop.f32.mrb[0].mxu0
      %v2616 = vpop.f32.mrb[0].mxu0
      %v2617 = vadd.f32 %v2257, %v2616
      %v2618 = vpop.f32.mrb[0].mxu0
      %2619 = vmatprep.mubr.bf16.mxu0 0
      %2620 = vmatmul.mubr.bf16.gmra.mrb[0].mxu0 %v2207
      %v2621 = vpop.f32.mrb[0].mxu0
      %v2622 = vadd.f32 %v2257, %v2621
      %v2623 = vpop.f32.mrb[0].mxu0
      %v2624 = vpop.f32.mrb[0].mxu0
      %v2625 = vadd.f32 %v2257, %v2624
      %v2626 = vpop.f32.mrb[0].mxu0
      %2627 = vmatprep.mubr.bf16.mxu0 0
      %2628 = vmatmul.mubr.bf16.gmra.mrb[0].mxu0 %v2208
      %v2629 = vpop.f32.mrb[0].mxu0
      %v2630 = vadd.f32 %v2257, %v2629
      %v2631 = vpop.f32.mrb[0].mxu0
      %v2632 = vpop.f32.mrb[0].mxu0
      %v2633 = vadd.f32 %v2257, %v2632
      %v2634 = vpop.f32.mrb[0].mxu0
      %2635 = vmatprep.mubr.bf16.mxu0 0
      %2636 = vmatmul.mubr.bf16.gmra.mrb[0].mxu0 %v2209
      %v2637 = vpop.f32.mrb[0].mxu0
      %v2638 = vadd.f32 %v2257, %v2637
      %v2639 = vpop.f32.mrb[0].mxu0
      %v2640 = vpop.f32.mrb[0].mxu0
      %v2641 = vadd.f32 %v2257, %v2640
      %v2642 = vpop.f32.mrb[0].mxu0
      %2643 = vmatprep.mubr.bf16.mxu0 0
      %2644 = vmatmul.mubr.bf16.gmra.mrb[0].mxu0 %v2210
      %v2645 = vpop.f32.mrb[0].mxu0
      %v2646 = vadd.f32 %v2257, %v2645
      %v2647 = vpop.f32.mrb[0].mxu0
      %v2648 = vpop.f32.mrb[0].mxu0
      %v2649 = vadd.f32 %v2257, %v2648
      %v2650 = vpop.f32.mrb[0].mxu0
      %2651 = vmatprep.mubr.bf16.mxu0 0
      %2652 = vmatmul.mubr.bf16.gmra.mrb[0].mxu0 %v2211
      %v2653 = vpop.f32.mrb[0].mxu0
      %v2654 = vadd.f32 %v2257, %v2653
      %v2655 = vpop.f32.mrb[0].mxu0
      %v2656 = vpop.f32.mrb[0].mxu0
      %v2657 = vadd.f32 %v2257, %v2656
      %v2658 = vpop.f32.mrb[0].mxu0
      %2659 = vmatprep.mubr.bf16.mxu0 0
      %2660 = vmatmul.mubr.bf16.gmra.mrb[0].mxu0 %v2212
      %v2661 = vpop.f32.mrb[0].mxu0
      %v2662 = vadd.f32 %v2257, %v2661
      %v2663 = vpop.f32.mrb[0].mxu0
      %v2664 = vpop.f32.mrb[0].mxu0
      %v2665 = vadd.f32 %v2257, %v2664
      %v2666 = vpop.f32.mrb[0].mxu0
      %2667 = vmatprep.mubr.bf16.mxu0 0
      %2668 = vmatmul.mubr.bf16.gmra.mrb[0].mxu0 %v2213
      %v2669 = vpop.f32.mrb[0].mxu0
      %v2670 = vadd.f32 %v2257, %v2669
      %v2671 = vpop.f32.mrb[0].mxu0
      %v2672 = vpop.f32.mrb[0].mxu0
      %v2673 = vadd.f32 %v2257, %v2672
      %v2674 = vpop.f32.mrb[0].mxu0
      %2675 = vmatprep.mubr.bf16.mxu0 0
      %2676 = vmatmul.mubr.bf16.gmra.mrb[0].mxu0 %v2214
      %v2677 = vpop.f32.mrb[0].mxu0
      %v2678 = vadd.f32 %v2257, %v2677
      %v2679 = vpop.f32.mrb[0].mxu0
      %v2680 = vpop.f32.mrb[0].mxu0
      %v2681 = vadd.f32 %v2257, %v2680
      %v2682 = vpop.f32.mrb[0].mxu0
      %2683 = vmatprep.mubr.bf16.mxu0 0
      %2684 = vmatmul.mubr.bf16.gmra.mrb[0].mxu0 %v2215
      %v2685 = vpop.f32.mrb[0].mxu0
      %v2686 = vadd.f32 %v2257, %v2685
      %v2687 = vpop.f32.mrb[0].mxu0
      %v2688 = vpop.f32.mrb[0].mxu0
      %v2689 = vadd.f32 %v2257, %v2688
      %v2690 = vpop.f32.mrb[0].mxu0
      %2691 = vmatprep.mubr.bf16.mxu0 0
      %2692 = vmatmul.mubr.bf16.gmra.mrb[0].mxu0 %v2216
      %v2693 = vpop.f32.mrb[0].mxu0
      %v2694 = vadd.f32 %v2257, %v2693
      %v2695 = vpop.f32.mrb[0].mxu0
      %v2696 = vpop.f32.mrb[0].mxu0
      %v2697 = vadd.f32 %v2257, %v2696
      %v2698 = vpop.f32.mrb[0].mxu0
      %2699 = vmatprep.mubr.bf16.mxu0 0
      %2700 = vmatmul.mubr.bf16.gmra.mrb[0].mxu0 %v2217
      %v2701 = vpop.f32.mrb[0].mxu0
      %v2702 = vadd.f32 %v2257, %v2701
      %v2703 = vpop.f32.mrb[0].mxu0
      %v2704 = vpop.f32.mrb[0].mxu0
      %v2705 = vadd.f32 %v2257, %v2704
      %v2706 = vpop.f32.mrb[0].mxu0
      %2707 = vmatprep.mubr.bf16.mxu0 0
      %2708 = vmatmul.mubr.bf16.gmra.mrb[0].mxu0 %v2218
      %v2709 = vpop.f32.mrb[0].mxu0
      %v2710 = vadd.f32 %v2257, %v2709
      %v2711 = vpop.f32.mrb[0].mxu0
      %v2712 = vpop.f32.mrb[0].mxu0
      %v2713 = vadd.f32 %v2257, %v2712
      %v2714 = vpop.f32.mrb[0].mxu0
      %2715 = vmatprep.mubr.bf16.mxu0 0
      %2716 = vmatmul.mubr.bf16.gmra.mrb[0].mxu0 %v2219
      %v2717 = vpop.f32.mrb[0].mxu0
      %v2718 = vadd.f32 %v2257, %v2717
      %v2719 = vpop.f32.mrb[0].mxu0
      %v2720 = vpop.f32.mrb[0].mxu0
      %v2721 = vadd.f32 %v2257, %v2720
      %v2722 = vpop.f32.mrb[0].mxu0
      %2723 = vmatprep.mubr.bf16.mxu0 0
      %2724 = vmatmul.mubr.bf16.gmra.mrb[0].mxu0 %v2220
      %v2725 = vpop.f32.mrb[0].mxu0
      %v2726 = vadd.f32 %v2257, %v2725
      %v2727 = vpop.f32.mrb[0].mxu0
      %v2728 = vpop.f32.mrb[0].mxu0
      %v2729 = vadd.f32 %v2257, %v2728
      %v2730 = vpop.f32.mrb[0].mxu0
      %2731 = vmatprep.mubr.bf16.mxu0 0
      %2732 = vmatmul.mubr.bf16.gmra.mrb[0].mxu0 %v2221
      %v2733 = vpop.f32.mrb[0].mxu0
      %v2734 = vadd.f32 %v2257, %v2733
      %v2735 = vpop.f32.mrb[0].mxu0
      %v2736 = vpop.f32.mrb[0].mxu0
      %v2737 = vadd.f32 %v2257, %v2736
      %v2738 = vpop.f32.mrb[0].mxu0
      %2739 = vmatprep.mubr.bf16.mxu0 0
      %2740 = vmatmul.mubr.bf16.gmra.mrb[0].mxu0 %v2222
      %v2741 = vpop.f32.mrb[0].mxu0
      %v2742 = vadd.f32 %v2257, %v2741
      %v2743 = vpop.f32.mrb[0].mxu0
      %v2744 = vpop.f32.mrb[0].mxu0
      %v2745 = vadd.f32 %v2257, %v2744
      %v2746 = vpop.f32.mrb[0].mxu0
      %2747 = vmatprep.mubr.bf16.mxu0 0
      %2748 = vmatmul.mubr.bf16.gmra.mrb[0].mxu0 %v2223
      %v2749 = vpop.f32.mrb[0].mxu0
      %v2750 = vadd.f32 %v2257, %v2749
      %v2751 = vpop.f32.mrb[0].mxu0
      %v2752 = vpop.f32.mrb[0].mxu0
      %v2753 = vadd.f32 %v2257, %v2752
      %v2754 = vpop.f32.mrb[0].mxu0
      %2755 = vmatprep.mubr.bf16.mxu0 0
      %2756 = vmatmul.mubr.bf16.gmra.mrb[0].mxu0 %v2224
      %v2757 = vpop.f32.mrb[0].mxu0
      %v2758 = vadd.f32 %v2257, %v2757
      %v2759 = vpop.f32.mrb[0].mxu0
      %v2760 = vpop.f32.mrb[0].mxu0
      %v2761 = vadd.f32 %v2257, %v2760
      %v2762 = vpop.f32.mrb[0].mxu0
      %2763 = vmatprep.mubr.bf16.mxu0 0
      %2764 = vmatmul.mubr.bf16.gmra.mrb[0].mxu0 %v2225
      %v2765 = vpop.f32.mrb[0].mxu0
      %v2766 = vadd.f32 %v2257, %v2765
      %v2767 = vpop.f32.mrb[0].mxu0
      %v2768 = vpop.f32.mrb[0].mxu0
      %v2769 = vadd.f32 %v2257, %v2768
      %v2770 = vpop.f32.mrb[0].mxu0
      %2771 = vmatprep.mubr.bf16.mxu0 0
      %2772 = vmatmul.mubr.bf16.gmra.mrb[0].mxu0 %v2226
      %v2773 = vpop.f32.mrb[0].mxu0
      %v2774 = vadd.f32 %v2257, %v2773
      %v2775 = vpop.f32.mrb[0].mxu0
      %v2776 = vpop.f32.mrb[0].mxu0
      %v2777 = vadd.f32 %v2257, %v2776
      %v2778 = vpop.f32.mrb[0].mxu0
      %2779 = vmatprep.mubr.bf16.mxu0 0
      %2780 = vmatmul.mubr.bf16.gmra.mrb[0].mxu0 %v2227
      %v2781 = vpop.f32.mrb[0].mxu0
      %v2782 = vadd.f32 %v2257, %v2781
      %v2783 = vpop.f32.mrb[0].mxu0
      %v2784 = vpop.f32.mrb[0].mxu0
      %v2785 = vadd.f32 %v2257, %v2784
      %v2786 = vpop.f32.mrb[0].mxu0
      %2787 = vmatprep.mubr.bf16.mxu0 0
      %2788 = vmatmul.mubr.bf16.gmra.mrb[0].mxu0 %v2228
      %v2789 = vpop.f32.mrb[0].mxu0
      %v2790 = vadd.f32 %v2257, %v2789
      %v2791 = vpop.f32.mrb[0].mxu0
      %v2792 = vpop.f32.mrb[0].mxu0
      %v2793 = vadd.f32 %v2257, %v2792
      %v2794 = vpop.f32.mrb[0].mxu0
      %2795 = vmatprep.mubr.bf16.mxu0 0
      %2796 = vmatmul.mubr.bf16.gmra.mrb[0].mxu0 %v2229
      %v2797 = vpop.f32.mrb[0].mxu0
      %v2798 = vadd.f32 %v2257, %v2797
      %v2799 = vpop.f32.mrb[0].mxu0
      %v2800 = vpop.f32.mrb[0].mxu0
      %v2801 = vadd.f32 %v2257, %v2800
      %v2802 = vpop.f32.mrb[0].mxu0
      %2803 = vmatprep.mubr.bf16.mxu0 0
      %2804 = vmatmul.mubr.bf16.gmra.mrb[0].mxu0 %v2230
      %v2805 = vpop.f32.mrb[0].mxu0
      %v2806 = vadd.f32 %v2257, %v2805
      %v2807 = vpop.f32.mrb[0].mxu0
      %v2808 = vpop.f32.mrb[0].mxu0
      %v2809 = vadd.f32 %v2257, %v2808
      %v2810 = vpop.f32.mrb[0].mxu0
      %2811 = vmatprep.mubr.bf16.mxu0 0
      %2812 = vmatmul.mubr.bf16.gmra.mrb[0].mxu0 %v2231
      %v2813 = vpop.f32.mrb[0].mxu0
      %v2814 = vadd.f32 %v2257, %v2813
      %v2815 = vpop.f32.mrb[0].mxu0
      %v2816 = vpop.f32.mrb[0].mxu0
      %v2817 = vadd.f32 %v2257, %v2816
      %v2818 = vpop.f32.mrb[0].mxu0
      %2819 = vmatprep.mubr.bf16.mxu0 0
      %2820 = vmatmul.mubr.bf16.gmra.mrb[0].mxu0 %v2232
      %v2821 = vpop.f32.mrb[0].mxu0
      %v2822 = vadd.f32 %v2257, %v2821
      %v2823 = vpop.f32.mrb[0].mxu0
      %v2824 = vpop.f32.mrb[0].mxu0
      %v2825 = vadd.f32 %v2257, %v2824
      %v2826 = vpop.f32.mrb[0].mxu0
      %2827 = vmatprep.mubr.bf16.mxu0 0
      %2828 = vmatmul.mubr.bf16.gmra.mrb[0].mxu0 %v2233
      %v2829 = vpop.f32.mrb[0].mxu0
      %v2830 = vadd.f32 %v2257, %v2829
      %v2831 = vpop.f32.mrb[0].mxu0
      %v2832 = vpop.f32.mrb[0].mxu0
      %v2833 = vadd.f32 %v2257, %v2832
      %v2834 = vpop.f32.mrb[0].mxu0
      %2835 = vmatprep.mubr.bf16.mxu0 0
      %2836 = vmatmul.mubr.bf16.gmra.mrb[0].mxu0 %v2234
      %v2837 = vpop.f32.mrb[0].mxu0
      %v2838 = vadd.f32 %v2257, %v2837
      %v2839 = vpop.f32.mrb[0].mxu0
      %v2840 = vpop.f32.mrb[0].mxu0
      %v2841 = vadd.f32 %v2257, %v2840
      %v2842 = vpop.f32.mrb[0].mxu0
      %2843 = vmatprep.mubr.bf16.mxu0 0
      %2844 = vmatmul.mubr.bf16.gmra.mrb[0].mxu0 %v2235
      %v2845 = vpop.f32.mrb[0].mxu0
      %v2846 = vadd.f32 %v2257, %v2845
      %v2847 = vpop.f32.mrb[0].mxu0
      %v2848 = vpop.f32.mrb[0].mxu0
      %v2849 = vadd.f32 %v2257, %v2848
      %v2850 = vpop.f32.mrb[0].mxu0
      %2851 = vdwg.mxu0
      %2852 = vmax.xlane.f32.xlu0 %v2342
      %v2853 = vpop.xlane.xlu0 %2852
      %2854 = vmax.xlane.f32.xlu0 %v2345
      %v2855 = vpop.xlane.xlu0 %2854
      %2856 = vmax.xlane.f32.xlu0 %v2350
      %v2857 = vpop.xlane.xlu0 %2856
      %2858 = vmax.xlane.f32.xlu0 %v2353
      %v2859 = vpop.xlane.xlu0 %2858
      %2860 = vmax.xlane.f32.xlu0 %v2358
      %v2861 = vpop.xlane.xlu0 %2860
      %2862 = vmax.xlane.f32.xlu0 %v2361
      %v2863 = vpop.xlane.xlu0 %2862
      %2864 = vmax.xlane.f32.xlu0 %v2366
      %v2865 = vpop.xlane.xlu0 %2864
      %2866 = vmax.xlane.f32.xlu0 %v2369
      %v2867 = vpop.xlane.xlu0 %2866
      %2868 = vmax.xlane.f32.xlu0 %v2374
      %v2869 = vpop.xlane.xlu0 %2868
      %2870 = vmax.xlane.f32.xlu0 %v2377
      %v2871 = vpop.xlane.xlu0 %2870
      %2872 = vmax.xlane.f32.xlu0 %v2382
      %v2873 = vpop.xlane.xlu0 %2872
      %2874 = vmax.xlane.f32.xlu0 %v2385
      %v2875 = vpop.xlane.xlu0 %2874
      %2876 = vmax.xlane.f32.xlu0 %v2390
      %v2877 = vpop.xlane.xlu0 %2876
      %2878 = vmax.xlane.f32.xlu0 %v2393
      %v2879 = vpop.xlane.xlu0 %2878
      %2880 = vmax.xlane.f32.xlu0 %v2398
      %v2881 = vpop.xlane.xlu0 %2880
      %2882 = vmax.xlane.f32.xlu0 %v2401
      %v2883 = vpop.xlane.xlu0 %2882
      %2884 = vmax.xlane.f32.xlu0 %v2406
      %v2885 = vpop.xlane.xlu0 %2884
      %2886 = vmax.xlane.f32.xlu0 %v2409
      %v2887 = vpop.xlane.xlu0 %2886
      %2888 = vmax.xlane.f32.xlu0 %v2414
      %v2889 = vpop.xlane.xlu0 %2888
      %2890 = vmax.xlane.f32.xlu0 %v2417
      %v2891 = vpop.xlane.xlu0 %2890
      %2892 = vmax.xlane.f32.xlu0 %v2422
      %v2893 = vpop.xlane.xlu0 %2892
      %2894 = vmax.xlane.f32.xlu0 %v2425
      %v2895 = vpop.xlane.xlu0 %2894
      %2896 = vmax.xlane.f32.xlu0 %v2430
      %v2897 = vpop.xlane.xlu0 %2896
      %2898 = vmax.xlane.f32.xlu0 %v2433
      %v2899 = vpop.xlane.xlu0 %2898
      %2900 = vmax.xlane.f32.xlu0 %v2438
      %v2901 = vpop.xlane.xlu0 %2900
      %2902 = vmax.xlane.f32.xlu0 %v2441
      %v2903 = vpop.xlane.xlu0 %2902
      %2904 = vmax.xlane.f32.xlu0 %v2446
      %v2905 = vpop.xlane.xlu0 %2904
      %2906 = vmax.xlane.f32.xlu0 %v2449
      %v2907 = vpop.xlane.xlu0 %2906
      %2908 = vmax.xlane.f32.xlu0 %v2454
      %v2909 = vpop.xlane.xlu0 %2908
      %2910 = vmax.xlane.f32.xlu0 %v2457
      %v2911 = vpop.xlane.xlu0 %2910
      %2912 = vmax.xlane.f32.xlu0 %v2462
      %v2913 = vpop.xlane.xlu0 %2912
      %2914 = vmax.xlane.f32.xlu0 %v2465
      %v2915 = vpop.xlane.xlu0 %2914
      %2916 = vmax.xlane.f32.xlu0 %v2470
      %v2917 = vpop.xlane.xlu0 %2916
      %2918 = vmax.xlane.f32.xlu0 %v2473
      %v2919 = vpop.xlane.xlu0 %2918
      %2920 = vmax.xlane.f32.xlu0 %v2478
      %v2921 = vpop.xlane.xlu0 %2920
      %2922 = vmax.xlane.f32.xlu0 %v2481
      %v2923 = vpop.xlane.xlu0 %2922
      %2924 = vmax.xlane.f32.xlu0 %v2486
      %v2925 = vpop.xlane.xlu0 %2924
      %2926 = vmax.xlane.f32.xlu0 %v2489
      %v2927 = vpop.xlane.xlu0 %2926
      %2928 = vmax.xlane.f32.xlu0 %v2494
      %v2929 = vpop.xlane.xlu0 %2928
      %2930 = vmax.xlane.f32.xlu0 %v2497
      %v2931 = vpop.xlane.xlu0 %2930
      %2932 = vmax.xlane.f32.xlu0 %v2502
      %v2933 = vpop.xlane.xlu0 %2932
      %2934 = vmax.xlane.f32.xlu0 %v2505
      %v2935 = vpop.xlane.xlu0 %2934
      %2936 = vmax.xlane.f32.xlu0 %v2510
      %v2937 = vpop.xlane.xlu0 %2936
      %2938 = vmax.xlane.f32.xlu0 %v2513
      %v2939 = vpop.xlane.xlu0 %2938
      %2940 = vmax.xlane.f32.xlu0 %v2518
      %v2941 = vpop.xlane.xlu0 %2940
      %2942 = vmax.xlane.f32.xlu0 %v2521
      %v2943 = vpop.xlane.xlu0 %2942
      %2944 = vmax.xlane.f32.xlu0 %v2526
      %v2945 = vpop.xlane.xlu0 %2944
      %2946 = vmax.xlane.f32.xlu0 %v2529
      %v2947 = vpop.xlane.xlu0 %2946
      %2948 = vmax.xlane.f32.xlu0 %v2534
      %v2949 = vpop.xlane.xlu0 %2948
      %2950 = vmax.xlane.f32.xlu0 %v2537
      %v2951 = vpop.xlane.xlu0 %2950
      %2952 = vmax.xlane.f32.xlu0 %v2542
      %v2953 = vpop.xlane.xlu0 %2952
      %2954 = vmax.xlane.f32.xlu0 %v2545
      %v2955 = vpop.xlane.xlu0 %2954
      %2956 = vmax.xlane.f32.xlu0 %v2550
      %v2957 = vpop.xlane.xlu0 %2956
      %2958 = vmax.xlane.f32.xlu0 %v2553
      %v2959 = vpop.xlane.xlu0 %2958
      %2960 = vmax.xlane.f32.xlu0 %v2558
      %v2961 = vpop.xlane.xlu0 %2960
      %2962 = vmax.xlane.f32.xlu0 %v2561
      %v2963 = vpop.xlane.xlu0 %2962
      %2964 = vmax.xlane.f32.xlu0 %v2566
      %v2965 = vpop.xlane.xlu0 %2964
      %2966 = vmax.xlane.f32.xlu0 %v2569
      %v2967 = vpop.xlane.xlu0 %2966
      %2968 = vmax.xlane.f32.xlu0 %v2574
      %v2969 = vpop.xlane.xlu0 %2968
      %2970 = vmax.xlane.f32.xlu0 %v2577
      %v2971 = vpop.xlane.xlu0 %2970
      %2972 = vmax.xlane.f32.xlu0 %v2582
      %v2973 = vpop.xlane.xlu0 %2972
      %2974 = vmax.xlane.f32.xlu0 %v2585
      %v2975 = vpop.xlane.xlu0 %2974
      %2976 = vmax.xlane.f32.xlu0 %v2590
      %v2977 = vpop.xlane.xlu0 %2976
      %2978 = vmax.xlane.f32.xlu0 %v2593
      %v2979 = vpop.xlane.xlu0 %2978
      %2980 = vmax.xlane.f32.xlu0 %v2598
      %v2981 = vpop.xlane.xlu0 %2980
      %2982 = vmax.xlane.f32.xlu0 %v2601
      %v2983 = vpop.xlane.xlu0 %2982
      %2984 = vmax.xlane.f32.xlu0 %v2606
      %v2985 = vpop.xlane.xlu0 %2984
      %2986 = vmax.xlane.f32.xlu0 %v2609
      %v2987 = vpop.xlane.xlu0 %2986
      %2988 = vmax.xlane.f32.xlu0 %v2614
      %v2989 = vpop.xlane.xlu0 %2988
      %2990 = vmax.xlane.f32.xlu0 %v2617
      %v2991 = vpop.xlane.xlu0 %2990
      %2992 = vmax.xlane.f32.xlu0 %v2622
      %v2993 = vpop.xlane.xlu0 %2992
      %2994 = vmax.xlane.f32.xlu0 %v2625
      %v2995 = vpop.xlane.xlu0 %2994
      %2996 = vmax.xlane.f32.xlu0 %v2630
      %v2997 = vpop.xlane.xlu0 %2996
      %2998 = vmax.xlane.f32.xlu0 %v2633
      %v2999 = vpop.xlane.xlu0 %2998
      %3000 = vmax.xlane.f32.xlu0 %v2638
      %v3001 = vpop.xlane.xlu0 %3000
      %3002 = vmax.xlane.f32.xlu0 %v2641
      %v3003 = vpop.xlane.xlu0 %3002
      %3004 = vmax.xlane.f32.xlu0 %v2646
      %v3005 = vpop.xlane.xlu0 %3004
      %3006 = vmax.xlane.f32.xlu0 %v2649
      %v3007 = vpop.xlane.xlu0 %3006
      %3008 = vmax.xlane.f32.xlu0 %v2654
      %v3009 = vpop.xlane.xlu0 %3008
      %3010 = vmax.xlane.f32.xlu0 %v2657
      %v3011 = vpop.xlane.xlu0 %3010
      %3012 = vmax.xlane.f32.xlu0 %v2662
      %v3013 = vpop.xlane.xlu0 %3012
      %3014 = vmax.xlane.f32.xlu0 %v2665
      %v3015 = vpop.xlane.xlu0 %3014
      %3016 = vmax.xlane.f32.xlu0 %v2670
      %v3017 = vpop.xlane.xlu0 %3016
      %3018 = vmax.xlane.f32.xlu0 %v2673
      %v3019 = vpop.xlane.xlu0 %3018
      %3020 = vmax.xlane.f32.xlu0 %v2678
      %v3021 = vpop.xlane.xlu0 %3020
      %3022 = vmax.xlane.f32.xlu0 %v2681
      %v3023 = vpop.xlane.xlu0 %3022
      %3024 = vmax.xlane.f32.xlu0 %v2686
      %v3025 = vpop.xlane.xlu0 %3024
      %3026 = vmax.xlane.f32.xlu0 %v2689
      %v3027 = vpop.xlane.xlu0 %3026
      %3028 = vmax.xlane.f32.xlu0 %v2694
      %v3029 = vpop.xlane.xlu0 %3028
      %3030 = vmax.xlane.f32.xlu0 %v2697
      %v3031 = vpop.xlane.xlu0 %3030
      %3032 = vmax.xlane.f32.xlu0 %v2702
      %v3033 = vpop.xlane.xlu0 %3032
      %3034 = vmax.xlane.f32.xlu0 %v2705
      %v3035 = vpop.xlane.xlu0 %3034
      %3036 = vmax.xlane.f32.xlu0 %v2710
      %v3037 = vpop.xlane.xlu0 %3036
      %3038 = vmax.xlane.f32.xlu0 %v2713
      %v3039 = vpop.xlane.xlu0 %3038
      %3040 = vmax.xlane.f32.xlu0 %v2718
      %v3041 = vpop.xlane.xlu0 %3040
      %3042 = vmax.xlane.f32.xlu0 %v2721
      %v3043 = vpop.xlane.xlu0 %3042
      %3044 = vmax.xlane.f32.xlu0 %v2726
      %v3045 = vpop.xlane.xlu0 %3044
      %3046 = vmax.xlane.f32.xlu0 %v2729
      %v3047 = vpop.xlane.xlu0 %3046
      %3048 = vmax.xlane.f32.xlu0 %v2734
      %v3049 = vpop.xlane.xlu0 %3048
      %3050 = vmax.xlane.f32.xlu0 %v2737
      %v3051 = vpop.xlane.xlu0 %3050
      %3052 = vmax.xlane.f32.xlu0 %v2742
      %v3053 = vpop.xlane.xlu0 %3052
      %3054 = vmax.xlane.f32.xlu0 %v2745
      %v3055 = vpop.xlane.xlu0 %3054
      %3056 = vmax.xlane.f32.xlu0 %v2750
      %v3057 = vpop.xlane.xlu0 %3056
      %3058 = vmax.xlane.f32.xlu0 %v2753
      %v3059 = vpop.xlane.xlu0 %3058
      %3060 = vmax.xlane.f32.xlu0 %v2758
      %v3061 = vpop.xlane.xlu0 %3060
      %3062 = vmax.xlane.f32.xlu0 %v2761
      %v3063 = vpop.xlane.xlu0 %3062
      %3064 = vmax.xlane.f32.xlu0 %v2766
      %v3065 = vpop.xlane.xlu0 %3064
      %3066 = vmax.xlane.f32.xlu0 %v2769
      %v3067 = vpop.xlane.xlu0 %3066
      %3068 = vmax.xlane.f32.xlu0 %v2774
      %v3069 = vpop.xlane.xlu0 %3068
      %3070 = vmax.xlane.f32.xlu0 %v2777
      %v3071 = vpop.xlane.xlu0 %3070
      %3072 = vmax.xlane.f32.xlu0 %v2782
      %v3073 = vpop.xlane.xlu0 %3072
      %3074 = vmax.xlane.f32.xlu0 %v2785
      %v3075 = vpop.xlane.xlu0 %3074
      %3076 = vmax.xlane.f32.xlu0 %v2790
      %v3077 = vpop.xlane.xlu0 %3076
      %3078 = vmax.xlane.f32.xlu0 %v2793
      %v3079 = vpop.xlane.xlu0 %3078
      %3080 = vmax.xlane.f32.xlu0 %v2798
      %v3081 = vpop.xlane.xlu0 %3080
      %3082 = vmax.xlane.f32.xlu0 %v2801
      %v3083 = vpop.xlane.xlu0 %3082
      %3084 = vmax.xlane.f32.xlu0 %v2806
      %v3085 = vpop.xlane.xlu0 %3084
      %3086 = vmax.xlane.f32.xlu0 %v2809
      %v3087 = vpop.xlane.xlu0 %3086
      %3088 = vmax.xlane.f32.xlu0 %v2814
      %v3089 = vpop.xlane.xlu0 %3088
      %3090 = vmax.xlane.f32.xlu0 %v2817
      %v3091 = vpop.xlane.xlu0 %3090
      %3092 = vmax.xlane.f32.xlu0 %v2822
      %v3093 = vpop.xlane.xlu0 %3092
      %3094 = vmax.xlane.f32.xlu0 %v2825
      %v3095 = vpop.xlane.xlu0 %3094
      %3096 = vmax.xlane.f32.xlu0 %v2830
      %v3097 = vpop.xlane.xlu0 %3096
      %3098 = vmax.xlane.f32.xlu0 %v2833
      %v3099 = vpop.xlane.xlu0 %3098
      %3100 = vmax.xlane.f32.xlu0 %v2838
      %v3101 = vpop.xlane.xlu0 %3100
      %3102 = vmax.xlane.f32.xlu0 %v2841
      %v3103 = vpop.xlane.xlu0 %3102
      %3104 = vmax.xlane.f32.xlu0 %v2846
      %v3105 = vpop.xlane.xlu0 %3104
      %3106 = vmax.xlane.f32.xlu0 %v2849
      %v3107 = vpop.xlane.xlu0 %3106
      %v3108 = vsub.f32 %v2342, %v2853
      %v3109 = vsub.f32 %v2345, %v2855
      %v3110 = vsub.f32 %v2350, %v2857
      %v3111 = vsub.f32 %v2353, %v2859
      %v3112 = vsub.f32 %v2358, %v2861
      %v3113 = vsub.f32 %v2361, %v2863
      %v3114 = vsub.f32 %v2366, %v2865
      %v3115 = vsub.f32 %v2369, %v2867
      %v3116 = vsub.f32 %v2374, %v2869
      %v3117 = vsub.f32 %v2377, %v2871
      %v3118 = vsub.f32 %v2382, %v2873
      %v3119 = vsub.f32 %v2385, %v2875
      %v3120 = vsub.f32 %v2390, %v2877
      %v3121 = vsub.f32 %v2393, %v2879
      %v3122 = vsub.f32 %v2398, %v2881
      %v3123 = vsub.f32 %v2401, %v2883
      %v3124 = vsub.f32 %v2406, %v2885
      %v3125 = vsub.f32 %v2409, %v2887
      %v3126 = vsub.f32 %v2414, %v2889
      %v3127 = vsub.f32 %v2417, %v2891
      %v3128 = vsub.f32 %v2422, %v2893
      %v3129 = vsub.f32 %v2425, %v2895
      %v3130 = vsub.f32 %v2430, %v2897
      %v3131 = vsub.f32 %v2433, %v2899
      %v3132 = vsub.f32 %v2438, %v2901
      %v3133 = vsub.f32 %v2441, %v2903
      %v3134 = vsub.f32 %v2446, %v2905
      %v3135 = vsub.f32 %v2449, %v2907
      %v3136 = vsub.f32 %v2454, %v2909
      %v3137 = vsub.f32 %v2457, %v2911
      %v3138 = vsub.f32 %v2462, %v2913
      %v3139 = vsub.f32 %v2465, %v2915
      %v3140 = vsub.f32 %v2470, %v2917
      %v3141 = vsub.f32 %v2473, %v2919
      %v3142 = vsub.f32 %v2478, %v2921
      %v3143 = vsub.f32 %v2481, %v2923
      %v3144 = vsub.f32 %v2486, %v2925
      %v3145 = vsub.f32 %v2489, %v2927
      %v3146 = vsub.f32 %v2494, %v2929
      %v3147 = vsub.f32 %v2497, %v2931
      %v3148 = vsub.f32 %v2502, %v2933
      %v3149 = vsub.f32 %v2505, %v2935
      %v3150 = vsub.f32 %v2510, %v2937
      %v3151 = vsub.f32 %v2513, %v2939
      %v3152 = vsub.f32 %v2518, %v2941
      %v3153 = vsub.f32 %v2521, %v2943
      %v3154 = vsub.f32 %v2526, %v2945
      %v3155 = vsub.f32 %v2529, %v2947
      %v3156 = vsub.f32 %v2534, %v2949
      %v3157 = vsub.f32 %v2537, %v2951
      %v3158 = vsub.f32 %v2542, %v2953
      %v3159 = vsub.f32 %v2545, %v2955
      %v3160 = vsub.f32 %v2550, %v2957
      %v3161 = vsub.f32 %v2553, %v2959
      %v3162 = vsub.f32 %v2558, %v2961
      %v3163 = vsub.f32 %v2561, %v2963
      %v3164 = vsub.f32 %v2566, %v2965
      %v3165 = vsub.f32 %v2569, %v2967
      %v3166 = vsub.f32 %v2574, %v2969
      %v3167 = vsub.f32 %v2577, %v2971
      %v3168 = vsub.f32 %v2582, %v2973
      %v3169 = vsub.f32 %v2585, %v2975
      %v3170 = vsub.f32 %v2590, %v2977
      %v3171 = vsub.f32 %v2593, %v2979
      %v3172 = vsub.f32 %v2598, %v2981
      %v3173 = vsub.f32 %v2601, %v2983
      %v3174 = vsub.f32 %v2606, %v2985
      %v3175 = vsub.f32 %v2609, %v2987
      %v3176 = vsub.f32 %v2614, %v2989
      %v3177 = vsub.f32 %v2617, %v2991
      %v3178 = vsub.f32 %v2622, %v2993
      %v3179 = vsub.f32 %v2625, %v2995
      %v3180 = vsub.f32 %v2630, %v2997
      %v3181 = vsub.f32 %v2633, %v2999
      %v3182 = vsub.f32 %v2638, %v3001
      %v3183 = vsub.f32 %v2641, %v3003
      %v3184 = vsub.f32 %v2646, %v3005
      %v3185 = vsub.f32 %v2649, %v3007
      %v3186 = vsub.f32 %v2654, %v3009
      %v3187 = vsub.f32 %v2657, %v3011
      %v3188 = vsub.f32 %v2662, %v3013
      %v3189 = vsub.f32 %v2665, %v3015
      %v3190 = vsub.f32 %v2670, %v3017
      %v3191 = vsub.f32 %v2673, %v3019
      %v3192 = vsub.f32 %v2678, %v3021
      %v3193 = vsub.f32 %v2681, %v3023
      %v3194 = vsub.f32 %v2686, %v3025
      %v3195 = vsub.f32 %v2689, %v3027
      %v3196 = vsub.f32 %v2694, %v3029
      %v3197 = vsub.f32 %v2697, %v3031
      %v3198 = vsub.f32 %v2702, %v3033
      %v3199 = vsub.f32 %v2705, %v3035
      %v3200 = vsub.f32 %v2710, %v3037
      %v3201 = vsub.f32 %v2713, %v3039
      %v3202 = vsub.f32 %v2718, %v3041
      %v3203 = vsub.f32 %v2721, %v3043
      %v3204 = vsub.f32 %v2726, %v3045
      %v3205 = vsub.f32 %v2729, %v3047
      %v3206 = vsub.f32 %v2734, %v3049
      %v3207 = vsub.f32 %v2737, %v3051
      %v3208 = vsub.f32 %v2742, %v3053
      %v3209 = vsub.f32 %v2745, %v3055
      %v3210 = vsub.f32 %v2750, %v3057
      %v3211 = vsub.f32 %v2753, %v3059
      %v3212 = vsub.f32 %v2758, %v3061
      %v3213 = vsub.f32 %v2761, %v3063
      %v3214 = vsub.f32 %v2766, %v3065
      %v3215 = vsub.f32 %v2769, %v3067
      %v3216 = vsub.f32 %v2774, %v3069
      %v3217 = vsub.f32 %v2777, %v3071
      %v3218 = vsub.f32 %v2782, %v3073
      %v3219 = vsub.f32 %v2785, %v3075
      %v3220 = vsub.f32 %v2790, %v3077
      %v3221 = vsub.f32 %v2793, %v3079
      %v3222 = vsub.f32 %v2798, %v3081
      %v3223 = vsub.f32 %v2801, %v3083
      %v3224 = vsub.f32 %v2806, %v3085
      %v3225 = vsub.f32 %v2809, %v3087
      %v3226 = vsub.f32 %v2814, %v3089
      %v3227 = vsub.f32 %v2817, %v3091
      %v3228 = vsub.f32 %v2822, %v3093
      %v3229 = vsub.f32 %v2825, %v3095
      %v3230 = vsub.f32 %v2830, %v3097
      %v3231 = vsub.f32 %v2833, %v3099
      %v3232 = vsub.f32 %v2838, %v3101
      %v3233 = vsub.f32 %v2841, %v3103
      %v3234 = vsub.f32 %v2846, %v3105
      %v3235 = vsub.f32 %v2849, %v3107
      %v3236 = vmul.f32 %v3108, 1.442695
      %v3237 = vpow.pop %v3236
      %v3238 = vmul.f32 %v3109, 1.442695
      %v3239 = vpow.pop %v3238
      %v3240 = vmul.f32 %v3110, 1.442695
      %v3241 = vpow.pop %v3240
      %v3242 = vmul.f32 %v3111, 1.442695
      %v3243 = vpow.pop %v3242
      %v3244 = vmul.f32 %v3112, 1.442695
      %v3245 = vpow.pop %v3244
      %v3246 = vmul.f32 %v3113, 1.442695
      %v3247 = vpow.pop %v3246
      %v3248 = vmul.f32 %v3114, 1.442695
      %v3249 = vpow.pop %v3248
      %v3250 = vmul.f32 %v3115, 1.442695
      %v3251 = vpow.pop %v3250
      %v3252 = vmul.f32 %v3116, 1.442695
      %v3253 = vpow.pop %v3252
      %v3254 = vmul.f32 %v3117, 1.442695
      %v3255 = vpow.pop %v3254
      %v3256 = vmul.f32 %v3118, 1.442695
      %v3257 = vpow.pop %v3256
      %v3258 = vmul.f32 %v3119, 1.442695
      %v3259 = vpow.pop %v3258
      %v3260 = vmul.f32 %v3120, 1.442695
      %v3261 = vpow.pop %v3260
      %v3262 = vmul.f32 %v3121, 1.442695
      %v3263 = vpow.pop %v3262
      %v3264 = vmul.f32 %v3122, 1.442695
      %v3265 = vpow.pop %v3264
      %v3266 = vmul.f32 %v3123, 1.442695
      %v3267 = vpow.pop %v3266
      %v3268 = vmul.f32 %v3124, 1.442695
      %v3269 = vpow.pop %v3268
      %v3270 = vmul.f32 %v3125, 1.442695
      %v3271 = vpow.pop %v3270
      %v3272 = vmul.f32 %v3126, 1.442695
      %v3273 = vpow.pop %v3272
      %v3274 = vmul.f32 %v3127, 1.442695
      %v3275 = vpow.pop %v3274
      %v3276 = vmul.f32 %v3128, 1.442695
      %v3277 = vpow.pop %v3276
      %v3278 = vmul.f32 %v3129, 1.442695
      %v3279 = vpow.pop %v3278
      %v3280 = vmul.f32 %v3130, 1.442695
      %v3281 = vpow.pop %v3280
      %v3282 = vmul.f32 %v3131, 1.442695
      %v3283 = vpow.pop %v3282
      %v3284 = vmul.f32 %v3132, 1.442695
      %v3285 = vpow.pop %v3284
      %v3286 = vmul.f32 %v3133, 1.442695
      %v3287 = vpow.pop %v3286
      %v3288 = vmul.f32 %v3134, 1.442695
      %v3289 = vpow.pop %v3288
      %v3290 = vmul.f32 %v3135, 1.442695
      %v3291 = vpow.pop %v3290
      %v3292 = vmul.f32 %v3136, 1.442695
      %v3293 = vpow.pop %v3292
      %v3294 = vmul.f32 %v3137, 1.442695
      %v3295 = vpow.pop %v3294
      %v3296 = vmul.f32 %v3138, 1.442695
      %v3297 = vpow.pop %v3296
      %v3298 = vmul.f32 %v3139, 1.442695
      %v3299 = vpow.pop %v3298
      %v3300 = vmul.f32 %v3140, 1.442695
      %v3301 = vpow.pop %v3300
      %v3302 = vmul.f32 %v3141, 1.442695
      %v3303 = vpow.pop %v3302
      %v3304 = vmul.f32 %v3142, 1.442695
      %v3305 = vpow.pop %v3304
      %v3306 = vmul.f32 %v3143, 1.442695
      %v3307 = vpow.pop %v3306
      %v3308 = vmul.f32 %v3144, 1.442695
      %v3309 = vpow.pop %v3308
      %v3310 = vmul.f32 %v3145, 1.442695
      %v3311 = vpow.pop %v3310
      %v3312 = vmul.f32 %v3146, 1.442695
      %v3313 = vpow.pop %v3312
      %v3314 = vmul.f32 %v3147, 1.442695
      %v3315 = vpow.pop %v3314
      %v3316 = vmul.f32 %v3148, 1.442695
      %v3317 = vpow.pop %v3316
      %v3318 = vmul.f32 %v3149, 1.442695
      %v3319 = vpow.pop %v3318
      %v3320 = vmul.f32 %v3150, 1.442695
      %v3321 = vpow.pop %v3320
      %v3322 = vmul.f32 %v3151, 1.442695
      %v3323 = vpow.pop %v3322
      %v3324 = vmul.f32 %v3152, 1.442695
      %v3325 = vpow.pop %v3324
      %v3326 = vmul.f32 %v3153, 1.442695
      %v3327 = vpow.pop %v3326
      %v3328 = vmul.f32 %v3154, 1.442695
      %v3329 = vpow.pop %v3328
      %v3330 = vmul.f32 %v3155, 1.442695
      %v3331 = vpow.pop %v3330
      %v3332 = vmul.f32 %v3156, 1.442695
      %v3333 = vpow.pop %v3332
      %v3334 = vmul.f32 %v3157, 1.442695
      %v3335 = vpow.pop %v3334
      %v3336 = vmul.f32 %v3158, 1.442695
      %v3337 = vpow.pop %v3336
      %v3338 = vmul.f32 %v3159, 1.442695
      %v3339 = vpow.pop %v3338
      %v3340 = vmul.f32 %v3160, 1.442695
      %v3341 = vpow.pop %v3340
      %v3342 = vmul.f32 %v3161, 1.442695
      %v3343 = vpow.pop %v3342
      %v3344 = vmul.f32 %v3162, 1.442695
      %v3345 = vpow.pop %v3344
      %v3346 = vmul.f32 %v3163, 1.442695
      %v3347 = vpow.pop %v3346
      %v3348 = vmul.f32 %v3164, 1.442695
      %v3349 = vpow.pop %v3348
      %v3350 = vmul.f32 %v3165, 1.442695
      %v3351 = vpow.pop %v3350
      %v3352 = vmul.f32 %v3166, 1.442695
      %v3353 = vpow.pop %v3352
      %v3354 = vmul.f32 %v3167, 1.442695
      %v3355 = vpow.pop %v3354
      %v3356 = vmul.f32 %v3168, 1.442695
      %v3357 = vpow.pop %v3356
      %v3358 = vmul.f32 %v3169, 1.442695
      %v3359 = vpow.pop %v3358
      %v3360 = vmul.f32 %v3170, 1.442695
      %v3361 = vpow.pop %v3360
      %v3362 = vmul.f32 %v3171, 1.442695
      %v3363 = vpow.pop %v3362
      %v3364 = vmul.f32 %v3172, 1.442695
      %v3365 = vpow.pop %v3364
      %v3366 = vmul.f32 %v3173, 1.442695
      %v3367 = vpow.pop %v3366
      %v3368 = vmul.f32 %v3174, 1.442695
      %v3369 = vpow.pop %v3368
      %v3370 = vmul.f32 %v3175, 1.442695
      %v3371 = vpow.pop %v3370
      %v3372 = vmul.f32 %v3176, 1.442695
      %v3373 = vpow.pop %v3372
      %v3374 = vmul.f32 %v3177, 1.442695
      %v3375 = vpow.pop %v3374
      %v3376 = vmul.f32 %v3178, 1.442695
      %v3377 = vpow.pop %v3376
      %v3378 = vmul.f32 %v3179, 1.442695
      %v3379 = vpow.pop %v3378
      %v3380 = vmul.f32 %v3180, 1.442695
      %v3381 = vpow.pop %v3380
      %v3382 = vmul.f32 %v3181, 1.442695
      %v3383 = vpow.pop %v3382
      %v3384 = vmul.f32 %v3182, 1.442695
      %v3385 = vpow.pop %v3384
      %v3386 = vmul.f32 %v3183, 1.442695
      %v3387 = vpow.pop %v3386
      %v3388 = vmul.f32 %v3184, 1.442695
      %v3389 = vpow.pop %v3388
      %v3390 = vmul.f32 %v3185, 1.442695
      %v3391 = vpow.pop %v3390
      %v3392 = vmul.f32 %v3186, 1.442695
      %v3393 = vpow.pop %v3392
      %v3394 = vmul.f32 %v3187, 1.442695
      %v3395 = vpow.pop %v3394
      %v3396 = vmul.f32 %v3188, 1.442695
      %v3397 = vpow.pop %v3396
      %v3398 = vmul.f32 %v3189, 1.442695
      %v3399 = vpow.pop %v3398
      %v3400 = vmul.f32 %v3190, 1.442695
      %v3401 = vpow.pop %v3400
      %v3402 = vmul.f32 %v3191, 1.442695
      %v3403 = vpow.pop %v3402
      %v3404 = vmul.f32 %v3192, 1.442695
      %v3405 = vpow.pop %v3404
      %v3406 = vmul.f32 %v3193, 1.442695
      %v3407 = vpow.pop %v3406
      %v3408 = vmul.f32 %v3194, 1.442695
      %v3409 = vpow.pop %v3408
      %v3410 = vmul.f32 %v3195, 1.442695
      %v3411 = vpow.pop %v3410
      %v3412 = vmul.f32 %v3196, 1.442695
      %v3413 = vpow.pop %v3412
      %v3414 = vmul.f32 %v3197, 1.442695
      %v3415 = vpow.pop %v3414
      %v3416 = vmul.f32 %v3198, 1.442695
      %v3417 = vpow.pop %v3416
      %v3418 = vmul.f32 %v3199, 1.442695
      %v3419 = vpow.pop %v3418
      %v3420 = vmul.f32 %v3200, 1.442695
      %v3421 = vpow.pop %v3420
      %v3422 = vmul.f32 %v3201, 1.442695
      %v3423 = vpow.pop %v3422
      %v3424 = vmul.f32 %v3202, 1.442695
      %v3425 = vpow.pop %v3424
      %v3426 = vmul.f32 %v3203, 1.442695
      %v3427 = vpow.pop %v3426
      %v3428 = vmul.f32 %v3204, 1.442695
      %v3429 = vpow.pop %v3428
      %v3430 = vmul.f32 %v3205, 1.442695
      %v3431 = vpow.pop %v3430
      %v3432 = vmul.f32 %v3206, 1.442695
      %v3433 = vpow.pop %v3432
      %v3434 = vmul.f32 %v3207, 1.442695
      %v3435 = vpow.pop %v3434
      %v3436 = vmul.f32 %v3208, 1.442695
      %v3437 = vpow.pop %v3436
      %v3438 = vmul.f32 %v3209, 1.442695
      %v3439 = vpow.pop %v3438
      %v3440 = vmul.f32 %v3210, 1.442695
      %v3441 = vpow.pop %v3440
      %v3442 = vmul.f32 %v3211, 1.442695
      %v3443 = vpow.pop %v3442
      %v3444 = vmul.f32 %v3212, 1.442695
      %v3445 = vpow.pop %v3444
      %v3446 = vmul.f32 %v3213, 1.442695
      %v3447 = vpow.pop %v3446
      %v3448 = vmul.f32 %v3214, 1.442695
      %v3449 = vpow.pop %v3448
      %v3450 = vmul.f32 %v3215, 1.442695
      %v3451 = vpow.pop %v3450
      %v3452 = vmul.f32 %v3216, 1.442695
      %v3453 = vpow.pop %v3452
      %v3454 = vmul.f32 %v3217, 1.442695
      %v3455 = vpow.pop %v3454
      %v3456 = vmul.f32 %v3218, 1.442695
      %v3457 = vpow.pop %v3456
      %v3458 = vmul.f32 %v3219, 1.442695
      %v3459 = vpow.pop %v3458
      %v3460 = vmul.f32 %v3220, 1.442695
      %v3461 = vpow.pop %v3460
      %v3462 = vmul.f32 %v3221, 1.442695
      %v3463 = vpow.pop %v3462
      %v3464 = vmul.f32 %v3222, 1.442695
      %v3465 = vpow.pop %v3464
      %v3466 = vmul.f32 %v3223, 1.442695
      %v3467 = vpow.pop %v3466
      %v3468 = vmul.f32 %v3224, 1.442695
      %v3469 = vpow.pop %v3468
      %v3470 = vmul.f32 %v3225, 1.442695
      %v3471 = vpow.pop %v3470
      %v3472 = vmul.f32 %v3226, 1.442695
      %v3473 = vpow.pop %v3472
      %v3474 = vmul.f32 %v3227, 1.442695
      %v3475 = vpow.pop %v3474
      %v3476 = vmul.f32 %v3228, 1.442695
      %v3477 = vpow.pop %v3476
      %v3478 = vmul.f32 %v3229, 1.442695
      %v3479 = vpow.pop %v3478
      %v3480 = vmul.f32 %v3230, 1.442695
      %v3481 = vpow.pop %v3480
      %v3482 = vmul.f32 %v3231, 1.442695
      %v3483 = vpow.pop %v3482
      %v3484 = vmul.f32 %v3232, 1.442695
      %v3485 = vpow.pop %v3484
      %v3486 = vmul.f32 %v3233, 1.442695
      %v3487 = vpow.pop %v3486
      %v3488 = vmul.f32 %v3234, 1.442695
      %v3489 = vpow.pop %v3488
      %v3490 = vmul.f32 %v3235, 1.442695
      %v3491 = vpow.pop %v3490
      %3492 = vadd.xlane.f32.xlu0 %v3237
      %v3493 = vpop.xlane.xlu0 %3492
      %3494 = vadd.xlane.f32.xlu0 %v3239
      %v3495 = vpop.xlane.xlu0 %3494
      %3496 = vadd.xlane.f32.xlu0 %v3241
      %v3497 = vpop.xlane.xlu0 %3496
      %3498 = vadd.xlane.f32.xlu0 %v3243
      %v3499 = vpop.xlane.xlu0 %3498
      %3500 = vadd.xlane.f32.xlu0 %v3245
      %v3501 = vpop.xlane.xlu0 %3500
      %3502 = vadd.xlane.f32.xlu0 %v3247
      %v3503 = vpop.xlane.xlu0 %3502
      %3504 = vadd.xlane.f32.xlu0 %v3249
      %v3505 = vpop.xlane.xlu0 %3504
      %3506 = vadd.xlane.f32.xlu0 %v3251
      %v3507 = vpop.xlane.xlu0 %3506
      %3508 = vadd.xlane.f32.xlu0 %v3253
      %v3509 = vpop.xlane.xlu0 %3508
      %3510 = vadd.xlane.f32.xlu0 %v3255
      %v3511 = vpop.xlane.xlu0 %3510
      %3512 = vadd.xlane.f32.xlu0 %v3257
      %v3513 = vpop.xlane.xlu0 %3512
      %3514 = vadd.xlane.f32.xlu0 %v3259
      %v3515 = vpop.xlane.xlu0 %3514
      %3516 = vadd.xlane.f32.xlu0 %v3261
      %v3517 = vpop.xlane.xlu0 %3516
      %3518 = vadd.xlane.f32.xlu0 %v3263
      %v3519 = vpop.xlane.xlu0 %3518
      %3520 = vadd.xlane.f32.xlu0 %v3265
      %v3521 = vpop.xlane.xlu0 %3520
      %3522 = vadd.xlane.f32.xlu0 %v3267
      %v3523 = vpop.xlane.xlu0 %3522
      %3524 = vadd.xlane.f32.xlu0 %v3269
      %v3525 = vpop.xlane.xlu0 %3524
      %3526 = vadd.xlane.f32.xlu0 %v3271
      %v3527 = vpop.xlane.xlu0 %3526
      %3528 = vadd.xlane.f32.xlu0 %v3273
      %v3529 = vpop.xlane.xlu0 %3528
      %3530 = vadd.xlane.f32.xlu0 %v3275
      %v3531 = vpop.xlane.xlu0 %3530
      %3532 = vadd.xlane.f32.xlu0 %v3277
      %v3533 = vpop.xlane.xlu0 %3532
      %3534 = vadd.xlane.f32.xlu0 %v3279
      %v3535 = vpop.xlane.xlu0 %3534
      %3536 = vadd.xlane.f32.xlu0 %v3281
      %v3537 = vpop.xlane.xlu0 %3536
      %3538 = vadd.xlane.f32.xlu0 %v3283
      %v3539 = vpop.xlane.xlu0 %3538
      %3540 = vadd.xlane.f32.xlu0 %v3285
      %v3541 = vpop.xlane.xlu0 %3540
      %3542 = vadd.xlane.f32.xlu0 %v3287
      %v3543 = vpop.xlane.xlu0 %3542
      %3544 = vadd.xlane.f32.xlu0 %v3289
      %v3545 = vpop.xlane.xlu0 %3544
      %3546 = vadd.xlane.f32.xlu0 %v3291
      %v3547 = vpop.xlane.xlu0 %3546
      %3548 = vadd.xlane.f32.xlu0 %v3293
      %v3549 = vpop.xlane.xlu0 %3548
      %3550 = vadd.xlane.f32.xlu0 %v3295
      %v3551 = vpop.xlane.xlu0 %3550
      %3552 = vadd.xlane.f32.xlu0 %v3297
      %v3553 = vpop.xlane.xlu0 %3552
      %3554 = vadd.xlane.f32.xlu0 %v3299
      %v3555 = vpop.xlane.xlu0 %3554
      %3556 = vadd.xlane.f32.xlu0 %v3301
      %v3557 = vpop.xlane.xlu0 %3556
      %3558 = vadd.xlane.f32.xlu0 %v3303
      %v3559 = vpop.xlane.xlu0 %3558
      %3560 = vadd.xlane.f32.xlu0 %v3305
      %v3561 = vpop.xlane.xlu0 %3560
      %3562 = vadd.xlane.f32.xlu0 %v3307
      %v3563 = vpop.xlane.xlu0 %3562
      %3564 = vadd.xlane.f32.xlu0 %v3309
      %v3565 = vpop.xlane.xlu0 %3564
      %3566 = vadd.xlane.f32.xlu0 %v3311
      %v3567 = vpop.xlane.xlu0 %3566
      %3568 = vadd.xlane.f32.xlu0 %v3313
      %v3569 = vpop.xlane.xlu0 %3568
      %3570 = vadd.xlane.f32.xlu0 %v3315
      %v3571 = vpop.xlane.xlu0 %3570
      %3572 = vadd.xlane.f32.xlu0 %v3317
      %v3573 = vpop.xlane.xlu0 %3572
      %3574 = vadd.xlane.f32.xlu0 %v3319
      %v3575 = vpop.xlane.xlu0 %3574
      %3576 = vadd.xlane.f32.xlu0 %v3321
      %v3577 = vpop.xlane.xlu0 %3576
      %3578 = vadd.xlane.f32.xlu0 %v3323
      %v3579 = vpop.xlane.xlu0 %3578
      %3580 = vadd.xlane.f32.xlu0 %v3325
      %v3581 = vpop.xlane.xlu0 %3580
      %3582 = vadd.xlane.f32.xlu0 %v3327
      %v3583 = vpop.xlane.xlu0 %3582
      %3584 = vadd.xlane.f32.xlu0 %v3329
      %v3585 = vpop.xlane.xlu0 %3584
      %3586 = vadd.xlane.f32.xlu0 %v3331
      %v3587 = vpop.xlane.xlu0 %3586
      %3588 = vadd.xlane.f32.xlu0 %v3333
      %v3589 = vpop.xlane.xlu0 %3588
      %3590 = vadd.xlane.f32.xlu0 %v3335
      %v3591 = vpop.xlane.xlu0 %3590
      %3592 = vadd.xlane.f32.xlu0 %v3337
      %v3593 = vpop.xlane.xlu0 %3592
      %3594 = vadd.xlane.f32.xlu0 %v3339
      %v3595 = vpop.xlane.xlu0 %3594
      %3596 = vadd.xlane.f32.xlu0 %v3341
      %v3597 = vpop.xlane.xlu0 %3596
      %3598 = vadd.xlane.f32.xlu0 %v3343
      %v3599 = vpop.xlane.xlu0 %3598
      %3600 = vadd.xlane.f32.xlu0 %v3345
      %v3601 = vpop.xlane.xlu0 %3600
      %3602 = vadd.xlane.f32.xlu0 %v3347
      %v3603 = vpop.xlane.xlu0 %3602
      %3604 = vadd.xlane.f32.xlu0 %v3349
      %v3605 = vpop.xlane.xlu0 %3604
      %3606 = vadd.xlane.f32.xlu0 %v3351
      %v3607 = vpop.xlane.xlu0 %3606
      %3608 = vadd.xlane.f32.xlu0 %v3353
      %v3609 = vpop.xlane.xlu0 %3608
      %3610 = vadd.xlane.f32.xlu0 %v3355
      %v3611 = vpop.xlane.xlu0 %3610
      %3612 = vadd.xlane.f32.xlu0 %v3357
      %v3613 = vpop.xlane.xlu0 %3612
      %3614 = vadd.xlane.f32.xlu0 %v3359
      %v3615 = vpop.xlane.xlu0 %3614
      %3616 = vadd.xlane.f32.xlu0 %v3361
      %v3617 = vpop.xlane.xlu0 %3616
      %3618 = vadd.xlane.f32.xlu0 %v3363
      %v3619 = vpop.xlane.xlu0 %3618
      %3620 = vadd.xlane.f32.xlu0 %v3365
      %v3621 = vpop.xlane.xlu0 %3620
      %3622 = vadd.xlane.f32.xlu0 %v3367
      %v3623 = vpop.xlane.xlu0 %3622
      %3624 = vadd.xlane.f32.xlu0 %v3369
      %v3625 = vpop.xlane.xlu0 %3624
      %3626 = vadd.xlane.f32.xlu0 %v3371
      %v3627 = vpop.xlane.xlu0 %3626
      %3628 = vadd.xlane.f32.xlu0 %v3373
      %v3629 = vpop.xlane.xlu0 %3628
      %3630 = vadd.xlane.f32.xlu0 %v3375
      %v3631 = vpop.xlane.xlu0 %3630
      %3632 = vadd.xlane.f32.xlu0 %v3377
      %v3633 = vpop.xlane.xlu0 %3632
      %3634 = vadd.xlane.f32.xlu0 %v3379
      %v3635 = vpop.xlane.xlu0 %3634
      %3636 = vadd.xlane.f32.xlu0 %v3381
      %v3637 = vpop.xlane.xlu0 %3636
      %3638 = vadd.xlane.f32.xlu0 %v3383
      %v3639 = vpop.xlane.xlu0 %3638
      %3640 = vadd.xlane.f32.xlu0 %v3385
      %v3641 = vpop.xlane.xlu0 %3640
      %3642 = vadd.xlane.f32.xlu0 %v3387
      %v3643 = vpop.xlane.xlu0 %3642
      %3644 = vadd.xlane.f32.xlu0 %v3389
      %v3645 = vpop.xlane.xlu0 %3644
      %3646 = vadd.xlane.f32.xlu0 %v3391
      %v3647 = vpop.xlane.xlu0 %3646
      %3648 = vadd.xlane.f32.xlu0 %v3393
      %v3649 = vpop.xlane.xlu0 %3648
      %3650 = vadd.xlane.f32.xlu0 %v3395
      %v3651 = vpop.xlane.xlu0 %3650
      %3652 = vadd.xlane.f32.xlu0 %v3397
      %v3653 = vpop.xlane.xlu0 %3652
      %3654 = vadd.xlane.f32.xlu0 %v3399
      %v3655 = vpop.xlane.xlu0 %3654
      %3656 = vadd.xlane.f32.xlu0 %v3401
      %v3657 = vpop.xlane.xlu0 %3656
      %3658 = vadd.xlane.f32.xlu0 %v3403
      %v3659 = vpop.xlane.xlu0 %3658
      %3660 = vadd.xlane.f32.xlu0 %v3405
      %v3661 = vpop.xlane.xlu0 %3660
      %3662 = vadd.xlane.f32.xlu0 %v3407
      %v3663 = vpop.xlane.xlu0 %3662
      %3664 = vadd.xlane.f32.xlu0 %v3409
      %v3665 = vpop.xlane.xlu0 %3664
      %3666 = vadd.xlane.f32.xlu0 %v3411
      %v3667 = vpop.xlane.xlu0 %3666
      %3668 = vadd.xlane.f32.xlu0 %v3413
      %v3669 = vpop.xlane.xlu0 %3668
      %3670 = vadd.xlane.f32.xlu0 %v3415
      %v3671 = vpop.xlane.xlu0 %3670
      %3672 = vadd.xlane.f32.xlu0 %v3417
      %v3673 = vpop.xlane.xlu0 %3672
      %3674 = vadd.xlane.f32.xlu0 %v3419
      %v3675 = vpop.xlane.xlu0 %3674
      %3676 = vadd.xlane.f32.xlu0 %v3421
      %v3677 = vpop.xlane.xlu0 %3676
      %3678 = vadd.xlane.f32.xlu0 %v3423
      %v3679 = vpop.xlane.xlu0 %3678
      %3680 = vadd.xlane.f32.xlu0 %v3425
      %v3681 = vpop.xlane.xlu0 %3680
      %3682 = vadd.xlane.f32.xlu0 %v3427
      %v3683 = vpop.xlane.xlu0 %3682
      %3684 = vadd.xlane.f32.xlu0 %v3429
      %v3685 = vpop.xlane.xlu0 %3684
      %3686 = vadd.xlane.f32.xlu0 %v3431
      %v3687 = vpop.xlane.xlu0 %3686
      %3688 = vadd.xlane.f32.xlu0 %v3433
      %v3689 = vpop.xlane.xlu0 %3688
      %3690 = vadd.xlane.f32.xlu0 %v3435
      %v3691 = vpop.xlane.xlu0 %3690
      %3692 = vadd.xlane.f32.xlu0 %v3437
      %v3693 = vpop.xlane.xlu0 %3692
      %3694 = vadd.xlane.f32.xlu0 %v3439
      %v3695 = vpop.xlane.xlu0 %3694
      %3696 = vadd.xlane.f32.xlu0 %v3441
      %v3697 = vpop.xlane.xlu0 %3696
      %3698 = vadd.xlane.f32.xlu0 %v3443
      %v3699 = vpop.xlane.xlu0 %3698
      %3700 = vadd.xlane.f32.xlu0 %v3445
      %v3701 = vpop.xlane.xlu0 %3700
      %3702 = vadd.xlane.f32.xlu0 %v3447
      %v3703 = vpop.xlane.xlu0 %3702
      %3704 = vadd.xlane.f32.xlu0 %v3449
      %v3705 = vpop.xlane.xlu0 %3704
      %3706 = vadd.xlane.f32.xlu0 %v3451
      %v3707 = vpop.xlane.xlu0 %3706
      %3708 = vadd.xlane.f32.xlu0 %v3453
      %v3709 = vpop.xlane.xlu0 %3708
      %3710 = vadd.xlane.f32.xlu0 %v3455
      %v3711 = vpop.xlane.xlu0 %3710
      %3712 = vadd.xlane.f32.xlu0 %v3457
      %v3713 = vpop.xlane.xlu0 %3712
      %3714 = vadd.xlane.f32.xlu0 %v3459
      %v3715 = vpop.xlane.xlu0 %3714
      %3716 = vadd.xlane.f32.xlu0 %v3461
      %v3717 = vpop.xlane.xlu0 %3716
      %3718 = vadd.xlane.f32.xlu0 %v3463
      %v3719 = vpop.xlane.xlu0 %3718
      %3720 = vadd.xlane.f32.xlu0 %v3465
      %v3721 = vpop.xlane.xlu0 %3720
      %3722 = vadd.xlane.f32.xlu0 %v3467
      %v3723 = vpop.xlane.xlu0 %3722
      %3724 = vadd.xlane.f32.xlu0 %v3469
      %v3725 = vpop.xlane.xlu0 %3724
      %3726 = vadd.xlane.f32.xlu0 %v3471
      %v3727 = vpop.xlane.xlu0 %3726
      %3728 = vadd.xlane.f32.xlu0 %v3473
      %v3729 = vpop.xlane.xlu0 %3728
      %3730 = vadd.xlane.f32.xlu0 %v3475
      %v3731 = vpop.xlane.xlu0 %3730
      %3732 = vadd.xlane.f32.xlu0 %v3477
      %v3733 = vpop.xlane.xlu0 %3732
      %3734 = vadd.xlane.f32.xlu0 %v3479
      %v3735 = vpop.xlane.xlu0 %3734
      %3736 = vadd.xlane.f32.xlu0 %v3481
      %v3737 = vpop.xlane.xlu0 %3736
      %3738 = vadd.xlane.f32.xlu0 %v3483
      %v3739 = vpop.xlane.xlu0 %3738
      %3740 = vadd.xlane.f32.xlu0 %v3485
      %v3741 = vpop.xlane.xlu0 %3740
      %3742 = vadd.xlane.f32.xlu0 %v3487
      %v3743 = vpop.xlane.xlu0 %3742
      %3744 = vadd.xlane.f32.xlu0 %v3489
      %v3745 = vpop.xlane.xlu0 %3744
      %3746 = vadd.xlane.f32.xlu0 %v3491
      %v3747 = vpop.xlane.xlu0 %3746
      %v3748 = vlog2.pop %v3493
      %v3749 = vmul.f32 %v3748, 0.6931472
      %v3750 = vlog2.pop %v3495
      %v3751 = vmul.f32 %v3750, 0.6931472
      %v3752 = vlog2.pop %v3497
      %v3753 = vmul.f32 %v3752, 0.6931472
      %v3754 = vlog2.pop %v3499
      %v3755 = vmul.f32 %v3754, 0.6931472
      %v3756 = vlog2.pop %v3501
      %v3757 = vmul.f32 %v3756, 0.6931472
      %v3758 = vlog2.pop %v3503
      %v3759 = vmul.f32 %v3758, 0.6931472
      %v3760 = vlog2.pop %v3505
      %v3761 = vmul.f32 %v3760, 0.6931472
      %v3762 = vlog2.pop %v3507
      %v3763 = vmul.f32 %v3762, 0.6931472
      %v3764 = vlog2.pop %v3509
      %v3765 = vmul.f32 %v3764, 0.6931472
      %v3766 = vlog2.pop %v3511
      %v3767 = vmul.f32 %v3766, 0.6931472
      %v3768 = vlog2.pop %v3513
      %v3769 = vmul.f32 %v3768, 0.6931472
      %v3770 = vlog2.pop %v3515
      %v3771 = vmul.f32 %v3770, 0.6931472
      %v3772 = vlog2.pop %v3517
      %v3773 = vmul.f32 %v3772, 0.6931472
      %v3774 = vlog2.pop %v3519
      %v3775 = vmul.f32 %v3774, 0.6931472
      %v3776 = vlog2.pop %v3521
      %v3777 = vmul.f32 %v3776, 0.6931472
      %v3778 = vlog2.pop %v3523
      %v3779 = vmul.f32 %v3778, 0.6931472
      %v3780 = vlog2.pop %v3525
      %v3781 = vmul.f32 %v3780, 0.6931472
      %v3782 = vlog2.pop %v3527
      %v3783 = vmul.f32 %v3782, 0.6931472
      %v3784 = vlog2.pop %v3529
      %v3785 = vmul.f32 %v3784, 0.6931472
      %v3786 = vlog2.pop %v3531
      %v3787 = vmul.f32 %v3786, 0.6931472
      %v3788 = vlog2.pop %v3533
      %v3789 = vmul.f32 %v3788, 0.6931472
      %v3790 = vlog2.pop %v3535
      %v3791 = vmul.f32 %v3790, 0.6931472
      %v3792 = vlog2.pop %v3537
      %v3793 = vmul.f32 %v3792, 0.6931472
      %v3794 = vlog2.pop %v3539
      %v3795 = vmul.f32 %v3794, 0.6931472
      %v3796 = vlog2.pop %v3541
      %v3797 = vmul.f32 %v3796, 0.6931472
      %v3798 = vlog2.pop %v3543
      %v3799 = vmul.f32 %v3798, 0.6931472
      %v3800 = vlog2.pop %v3545
      %v3801 = vmul.f32 %v3800, 0.6931472
      %v3802 = vlog2.pop %v3547
      %v3803 = vmul.f32 %v3802, 0.6931472
      %v3804 = vlog2.pop %v3549
      %v3805 = vmul.f32 %v3804, 0.6931472
      %v3806 = vlog2.pop %v3551
      %v3807 = vmul.f32 %v3806, 0.6931472
      %v3808 = vlog2.pop %v3553
      %v3809 = vmul.f32 %v3808, 0.6931472
      %v3810 = vlog2.pop %v3555
      %v3811 = vmul.f32 %v3810, 0.6931472
      %v3812 = vlog2.pop %v3557
      %v3813 = vmul.f32 %v3812, 0.6931472
      %v3814 = vlog2.pop %v3559
      %v3815 = vmul.f32 %v3814, 0.6931472
      %v3816 = vlog2.pop %v3561
      %v3817 = vmul.f32 %v3816, 0.6931472
      %v3818 = vlog2.pop %v3563
      %v3819 = vmul.f32 %v3818, 0.6931472
      %v3820 = vlog2.pop %v3565
      %v3821 = vmul.f32 %v3820, 0.6931472
      %v3822 = vlog2.pop %v3567
      %v3823 = vmul.f32 %v3822, 0.6931472
      %v3824 = vlog2.pop %v3569
      %v3825 = vmul.f32 %v3824, 0.6931472
      %v3826 = vlog2.pop %v3571
      %v3827 = vmul.f32 %v3826, 0.6931472
      %v3828 = vlog2.pop %v3573
      %v3829 = vmul.f32 %v3828, 0.6931472
      %v3830 = vlog2.pop %v3575
      %v3831 = vmul.f32 %v3830, 0.6931472
      %v3832 = vlog2.pop %v3577
      %v3833 = vmul.f32 %v3832, 0.6931472
      %v3834 = vlog2.pop %v3579
      %v3835 = vmul.f32 %v3834, 0.6931472
      %v3836 = vlog2.pop %v3581
      %v3837 = vmul.f32 %v3836, 0.6931472
      %v3838 = vlog2.pop %v3583
      %v3839 = vmul.f32 %v3838, 0.6931472
      %v3840 = vlog2.pop %v3585
      %v3841 = vmul.f32 %v3840, 0.6931472
      %v3842 = vlog2.pop %v3587
      %v3843 = vmul.f32 %v3842, 0.6931472
      %v3844 = vlog2.pop %v3589
      %v3845 = vmul.f32 %v3844, 0.6931472
      %v3846 = vlog2.pop %v3591
      %v3847 = vmul.f32 %v3846, 0.6931472
      %v3848 = vlog2.pop %v3593
      %v3849 = vmul.f32 %v3848, 0.6931472
      %v3850 = vlog2.pop %v3595
      %v3851 = vmul.f32 %v3850, 0.6931472
      %v3852 = vlog2.pop %v3597
      %v3853 = vmul.f32 %v3852, 0.6931472
      %v3854 = vlog2.pop %v3599
      %v3855 = vmul.f32 %v3854, 0.6931472
      %v3856 = vlog2.pop %v3601
      %v3857 = vmul.f32 %v3856, 0.6931472
      %v3858 = vlog2.pop %v3603
      %v3859 = vmul.f32 %v3858, 0.6931472
      %v3860 = vlog2.pop %v3605
      %v3861 = vmul.f32 %v3860, 0.6931472
      %v3862 = vlog2.pop %v3607
      %v3863 = vmul.f32 %v3862, 0.6931472
      %v3864 = vlog2.pop %v3609
      %v3865 = vmul.f32 %v3864, 0.6931472
      %v3866 = vlog2.pop %v3611
      %v3867 = vmul.f32 %v3866, 0.6931472
      %v3868 = vlog2.pop %v3613
      %v3869 = vmul.f32 %v3868, 0.6931472
      %v3870 = vlog2.pop %v3615
      %v3871 = vmul.f32 %v3870, 0.6931472
      %v3872 = vlog2.pop %v3617
      %v3873 = vmul.f32 %v3872, 0.6931472
      %v3874 = vlog2.pop %v3619
      %v3875 = vmul.f32 %v3874, 0.6931472
      %v3876 = vlog2.pop %v3621
      %v3877 = vmul.f32 %v3876, 0.6931472
      %v3878 = vlog2.pop %v3623
      %v3879 = vmul.f32 %v3878, 0.6931472
      %v3880 = vlog2.pop %v3625
      %v3881 = vmul.f32 %v3880, 0.6931472
      %v3882 = vlog2.pop %v3627
      %v3883 = vmul.f32 %v3882, 0.6931472
      %v3884 = vlog2.pop %v3629
      %v3885 = vmul.f32 %v3884, 0.6931472
      %v3886 = vlog2.pop %v3631
      %v3887 = vmul.f32 %v3886, 0.6931472
      %v3888 = vlog2.pop %v3633
      %v3889 = vmul.f32 %v3888, 0.6931472
      %v3890 = vlog2.pop %v3635
      %v3891 = vmul.f32 %v3890, 0.6931472
      %v3892 = vlog2.pop %v3637
      %v3893 = vmul.f32 %v3892, 0.6931472
      %v3894 = vlog2.pop %v3639
      %v3895 = vmul.f32 %v3894, 0.6931472
      %v3896 = vlog2.pop %v3641
      %v3897 = vmul.f32 %v3896, 0.6931472
      %v3898 = vlog2.pop %v3643
      %v3899 = vmul.f32 %v3898, 0.6931472
      %v3900 = vlog2.pop %v3645
      %v3901 = vmul.f32 %v3900, 0.6931472
      %v3902 = vlog2.pop %v3647
      %v3903 = vmul.f32 %v3902, 0.6931472
      %v3904 = vlog2.pop %v3649
      %v3905 = vmul.f32 %v3904, 0.6931472
      %v3906 = vlog2.pop %v3651
      %v3907 = vmul.f32 %v3906, 0.6931472
      %v3908 = vlog2.pop %v3653
      %v3909 = vmul.f32 %v3908, 0.6931472
      %v3910 = vlog2.pop %v3655
      %v3911 = vmul.f32 %v3910, 0.6931472
      %v3912 = vlog2.pop %v3657
      %v3913 = vmul.f32 %v3912, 0.6931472
      %v3914 = vlog2.pop %v3659
      %v3915 = vmul.f32 %v3914, 0.6931472
      %v3916 = vlog2.pop %v3661
      %v3917 = vmul.f32 %v3916, 0.6931472
      %v3918 = vlog2.pop %v3663
      %v3919 = vmul.f32 %v3918, 0.6931472
      %v3920 = vlog2.pop %v3665
      %v3921 = vmul.f32 %v3920, 0.6931472
      %v3922 = vlog2.pop %v3667
      %v3923 = vmul.f32 %v3922, 0.6931472
      %v3924 = vlog2.pop %v3669
      %v3925 = vmul.f32 %v3924, 0.6931472
      %v3926 = vlog2.pop %v3671
      %v3927 = vmul.f32 %v3926, 0.6931472
      %v3928 = vlog2.pop %v3673
      %v3929 = vmul.f32 %v3928, 0.6931472
      %v3930 = vlog2.pop %v3675
      %v3931 = vmul.f32 %v3930, 0.6931472
      %v3932 = vlog2.pop %v3677
      %v3933 = vmul.f32 %v3932, 0.6931472
      %v3934 = vlog2.pop %v3679
      %v3935 = vmul.f32 %v3934, 0.6931472
      %v3936 = vlog2.pop %v3681
      %v3937 = vmul.f32 %v3936, 0.6931472
      %v3938 = vlog2.pop %v3683
      %v3939 = vmul.f32 %v3938, 0.6931472
      %v3940 = vlog2.pop %v3685
      %v3941 = vmul.f32 %v3940, 0.6931472
      %v3942 = vlog2.pop %v3687
      %v3943 = vmul.f32 %v3942, 0.6931472
      %v3944 = vlog2.pop %v3689
      %v3945 = vmul.f32 %v3944, 0.6931472
      %v3946 = vlog2.pop %v3691
      %v3947 = vmul.f32 %v3946, 0.6931472
      %v3948 = vlog2.pop %v3693
      %v3949 = vmul.f32 %v3948, 0.6931472
      %v3950 = vlog2.pop %v3695
      %v3951 = vmul.f32 %v3950, 0.6931472
      %v3952 = vlog2.pop %v3697
      %v3953 = vmul.f32 %v3952, 0.6931472
      %v3954 = vlog2.pop %v3699
      %v3955 = vmul.f32 %v3954, 0.6931472
      %v3956 = vlog2.pop %v3701
      %v3957 = vmul.f32 %v3956, 0.6931472
      %v3958 = vlog2.pop %v3703
      %v3959 = vmul.f32 %v3958, 0.6931472
      %v3960 = vlog2.pop %v3705
      %v3961 = vmul.f32 %v3960, 0.6931472
      %v3962 = vlog2.pop %v3707
      %v3963 = vmul.f32 %v3962, 0.6931472
      %v3964 = vlog2.pop %v3709
      %v3965 = vmul.f32 %v3964, 0.6931472
      %v3966 = vlog2.pop %v3711
      %v3967 = vmul.f32 %v3966, 0.6931472
      %v3968 = vlog2.pop %v3713
      %v3969 = vmul.f32 %v3968, 0.6931472
      %v3970 = vlog2.pop %v3715
      %v3971 = vmul.f32 %v3970, 0.6931472
      %v3972 = vlog2.pop %v3717
      %v3973 = vmul.f32 %v3972, 0.6931472
      %v3974 = vlog2.pop %v3719
      %v3975 = vmul.f32 %v3974, 0.6931472
      %v3976 = vlog2.pop %v3721
      %v3977 = vmul.f32 %v3976, 0.6931472
      %v3978 = vlog2.pop %v3723
      %v3979 = vmul.f32 %v3978, 0.6931472
      %v3980 = vlog2.pop %v3725
      %v3981 = vmul.f32 %v3980, 0.6931472
      %v3982 = vlog2.pop %v3727
      %v3983 = vmul.f32 %v3982, 0.6931472
      %v3984 = vlog2.pop %v3729
      %v3985 = vmul.f32 %v3984, 0.6931472
      %v3986 = vlog2.pop %v3731
      %v3987 = vmul.f32 %v3986, 0.6931472
      %v3988 = vlog2.pop %v3733
      %v3989 = vmul.f32 %v3988, 0.6931472
      %v3990 = vlog2.pop %v3735
      %v3991 = vmul.f32 %v3990, 0.6931472
      %v3992 = vlog2.pop %v3737
      %v3993 = vmul.f32 %v3992, 0.6931472
      %v3994 = vlog2.pop %v3739
      %v3995 = vmul.f32 %v3994, 0.6931472
      %v3996 = vlog2.pop %v3741
      %v3997 = vmul.f32 %v3996, 0.6931472
      %v3998 = vlog2.pop %v3743
      %v3999 = vmul.f32 %v3998, 0.6931472
      %v4000 = vlog2.pop %v3745
      %v4001 = vmul.f32 %v4000, 0.6931472
      %v4002 = vlog2.pop %v3747
      %v4003 = vmul.f32 %v4002, 0.6931472
      %v4004 = vsub.f32 %v3108, %v3749
      %v4005 = vsub.f32 %v3109, %v3751
      %v4006 = vsub.f32 %v3110, %v3753
      %v4007 = vsub.f32 %v3111, %v3755
      %v4008 = vsub.f32 %v3112, %v3757
      %v4009 = vsub.f32 %v3113, %v3759
      %v4010 = vsub.f32 %v3114, %v3761
      %v4011 = vsub.f32 %v3115, %v3763
      %v4012 = vsub.f32 %v3116, %v3765
      %v4013 = vsub.f32 %v3117, %v3767
      %v4014 = vsub.f32 %v3118, %v3769
      %v4015 = vsub.f32 %v3119, %v3771
      %v4016 = vsub.f32 %v3120, %v3773
      %v4017 = vsub.f32 %v3121, %v3775
      %v4018 = vsub.f32 %v3122, %v3777
      %v4019 = vsub.f32 %v3123, %v3779
      %v4020 = vsub.f32 %v3124, %v3781
      %v4021 = vsub.f32 %v3125, %v3783
      %v4022 = vsub.f32 %v3126, %v3785
      %v4023 = vsub.f32 %v3127, %v3787
      %v4024 = vsub.f32 %v3128, %v3789
      %v4025 = vsub.f32 %v3129, %v3791
      %v4026 = vsub.f32 %v3130, %v3793
      %v4027 = vsub.f32 %v3131, %v3795
      %v4028 = vsub.f32 %v3132, %v3797
      %v4029 = vsub.f32 %v3133, %v3799
      %v4030 = vsub.f32 %v3134, %v3801
      %v4031 = vsub.f32 %v3135, %v3803
      %v4032 = vsub.f32 %v3136, %v3805
      %v4033 = vsub.f32 %v3137, %v3807
      %v4034 = vsub.f32 %v3138, %v3809
      %v4035 = vsub.f32 %v3139, %v3811
      %v4036 = vsub.f32 %v3140, %v3813
      %v4037 = vsub.f32 %v3141, %v3815
      %v4038 = vsub.f32 %v3142, %v3817
      %v4039 = vsub.f32 %v3143, %v3819
      %v4040 = vsub.f32 %v3144, %v3821
      %v4041 = vsub.f32 %v3145, %v3823
      %v4042 = vsub.f32 %v3146, %v3825
      %v4043 = vsub.f32 %v3147, %v3827
      %v4044 = vsub.f32 %v3148, %v3829
      %v4045 = vsub.f32 %v3149, %v3831
      %v4046 = vsub.f32 %v3150, %v3833
      %v4047 = vsub.f32 %v3151, %v3835
      %v4048 = vsub.f32 %v3152, %v3837
      %v4049 = vsub.f32 %v3153, %v3839
      %v4050 = vsub.f32 %v3154, %v3841
      %v4051 = vsub.f32 %v3155, %v3843
      %v4052 = vsub.f32 %v3156, %v3845
      %v4053 = vsub.f32 %v3157, %v3847
      %v4054 = vsub.f32 %v3158, %v3849
      %v4055 = vsub.f32 %v3159, %v3851
      %v4056 = vsub.f32 %v3160, %v3853
      %v4057 = vsub.f32 %v3161, %v3855
      %v4058 = vsub.f32 %v3162, %v3857
      %v4059 = vsub.f32 %v3163, %v3859
      %v4060 = vsub.f32 %v3164, %v3861
      %v4061 = vsub.f32 %v3165, %v3863
      %v4062 = vsub.f32 %v3166, %v3865
      %v4063 = vsub.f32 %v3167, %v3867
      %v4064 = vsub.f32 %v3168, %v3869
      %v4065 = vsub.f32 %v3169, %v3871
      %v4066 = vsub.f32 %v3170, %v3873
      %v4067 = vsub.f32 %v3171, %v3875
      %v4068 = vsub.f32 %v3172, %v3877
      %v4069 = vsub.f32 %v3173, %v3879
      %v4070 = vsub.f32 %v3174, %v3881
      %v4071 = vsub.f32 %v3175, %v3883
      %v4072 = vsub.f32 %v3176, %v3885
      %v4073 = vsub.f32 %v3177, %v3887
      %v4074 = vsub.f32 %v3178, %v3889
      %v4075 = vsub.f32 %v3179, %v3891
      %v4076 = vsub.f32 %v3180, %v3893
      %v4077 = vsub.f32 %v3181, %v3895
      %v4078 = vsub.f32 %v3182, %v3897
      %v4079 = vsub.f32 %v3183, %v3899
      %v4080 = vsub.f32 %v3184, %v3901
      %v4081 = vsub.f32 %v3185, %v3903
      %v4082 = vsub.f32 %v3186, %v3905
      %v4083 = vsub.f32 %v3187, %v3907
      %v4084 = vsub.f32 %v3188, %v3909
      %v4085 = vsub.f32 %v3189, %v3911
      %v4086 = vsub.f32 %v3190, %v3913
      %v4087 = vsub.f32 %v3191, %v3915
      %v4088 = vsub.f32 %v3192, %v3917
      %v4089 = vsub.f32 %v3193, %v3919
      %v4090 = vsub.f32 %v3194, %v3921
      %v4091 = vsub.f32 %v3195, %v3923
      %v4092 = vsub.f32 %v3196, %v3925
      %v4093 = vsub.f32 %v3197, %v3927
      %v4094 = vsub.f32 %v3198, %v3929
      %v4095 = vsub.f32 %v3199, %v3931
      %v4096 = vsub.f32 %v3200, %v3933
      %v4097 = vsub.f32 %v3201, %v3935
      %v4098 = vsub.f32 %v3202, %v3937
      %v4099 = vsub.f32 %v3203, %v3939
      %v4100 = vsub.f32 %v3204, %v3941
      %v4101 = vsub.f32 %v3205, %v3943
      %v4102 = vsub.f32 %v3206, %v3945
      %v4103 = vsub.f32 %v3207, %v3947
      %v4104 = vsub.f32 %v3208, %v3949
      %v4105 = vsub.f32 %v3209, %v3951
      %v4106 = vsub.f32 %v3210, %v3953
      %v4107 = vsub.f32 %v3211, %v3955
      %v4108 = vsub.f32 %v3212, %v3957
      %v4109 = vsub.f32 %v3213, %v3959
      %v4110 = vsub.f32 %v3214, %v3961
      %v4111 = vsub.f32 %v3215, %v3963
      %v4112 = vsub.f32 %v3216, %v3965
      %v4113 = vsub.f32 %v3217, %v3967
      %v4114 = vsub.f32 %v3218, %v3969
      %v4115 = vsub.f32 %v3219, %v3971
      %v4116 = vsub.f32 %v3220, %v3973
      %v4117 = vsub.f32 %v3221, %v3975
      %v4118 = vsub.f32 %v3222, %v3977
      %v4119 = vsub.f32 %v3223, %v3979
      %v4120 = vsub.f32 %v3224, %v3981
      %v4121 = vsub.f32 %v3225, %v3983
      %v4122 = vsub.f32 %v3226, %v3985
      %v4123 = vsub.f32 %v3227, %v3987
      %v4124 = vsub.f32 %v3228, %v3989
      %v4125 = vsub.f32 %v3229, %v3991
      %v4126 = vsub.f32 %v3230, %v3993
      %v4127 = vsub.f32 %v3231, %v3995
      %v4128 = vsub.f32 %v3232, %v3997
      %v4129 = vsub.f32 %v3233, %v3999
      %v4130 = vsub.f32 %v3234, %v4001
      %v4131 = vsub.f32 %v3235, %v4003
      %4132 = vst [vmem:[%s280] sm:$0xff] %v4004
      %4133 = vst [vmem:[%s280 + $0x8] sm:$0xff] %v4005
      %4134 = vst [vmem:[%s280 + $0x10] sm:$0xff] %v4006
      %4135 = vst [vmem:[%s280 + $0x18] sm:$0xff] %v4007
      %4136 = vst [vmem:[%s280 + $0x20] sm:$0xff] %v4008
      %4137 = vst [vmem:[%s280 + $0x28] sm:$0xff] %v4009
      %4138 = vst [vmem:[%s280 + $0x30] sm:$0xff] %v4010
      %4139 = vst [vmem:[%s280 + $0x38] sm:$0xff] %v4011
      %4140 = vst [vmem:[%s280 + $0x40] sm:$0xff] %v4012
      %4141 = vst [vmem:[%s280 + $0x48] sm:$0xff] %v4013
      %4142 = vst [vmem:[%s280 + $0x50] sm:$0xff] %v4014
      %4143 = vst [vmem:[%s280 + $0x58] sm:$0xff] %v4015
      %4144 = vst [vmem:[%s280 + $0x60] sm:$0xff] %v4016
      %4145 = vst [vmem:[%s280 + $0x68] sm:$0xff] %v4017
      %4146 = vst [vmem:[%s280 + $0x70] sm:$0xff] %v4018
      %4147 = vst [vmem:[%s280 + $0x78] sm:$0xff] %v4019
      %4148 = vst [vmem:[%s280 + $0x80] sm:$0xff] %v4020
      %4149 = vst [vmem:[%s280 + $0x88] sm:$0xff] %v4021
      %4150 = vst [vmem:[%s280 + $0x90] sm:$0xff] %v4022
      %4151 = vst [vmem:[%s280 + $0x98] sm:$0xff] %v4023
      %4152 = vst [vmem:[%s280 + $0xa0] sm:$0xff] %v4024
      %4153 = vst [vmem:[%s280 + $0xa8] sm:$0xff] %v4025
      %4154 = vst [vmem:[%s280 + $0xb0] sm:$0xff] %v4026
      %4155 = vst [vmem:[%s280 + $0xb8] sm:$0xff] %v4027
      %4156 = vst [vmem:[%s280 + $0xc0] sm:$0xff] %v4028
      %4157 = vst [vmem:[%s280 + $0xc8] sm:$0xff] %v4029
      %4158 = vst [vmem:[%s280 + $0xd0] sm:$0xff] %v4030
      %4159 = vst [vmem:[%s280 + $0xd8] sm:$0xff] %v4031
      %4160 = vst [vmem:[%s280 + $0xe0] sm:$0xff] %v4032
      %4161 = vst [vmem:[%s280 + $0xe8] sm:$0xff] %v4033
      %4162 = vst [vmem:[%s280 + $0xf0] sm:$0xff] %v4034
      %4163 = vst [vmem:[%s280 + $0xf8] sm:$0xff] %v4035
      %4164 = vst [vmem:[%s280 + $0x100] sm:$0xff] %v4036
      %4165 = vst [vmem:[%s280 + $0x108] sm:$0xff] %v4037
      %4166 = vst [vmem:[%s280 + $0x110] sm:$0xff] %v4038
      %4167 = vst [vmem:[%s280 + $0x118] sm:$0xff] %v4039
      %4168 = vst [vmem:[%s280 + $0x120] sm:$0xff] %v4040
      %4169 = vst [vmem:[%s280 + $0x128] sm:$0xff] %v4041
      %4170 = vst [vmem:[%s280 + $0x130] sm:$0xff] %v4042
      %4171 = vst [vmem:[%s280 + $0x138] sm:$0xff] %v4043
      %4172 = vst [vmem:[%s280 + $0x140] sm:$0xff] %v4044
      %4173 = vst [vmem:[%s280 + $0x148] sm:$0xff] %v4045
      %4174 = vst [vmem:[%s280 + $0x150] sm:$0xff] %v4046
      %4175 = vst [vmem:[%s280 + $0x158] sm:$0xff] %v4047
      %4176 = vst [vmem:[%s280 + $0x160] sm:$0xff] %v4048
      %4177 = vst [vmem:[%s280 + $0x168] sm:$0xff] %v4049
      %4178 = vst [vmem:[%s280 + $0x170] sm:$0xff] %v4050
      %4179 = vst [vmem:[%s280 + $0x178] sm:$0xff] %v4051
      %4180 = vst [vmem:[%s280 + $0x180] sm:$0xff] %v4052
      %4181 = vst [vmem:[%s280 + $0x188] sm:$0xff] %v4053
      %4182 = vst [vmem:[%s280 + $0x190] sm:$0xff] %v4054
      %4183 = vst [vmem:[%s280 + $0x198] sm:$0xff] %v4055
      %4184 = vst [vmem:[%s280 + $0x1a0] sm:$0xff] %v4056
      %4185 = vst [vmem:[%s280 + $0x1a8] sm:$0xff] %v4057
      %4186 = vst [vmem:[%s280 + $0x1b0] sm:$0xff] %v4058
      %4187 = vst [vmem:[%s280 + $0x1b8] sm:$0xff] %v4059
      %4188 = vst [vmem:[%s280 + $0x1c0] sm:$0xff] %v4060
      %4189 = vst [vmem:[%s280 + $0x1c8] sm:$0xff] %v4061
      %4190 = vst [vmem:[%s280 + $0x1d0] sm:$0xff] %v4062
      %4191 = vst [vmem:[%s280 + $0x1d8] sm:$0xff] %v4063
      %4192 = vst [vmem:[%s280 + $0x1e0] sm:$0xff] %v4064
      %4193 = vst [vmem:[%s280 + $0x1e8] sm:$0xff] %v4065
      %4194 = vst [vmem:[%s280 + $0x1f0] sm:$0xff] %v4066
      %4195 = vst [vmem:[%s280 + $0x1f8] sm:$0xff] %v4067
      %4196 = vst [vmem:[%s280 + $0x200] sm:$0xff] %v4068
      %4197 = vst [vmem:[%s280 + $0x208] sm:$0xff] %v4069
      %4198 = vst [vmem:[%s280 + $0x210] sm:$0xff] %v4070
      %4199 = vst [vmem:[%s280 + $0x218] sm:$0xff] %v4071
      %4200 = vst [vmem:[%s280 + $0x220] sm:$0xff] %v4072
      %4201 = vst [vmem:[%s280 + $0x228] sm:$0xff] %v4073
      %4202 = vst [vmem:[%s280 + $0x230] sm:$0xff] %v4074
      %4203 = vst [vmem:[%s280 + $0x238] sm:$0xff] %v4075
      %4204 = vst [vmem:[%s280 + $0x240] sm:$0xff] %v4076
      %4205 = vst [vmem:[%s280 + $0x248] sm:$0xff] %v4077
      %4206 = vst [vmem:[%s280 + $0x250] sm:$0xff] %v4078
      %4207 = vst [vmem:[%s280 + $0x258] sm:$0xff] %v4079
      %4208 = vst [vmem:[%s280 + $0x260] sm:$0xff] %v4080
      %4209 = vst [vmem:[%s280 + $0x268] sm:$0xff] %v4081
      %4210 = vst [vmem:[%s280 + $0x270] sm:$0xff] %v4082
      %4211 = vst [vmem:[%s280 + $0x278] sm:$0xff] %v4083
      %4212 = vst [vmem:[%s280 + $0x280] sm:$0xff] %v4084
      %4213 = vst [vmem:[%s280 + $0x288] sm:$0xff] %v4085
      %4214 = vst [vmem:[%s280 + $0x290] sm:$0xff] %v4086
      %4215 = vst [vmem:[%s280 + $0x298] sm:$0xff] %v4087
      %4216 = vst [vmem:[%s280 + $0x2a0] sm:$0xff] %v4088
      %4217 = vst [vmem:[%s280 + $0x2a8] sm:$0xff] %v4089
      %4218 = vst [vmem:[%s280 + $0x2b0] sm:$0xff] %v4090
      %4219 = vst [vmem:[%s280 + $0x2b8] sm:$0xff] %v4091
      %4220 = vst [vmem:[%s280 + $0x2c0] sm:$0xff] %v4092
      %4221 = vst [vmem:[%s280 + $0x2c8] sm:$0xff] %v4093
      %4222 = vst [vmem:[%s280 + $0x2d0] sm:$0xff] %v4094
      %4223 = vst [vmem:[%s280 + $0x2d8] sm:$0xff] %v4095
      %4224 = vst [vmem:[%s280 + $0x2e0] sm:$0xff] %v4096
      %4225 = vst [vmem:[%s280 + $0x2e8] sm:$0xff] %v4097
      %4226 = vst [vmem:[%s280 + $0x2f0] sm:$0xff] %v4098
      %4227 = vst [vmem:[%s280 + $0x2f8] sm:$0xff] %v4099
      %4228 = vst [vmem:[%s280 + $0x300] sm:$0xff] %v4100
      %4229 = vst [vmem:[%s280 + $0x308] sm:$0xff] %v4101
      %4230 = vst [vmem:[%s280 + $0x310] sm:$0xff] %v4102
      %4231 = vst [vmem:[%s280 + $0x318] sm:$0xff] %v4103
      %4232 = vst [vmem:[%s280 + $0x320] sm:$0xff] %v4104
      %4233 = vst [vmem:[%s280 + $0x328] sm:$0xff] %v4105
      %4234 = vst [vmem:[%s280 + $0x330] sm:$0xff] %v4106
      %4235 = vst [vmem:[%s280 + $0x338] sm:$0xff] %v4107
      %4236 = vst [vmem:[%s280 + $0x340] sm:$0xff] %v4108
      %4237 = vst [vmem:[%s280 + $0x348] sm:$0xff] %v4109
      %4238 = vst [vmem:[%s280 + $0x350] sm:$0xff] %v4110
      %4239 = vst [vmem:[%s280 + $0x358] sm:$0xff] %v4111
      %4240 = vst [vmem:[%s280 + $0x360] sm:$0xff] %v4112
      %4241 = vst [vmem:[%s280 + $0x368] sm:$0xff] %v4113
      %4242 = vst [vmem:[%s280 + $0x370] sm:$0xff] %v4114
      %4243 = vst [vmem:[%s280 + $0x378] sm:$0xff] %v4115
      %4244 = vst [vmem:[%s280 + $0x380] sm:$0xff] %v4116
      %4245 = vst [vmem:[%s280 + $0x388] sm:$0xff] %v4117
      %4246 = vst [vmem:[%s280 + $0x390] sm:$0xff] %v4118
      %4247 = vst [vmem:[%s280 + $0x398] sm:$0xff] %v4119
      %4248 = vst [vmem:[%s280 + $0x3a0] sm:$0xff] %v4120
      %4249 = vst [vmem:[%s280 + $0x3a8] sm:$0xff] %v4121
      %4250 = vst [vmem:[%s280 + $0x3b0] sm:$0xff] %v4122
      %4251 = vst [vmem:[%s280 + $0x3b8] sm:$0xff] %v4123
      %4252 = vst [vmem:[%s280 + $0x3c0] sm:$0xff] %v4124
      %4253 = vst [vmem:[%s280 + $0x3c8] sm:$0xff] %v4125
      %4254 = vst [vmem:[%s280 + $0x3d0] sm:$0xff] %v4126
      %4255 = vst [vmem:[%s280 + $0x3d8] sm:$0xff] %v4127
      %4256 = vst [vmem:[%s280 + $0x3e0] sm:$0xff] %v4128
      %4257 = vst [vmem:[%s280 + $0x3e8] sm:$0xff] %v4129
      %4258 = vst [vmem:[%s280 + $0x3f0] sm:$0xff] %v4130
      %4259 = vst [vmem:[%s280 + $0x3f8] sm:$0xff] %v4131
      %s4260 = smul.u32 128, %s18
      %p4261 = scmp.lt.s32.totalorder %s4260, 255
      %s4262 = scalar_select %p4261, %s4260, 255
      %s4263 = smul.addr %s4262, 8
      %s4264 = scalar_lea.vmem %s7, %s4263
      // Predicated region
      $region49: #{mlp_forward.1} parent=47 // pred_check
        %p4265 = pneg %p188
      $region50: #{mlp_forward.1} parent=47 // pred_check_branch
        %4267 = sbr.rel (%p4265) target = $region52
      $region51: #{mlp_forward.1} parent=47 // pred_region
        %s4268 = smul.u32 128, %s18
      $region52: #{mlp_forward.1} parent=47 // pred_fallthru
        _
    $region48: #{mlp_forward.1} parent=5 // pred_fallthru
      _
    %p4269 = scmp.le.s32.totalorder 2, %s13
    // Predicated region
    $region53: #{mlp_forward.1} parent=5 // pred_check
      %p4270 = pneg %p4269
    $region54: #{mlp_forward.1} parent=5 // pred_check_branch
      %4272 = sbr.rel (%p4270) target = $region56
    $region55: #{mlp_forward.1} parent=5 // pred_region
      %s4273 = ssub.s32 %s13, 2
      // Predicated region
      $region57: #{mlp_forward.1} parent=55 // pred_check
        %p4274 = pneg %p194
      $region58: #{mlp_forward.1} parent=55 // pred_check_branch
        %4276 = sbr.rel (%p4274) target = $region60
      $region59: #{mlp_forward.1} parent=55 // pred_region
        %s4277 = smul.u32 128, %s19
        %p4278 = scmp.lt.s32.totalorder %s4277, 255
        %s4279 = scalar_select %p4278, %s4277, 255
        %s4280 = smul.addr %s4279, 8
        %s4281 = scalar_lea.vmem %s7, %s4280
      $region60: #{mlp_forward.1} parent=55 // pred_fallthru
        _
    $region56: #{mlp_forward.1} parent=5 // pred_fallthru
      _
  $region6: #{mlp_forward.1} parent=0 // loop_footer
    %s17 = sadd.s32 1, %s13
  $region7: #{mlp_forward.1} parent=0 // loop_footer_branch
    %12 = sbr.rel target = $region3
  $region8: #{mlp_forward.1} parent=0 // loop_exit
    _

</llo_original>
